<compile_context>
chip_gen: v7x
topology: tpu7x:2x2x1
jax: 0.10.0
libtpu: 0.0.40
codegen_flags: <defaults>
</compile_context>

<pallas_src>
import functools
import math

import jax
import jax.numpy as jnp
from jax import lax
from jax.experimental import pallas as pl
from jax.experimental.pallas import tpu as pltpu


def _triple(v):
    if isinstance(v, (tuple, list)):
        assert len(v) == 3
        return tuple(int(i) for i in v)
    return (int(v),) * 3


def _round_up(x, m):
    return ((x + m - 1) // m) * m


def _spectral_normalize(weight, n_iters=50, eps=1e-12):
    """nn.utils.spectral_norm forward semantics: W / sigma_max(W)."""
    c_out = weight.shape[0]
    wm = weight.reshape(c_out, -1).astype(jnp.float32)

    def body(_, u):
        v = wm.T @ u
        v = v / (jnp.linalg.norm(v) + eps)
        u = wm @ v
        u = u / (jnp.linalg.norm(u) + eps)
        return u

    u0 = jnp.full((c_out,), 1.0 / math.sqrt(c_out), jnp.float32)
    u = lax.fori_loop(0, n_iters, body, u0)
    v = wm.T @ u
    v = v / (jnp.linalg.norm(v) + eps)
    sigma = u @ (wm @ v)
    return weight / sigma


def _conv3d_block_kernel(KD, KH, KW, dild, dilh, dilw, wrow, l_out, neg_slope,
                         x_ref, w_ref, b_ref, o_ref):
    """One grid step = one (batch n, output depth d) slice.

    x_ref: (1, Dp, C_in, Lflat)  padded input, (H,W) flattened on lanes
    w_ref: (KD, KH, KW, C_out, C_in)
    b_ref: (C_out, 1)
    o_ref: (1, 1, C_out, L_out)  with L_out = H_out * wrow (128-multiple)
    """
    d = pl.program_id(1)
    c_out = w_ref.shape[3]
    c_in = w_ref.shape[4]

    acc = jnp.zeros((c_out, l_out), jnp.float32)
    for kd in range(KD):
        # one (C_in, Lflat) depth plane; dynamic depth index d + kd*dilation
        xd = x_ref[0, pl.ds(d + kd * dild, 1)]          # (1, C_in, Lflat)
        for kh in range(KH):
            for kw in range(KW):
                off = kh * dilh * wrow + kw * dilw       # static lane offset
                xs = xd[0, :, off:off + l_out]           # (C_in, L_out)
                wt = w_ref[kd, kh, kw]                   # (C_out, C_in)
                for ci in range(c_in):
                    # exact f32 VPU MAC, vectorised over C_out and all pixels
                    acc = acc + wt[:, ci:ci + 1] * xs[ci:ci + 1, :]

    acc = acc + b_ref[...]                               # bias (lane broadcast)
    acc = jnp.where(acc >= 0, acc, neg_slope * acc)      # LeakyReLU(0.2)
    o_ref[0, 0, :, :] = acc.astype(o_ref.dtype)


def conv3d_block(x, weight, bias=None, *, stride=1, padding=-1, dilation=1,
                 groups=1, norm='SN', negative_slope=0.2, transpose=False):
    """JAX/Pallas equivalent of Conv3dBlock.forward (SN conv3d + LeakyReLU)."""
    assert not transpose, "ConvTranspose3d not implemented"
    assert groups == 1, "groups != 1 not implemented"
    assert norm in ('SN', None), "BN / IN norms not implemented"
    sd, sh, sw = _triple(stride)
    assert (sd, sh, sw) == (1, 1, 1), "stride != 1 not implemented"
    dild, dilh, dilw = _triple(dilation)

    N, C_in, D, H, W = x.shape
    C_out, C_in_w, KD, KH, KW = weight.shape
    assert C_in_w == C_in

    if isinstance(padding, int) and padding == -1:
        pd, ph, pw = (((k - 1) * dl) // 2
                      for k, dl in zip((KD, KH, KW), (dild, dilh, dilw)))
    else:
        pd, ph, pw = _triple(padding)

    D_out = D + 2 * pd - (KD - 1) * dild
    H_out = H + 2 * ph - (KH - 1) * dilh
    W_out = W + 2 * pw - (KW - 1) * dilw
    assert D_out > 0 and H_out > 0 and W_out > 0

    if norm == 'SN':
        weight = _spectral_normalize(weight)
    weight = weight.astype(jnp.float32)
    if bias is None:
        bias = jnp.zeros((C_out,), jnp.float32)
    bias = bias.astype(jnp.float32)

    # ---------- host-side layout prep (single pass over the input) ----------
    Dp, Hp, Wp0 = D + 2 * pd, H + 2 * ph, W + 2 * pw
    # flattened row stride: make the output slab width a multiple of 128 lanes
    wrow = Wp0
    need = 128 // math.gcd(H_out, 128)
    if need <= 32:
        wrow = _round_up(wrow, need)
    l_out = H_out * wrow
    max_off = (KH - 1) * dilh * wrow + (KW - 1) * dilw
    lflat = _round_up(max(Hp * wrow, max_off + l_out), 128)

    xpad = jnp.pad(x.astype(jnp.float32),
                   ((0, 0), (0, 0), (pd, pd), (ph, ph),
                    (pw, pw + wrow - Wp0)))                 # width -> wrow
    xflat = xpad.reshape(N, C_in, Dp, Hp * wrow)
    if lflat > Hp * wrow:
        xflat = jnp.pad(xflat, ((0, 0), (0, 0), (0, 0), (0, lflat - Hp * wrow)))
    xflat = jnp.transpose(xflat, (0, 2, 1, 3))              # (N, Dp, C_in, Lflat)

    w_taps = jnp.transpose(weight, (2, 3, 4, 0, 1))         # (KD,KH,KW,C_out,C_in)
    b_col = bias.reshape(C_out, 1)

    kernel = functools.partial(_conv3d_block_kernel, KD, KH, KW,
                               dild, dilh, dilw, wrow, l_out,
                               float(negative_slope))

    out_flat = pl.pallas_call(
        kernel,
        out_shape=jax.ShapeDtypeStruct((N, D_out, C_out, l_out), jnp.float32),
        grid_spec=pltpu.PrefetchScalarGridSpec(
            num_scalar_prefetch=0,
            grid=(N, D_out),
            in_specs=[
                pl.BlockSpec((1, Dp, C_in, lflat), lambda n, d: (n, 0, 0, 0)),
                pl.BlockSpec((KD, KH, KW, C_out, C_in),
                             lambda n, d: (0, 0, 0, 0, 0)),
                pl.BlockSpec((C_out, 1), lambda n, d: (0, 0)),
            ],
            out_specs=pl.BlockSpec((1, 1, C_out, l_out),
                                   lambda n, d: (n, d, 0, 0)),
        ),
        compiler_params=pltpu.CompilerParams(
            dimension_semantics=("parallel", "parallel")),
    )(xflat, w_taps, b_col)

    out = out_flat.reshape(N, D_out, C_out, H_out, wrow)[..., :W_out]
    return jnp.transpose(out, (0, 2, 1, 3, 4))   # (N, C_out, D_out, H_out, W_out)


def _reference_conv3d_block(x, weight, bias, *, padding, dilation,
                            negative_slope=0.2, norm='SN'):
    """Pure-jnp reference mirroring Conv3dBlock.forward (norm='SN' path)."""
    w = _spectral_normalize(weight) if norm == 'SN' else weight
    pd, ph, pw = padding
    out = lax.conv_general_dilated(
        x.astype(jnp.float32), w.astype(jnp.float32),
        window_strides=(1, 1, 1),
        padding=[(pd, pd), (ph, ph), (pw, pw)],
        rhs_dilation=dilation,
        dimension_numbers=('NCDHW', 'OIDHW', 'NCDHW'),
        precision=lax.Precision.HIGHEST)
    out = out + bias.astype(jnp.float32)[None, :, None, None, None]
    return jnp.where(out >= 0, out, negative_slope * out)


if __name__ == "__main__":
    key = jax.random.PRNGKey(0)
    B, C_in, C_out, D, H, W = 2, 4, 8, 4, 16, 16
    ksz = (3, 3, 3)

    kx, kw, kb = jax.random.split(key, 3)
    x = jax.random.normal(kx, (B, C_in, D, H, W), jnp.float32)
    weight = 0.1 * jax.random.normal(kw, (C_out, C_in) + ksz, jnp.float32)
    bias = 0.1 * jax.random.normal(kb, (C_out,), jnp.float32)

    out = conv3d_block(x, weight, bias, stride=1, padding=-1, dilation=1,
                       norm='SN')
    out = jax.block_until_ready(out)

    pad = tuple((k - 1) // 2 for k in ksz)
    ref = _reference_conv3d_block(x, weight, bias, padding=pad,
                                  dilation=(1, 1, 1), norm='SN')
    ref = jax.block_until_ready(ref)

    assert out.shape == ref.shape == (B, C_out, D, H, W), (out.shape, ref.shape)
    err = float(jnp.max(jnp.abs(out - ref)))
    scale = float(jnp.max(jnp.abs(ref))) + 1e-6
    assert err <= 1e-3 * max(1.0, scale), (err, scale)
    print("KERNEL_OK")
</pallas_src>

<mosaic_0001>
module attributes {stable_mosaic.version = 11 : i64} {
  func.func @_conv3d_block_kernel(%arg0: i32, %arg1: i32, %arg2: memref<1x6x4x512xf32, #tpu.memory_space<vmem>>, %arg3: memref<3x3x3x8x4xf32, #tpu.memory_space<vmem>>, %arg4: memref<8x1xf32, #tpu.memory_space<vmem>>, %arg5: memref<1x1x8x384xf32, #tpu.memory_space<vmem>>) attributes {dimension_semantics = [#tpu.dimension_semantics<parallel>, #tpu.dimension_semantics<parallel>], iteration_bounds = array<i64: 2, 4>, scalar_prefetch = 0 : i64, scratch_operands = 0 : i64, tpu.core_type = #tpu.core_type<tc>, window_params = [{transform_indices = @transform_0, window_bounds = array<i64: 1, 6, 4, 512>}, {pipeline_mode = #tpu.pipeline_mode<synchronous>, transform_indices = @transform_1, window_bounds = array<i64: 3, 3, 3, 8, 4>}, {pipeline_mode = #tpu.pipeline_mode<synchronous>, transform_indices = @transform_2, window_bounds = array<i64: 8, 1>}, {transform_indices = @transform_3, window_bounds = array<i64: 1, 1, 8, 384>}]} {
    %cst = arith.constant 0.000000e+00 : f32
    %0 = vector.broadcast %cst : f32 to vector<8x384xf32>
    %c0_i32 = arith.constant 0 : i32
    %1 = arith.addi %arg1, %c0_i32 : i32
    %c0 = arith.constant 0 : index
    %2 = arith.index_cast %1 : i32 to index
    %c0_0 = arith.constant 0 : index
    %c0_1 = arith.constant 0 : index
    %3 = vector.load %arg2[%c0, %2, %c0_0, %c0_1] : memref<1x6x4x512xf32, #tpu.memory_space<vmem>>, vector<1x1x4x512xf32>
    %4 = vector.shape_cast %3 : vector<1x1x4x512xf32> to vector<1x4x512xf32>
    %5 = vector.extract_strided_slice %4 {offsets = [0, 0, 0], sizes = [1, 4, 384], strides = [1, 1, 1]} : vector<1x4x512xf32> to vector<1x4x384xf32>
    %6 = vector.shape_cast %5 : vector<1x4x384xf32> to vector<4x384xf32>
    %c0_2 = arith.constant 0 : index
    %c0_3 = arith.constant 0 : index
    %c0_4 = arith.constant 0 : index
    %c0_5 = arith.constant 0 : index
    %c0_6 = arith.constant 0 : index
    %7 = vector.load %arg3[%c0_2, %c0_3, %c0_4, %c0_5, %c0_6] : memref<3x3x3x8x4xf32, #tpu.memory_space<vmem>>, vector<1x1x1x8x4xf32>
    %8 = vector.shape_cast %7 : vector<1x1x1x8x4xf32> to vector<8x4xf32>
    %9 = vector.extract_strided_slice %8 {offsets = [0, 0], sizes = [8, 1], strides = [1, 1]} : vector<8x4xf32> to vector<8x1xf32>
    %10 = vector.extract_strided_slice %6 {offsets = [0, 0], sizes = [1, 384], strides = [1, 1]} : vector<4x384xf32> to vector<1x384xf32>
    %11 = vector.broadcast %9 : vector<8x1xf32> to vector<8x384xf32>
    %12 = vector.broadcast %10 : vector<1x384xf32> to vector<8x384xf32>
    %13 = arith.mulf %11, %12 : vector<8x384xf32>
    %14 = arith.addf %0, %13 : vector<8x384xf32>
    %15 = vector.extract_strided_slice %8 {offsets = [0, 1], sizes = [8, 1], strides = [1, 1]} : vector<8x4xf32> to vector<8x1xf32>
    %16 = vector.extract_strided_slice %6 {offsets = [1, 0], sizes = [1, 384], strides = [1, 1]} : vector<4x384xf32> to vector<1x384xf32>
    %17 = vector.broadcast %15 : vector<8x1xf32> to vector<8x384xf32>
    %18 = vector.broadcast %16 : vector<1x384xf32> to vector<8x384xf32>
    %19 = arith.mulf %17, %18 : vector<8x384xf32>
    %20 = arith.addf %14, %19 : vector<8x384xf32>
    %21 = vector.extract_strided_slice %8 {offsets = [0, 2], sizes = [8, 1], strides = [1, 1]} : vector<8x4xf32> to vector<8x1xf32>
    %22 = vector.extract_strided_slice %6 {offsets = [2, 0], sizes = [1, 384], strides = [1, 1]} : vector<4x384xf32> to vector<1x384xf32>
    %23 = vector.broadcast %21 : vector<8x1xf32> to vector<8x384xf32>
    %24 = vector.broadcast %22 : vector<1x384xf32> to vector<8x384xf32>
    %25 = arith.mulf %23, %24 : vector<8x384xf32>
    %26 = arith.addf %20, %25 : vector<8x384xf32>
    %27 = vector.extract_strided_slice %8 {offsets = [0, 3], sizes = [8, 1], strides = [1, 1]} : vector<8x4xf32> to vector<8x1xf32>
    %28 = vector.extract_strided_slice %6 {offsets = [3, 0], sizes = [1, 384], strides = [1, 1]} : vector<4x384xf32> to vector<1x384xf32>
    %29 = vector.broadcast %27 : vector<8x1xf32> to vector<8x384xf32>
    %30 = vector.broadcast %28 : vector<1x384xf32> to vector<8x384xf32>
    %31 = arith.mulf %29, %30 : vector<8x384xf32>
    %32 = arith.addf %26, %31 : vector<8x384xf32>
    %33 = vector.extract_strided_slice %4 {offsets = [0, 0, 1], sizes = [1, 4, 384], strides = [1, 1, 1]} : vector<1x4x512xf32> to vector<1x4x384xf32>
    %34 = vector.shape_cast %33 : vector<1x4x384xf32> to vector<4x384xf32>
    %c0_7 = arith.constant 0 : index
    %c0_8 = arith.constant 0 : index
    %c1 = arith.constant 1 : index
    %c0_9 = arith.constant 0 : index
    %c0_10 = arith.constant 0 : index
    %35 = vector.load %arg3[%c0_7, %c0_8, %c1, %c0_9, %c0_10] : memref<3x3x3x8x4xf32, #tpu.memory_space<vmem>>, vector<1x1x1x8x4xf32>
    %36 = vector.shape_cast %35 : vector<1x1x1x8x4xf32> to vector<8x4xf32>
    %37 = vector.extract_strided_slice %36 {offsets = [0, 0], sizes = [8, 1], strides = [1, 1]} : vector<8x4xf32> to vector<8x1xf32>
    %38 = vector.extract_strided_slice %34 {offsets = [0, 0], sizes = [1, 384], strides = [1, 1]} : vector<4x384xf32> to vector<1x384xf32>
    %39 = vector.broadcast %37 : vector<8x1xf32> to vector<8x384xf32>
    %40 = vector.broadcast %38 : vector<1x384xf32> to vector<8x384xf32>
    %41 = arith.mulf %39, %40 : vector<8x384xf32>
    %42 = arith.addf %32, %41 : vector<8x384xf32>
    %43 = vector.extract_strided_slice %36 {offsets = [0, 1], sizes = [8, 1], strides = [1, 1]} : vector<8x4xf32> to vector<8x1xf32>
    %44 = vector.extract_strided_slice %34 {offsets = [1, 0], sizes = [1, 384], strides = [1, 1]} : vector<4x384xf32> to vector<1x384xf32>
    %45 = vector.broadcast %43 : vector<8x1xf32> to vector<8x384xf32>
    %46 = vector.broadcast %44 : vector<1x384xf32> to vector<8x384xf32>
    %47 = arith.mulf %45, %46 : vector<8x384xf32>
    %48 = arith.addf %42, %47 : vector<8x384xf32>
    %49 = vector.extract_strided_slice %36 {offsets = [0, 2], sizes = [8, 1], strides = [1, 1]} : vector<8x4xf32> to vector<8x1xf32>
    %50 = vector.extract_strided_slice %34 {offsets = [2, 0], sizes = [1, 384], strides = [1, 1]} : vector<4x384xf32> to vector<1x384xf32>
    %51 = vector.broadcast %49 : vector<8x1xf32> to vector<8x384xf32>
    %52 = vector.broadcast %50 : vector<1x384xf32> to vector<8x384xf32>
    %53 = arith.mulf %51, %52 : vector<8x384xf32>
    %54 = arith.addf %48, %53 : vector<8x384xf32>
    %55 = vector.extract_strided_slice %36 {offsets = [0, 3], sizes = [8, 1], strides = [1, 1]} : vector<8x4xf32> to vector<8x1xf32>
    %56 = vector.extract_strided_slice %34 {offsets = [3, 0], sizes = [1, 384], strides = [1, 1]} : vector<4x384xf32> to vector<1x384xf32>
    %57 = vector.broadcast %55 : vector<8x1xf32> to vector<8x384xf32>
    %58 = vector.broadcast %56 : vector<1x384xf32> to vector<8x384xf32>
    %59 = arith.mulf %57, %58 : vector<8x384xf32>
    %60 = arith.addf %54, %59 : vector<8x384xf32>
    %61 = vector.extract_strided_slice %4 {offsets = [0, 0, 2], sizes = [1, 4, 384], strides = [1, 1, 1]} : vector<1x4x512xf32> to vector<1x4x384xf32>
    %62 = vector.shape_cast %61 : vector<1x4x384xf32> to vector<4x384xf32>
    %c0_11 = arith.constant 0 : index
    %c0_12 = arith.constant 0 : index
    %c2 = arith.constant 2 : index
    %c0_13 = arith.constant 0 : index
    %c0_14 = arith.constant 0 : index
    %63 = vector.load %arg3[%c0_11, %c0_12, %c2, %c0_13, %c0_14] : memref<3x3x3x8x4xf32, #tpu.memory_space<vmem>>, vector<1x1x1x8x4xf32>
    %64 = vector.shape_cast %63 : vector<1x1x1x8x4xf32> to vector<8x4xf32>
    %65 = vector.extract_strided_slice %64 {offsets = [0, 0], sizes = [8, 1], strides = [1, 1]} : vector<8x4xf32> to vector<8x1xf32>
    %66 = vector.extract_strided_slice %62 {offsets = [0, 0], sizes = [1, 384], strides = [1, 1]} : vector<4x384xf32> to vector<1x384xf32>
    %67 = vector.broadcast %65 : vector<8x1xf32> to vector<8x384xf32>
    %68 = vector.broadcast %66 : vector<1x384xf32> to vector<8x384xf32>
    %69 = arith.mulf %67, %68 : vector<8x384xf32>
    %70 = arith.addf %60, %69 : vector<8x384xf32>
    %71 = vector.extract_strided_slice %64 {offsets = [0, 1], sizes = [8, 1], strides = [1, 1]} : vector<8x4xf32> to vector<8x1xf32>
    %72 = vector.extract_strided_slice %62 {offsets = [1, 0], sizes = [1, 384], strides = [1, 1]} : vector<4x384xf32> to vector<1x384xf32>
    %73 = vector.broadcast %71 : vector<8x1xf32> to vector<8x384xf32>
    %74 = vector.broadcast %72 : vector<1x384xf32> to vector<8x384xf32>
    %75 = arith.mulf %73, %74 : vector<8x384xf32>
    %76 = arith.addf %70, %75 : vector<8x384xf32>
    %77 = vector.extract_strided_slice %64 {offsets = [0, 2], sizes = [8, 1], strides = [1, 1]} : vector<8x4xf32> to vector<8x1xf32>
    %78 = vector.extract_strided_slice %62 {offsets = [2, 0], sizes = [1, 384], strides = [1, 1]} : vector<4x384xf32> to vector<1x384xf32>
    %79 = vector.broadcast %77 : vector<8x1xf32> to vector<8x384xf32>
    %80 = vector.broadcast %78 : vector<1x384xf32> to vector<8x384xf32>
    %81 = arith.mulf %79, %80 : vector<8x384xf32>
    %82 = arith.addf %76, %81 : vector<8x384xf32>
    %83 = vector.extract_strided_slice %64 {offsets = [0, 3], sizes = [8, 1], strides = [1, 1]} : vector<8x4xf32> to vector<8x1xf32>
    %84 = vector.extract_strided_slice %62 {offsets = [3, 0], sizes = [1, 384], strides = [1, 1]} : vector<4x384xf32> to vector<1x384xf32>
    %85 = vector.broadcast %83 : vector<8x1xf32> to vector<8x384xf32>
    %86 = vector.broadcast %84 : vector<1x384xf32> to vector<8x384xf32>
    %87 = arith.mulf %85, %86 : vector<8x384xf32>
    %88 = arith.addf %82, %87 : vector<8x384xf32>
    %89 = vector.extract_strided_slice %4 {offsets = [0, 0, 24], sizes = [1, 4, 384], strides = [1, 1, 1]} : vector<1x4x512xf32> to vector<1x4x384xf32>
    %90 = vector.shape_cast %89 : vector<1x4x384xf32> to vector<4x384xf32>
    %c0_15 = arith.constant 0 : index
    %c1_16 = arith.constant 1 : index
    %c0_17 = arith.constant 0 : index
    %c0_18 = arith.constant 0 : index
    %c0_19 = arith.constant 0 : index
    %91 = vector.load %arg3[%c0_15, %c1_16, %c0_17, %c0_18, %c0_19] : memref<3x3x3x8x4xf32, #tpu.memory_space<vmem>>, vector<1x1x1x8x4xf32>
    %92 = vector.shape_cast %91 : vector<1x1x1x8x4xf32> to vector<8x4xf32>
    %93 = vector.extract_strided_slice %92 {offsets = [0, 0], sizes = [8, 1], strides = [1, 1]} : vector<8x4xf32> to vector<8x1xf32>
    %94 = vector.extract_strided_slice %90 {offsets = [0, 0], sizes = [1, 384], strides = [1, 1]} : vector<4x384xf32> to vector<1x384xf32>
    %95 = vector.broadcast %93 : vector<8x1xf32> to vector<8x384xf32>
    %96 = vector.broadcast %94 : vector<1x384xf32> to vector<8x384xf32>
    %97 = arith.mulf %95, %96 : vector<8x384xf32>
    %98 = arith.addf %88, %97 : vector<8x384xf32>
    %99 = vector.extract_strided_slice %92 {offsets = [0, 1], sizes = [8, 1], strides = [1, 1]} : vector<8x4xf32> to vector<8x1xf32>
    %100 = vector.extract_strided_slice %90 {offsets = [1, 0], sizes = [1, 384], strides = [1, 1]} : vector<4x384xf32> to vector<1x384xf32>
    %101 = vector.broadcast %99 : vector<8x1xf32> to vector<8x384xf32>
    %102 = vector.broadcast %100 : vector<1x384xf32> to vector<8x384xf32>
    %103 = arith.mulf %101, %102 : vector<8x384xf32>
    %104 = arith.addf %98, %103 : vector<8x384xf32>
    %105 = vector.extract_strided_slice %92 {offsets = [0, 2], sizes = [8, 1], strides = [1, 1]} : vector<8x4xf32> to vector<8x1xf32>
    %106 = vector.extract_strided_slice %90 {offsets = [2, 0], sizes = [1, 384], strides = [1, 1]} : vector<4x384xf32> to vector<1x384xf32>
    %107 = vector.broadcast %105 : vector<8x1xf32> to vector<8x384xf32>
    %108 = vector.broadcast %106 : vector<1x384xf32> to vector<8x384xf32>
    %109 = arith.mulf %107, %108 : vector<8x384xf32>
    %110 = arith.addf %104, %109 : vector<8x384xf32>
    %111 = vector.extract_strided_slice %92 {offsets = [0, 3], sizes = [8, 1], strides = [1, 1]} : vector<8x4xf32> to vector<8x1xf32>
    %112 = vector.extract_strided_slice %90 {offsets = [3, 0], sizes = [1, 384], strides = [1, 1]} : vector<4x384xf32> to vector<1x384xf32>
    %113 = vector.broadcast %111 : vector<8x1xf32> to vector<8x384xf32>
    %114 = vector.broadcast %112 : vector<1x384xf32> to vector<8x384xf32>
    %115 = arith.mulf %113, %114 : vector<8x384xf32>
    %116 = arith.addf %110, %115 : vector<8x384xf32>
    %117 = vector.extract_strided_slice %4 {offsets = [0, 0, 25], sizes = [1, 4, 384], strides = [1, 1, 1]} : vector<1x4x512xf32> to vector<1x4x384xf32>
    %118 = vector.shape_cast %117 : vector<1x4x384xf32> to vector<4x384xf32>
    %c0_20 = arith.constant 0 : index
    %c1_21 = arith.constant 1 : index
    %c1_22 = arith.constant 1 : index
    %c0_23 = arith.constant 0 : index
    %c0_24 = arith.constant 0 : index
    %119 = vector.load %arg3[%c0_20, %c1_21, %c1_22, %c0_23, %c0_24] : memref<3x3x3x8x4xf32, #tpu.memory_space<vmem>>, vector<1x1x1x8x4xf32>
    %120 = vector.shape_cast %119 : vector<1x1x1x8x4xf32> to vector<8x4xf32>
    %121 = vector.extract_strided_slice %120 {offsets = [0, 0], sizes = [8, 1], strides = [1, 1]} : vector<8x4xf32> to vector<8x1xf32>
    %122 = vector.extract_strided_slice %118 {offsets = [0, 0], sizes = [1, 384], strides = [1, 1]} : vector<4x384xf32> to vector<1x384xf32>
    %123 = vector.broadcast %121 : vector<8x1xf32> to vector<8x384xf32>
    %124 = vector.broadcast %122 : vector<1x384xf32> to vector<8x384xf32>
    %125 = arith.mulf %123, %124 : vector<8x384xf32>
    %126 = arith.addf %116, %125 : vector<8x384xf32>
    %127 = vector.extract_strided_slice %120 {offsets = [0, 1], sizes = [8, 1], strides = [1, 1]} : vector<8x4xf32> to vector<8x1xf32>
    %128 = vector.extract_strided_slice %118 {offsets = [1, 0], sizes = [1, 384], strides = [1, 1]} : vector<4x384xf32> to vector<1x384xf32>
    %129 = vector.broadcast %127 : vector<8x1xf32> to vector<8x384xf32>
    %130 = vector.broadcast %128 : vector<1x384xf32> to vector<8x384xf32>
    %131 = arith.mulf %129, %130 : vector<8x384xf32>
    %132 = arith.addf %126, %131 : vector<8x384xf32>
    %133 = vector.extract_strided_slice %120 {offsets = [0, 2], sizes = [8, 1], strides = [1, 1]} : vector<8x4xf32> to vector<8x1xf32>
    %134 = vector.extract_strided_slice %118 {offsets = [2, 0], sizes = [1, 384], strides = [1, 1]} : vector<4x384xf32> to vector<1x384xf32>
    %135 = vector.broadcast %133 : vector<8x1xf32> to vector<8x384xf32>
    %136 = vector.broadcast %134 : vector<1x384xf32> to vector<8x384xf32>
    %137 = arith.mulf %135, %136 : vector<8x384xf32>
    %138 = arith.addf %132, %137 : vector<8x384xf32>
    %139 = vector.extract_strided_slice %120 {offsets = [0, 3], sizes = [8, 1], strides = [1, 1]} : vector<8x4xf32> to vector<8x1xf32>
    %140 = vector.extract_strided_slice %118 {offsets = [3, 0], sizes = [1, 384], strides = [1, 1]} : vector<4x384xf32> to vector<1x384xf32>
    %141 = vector.broadcast %139 : vector<8x1xf32> to vector<8x384xf32>
    %142 = vector.broadcast %140 : vector<1x384xf32> to vector<8x384xf32>
    %143 = arith.mulf %141, %142 : vector<8x384xf32>
    %144 = arith.addf %138, %143 : vector<8x384xf32>
    %145 = vector.extract_strided_slice %4 {offsets = [0, 0, 26], sizes = [1, 4, 384], strides = [1, 1, 1]} : vector<1x4x512xf32> to vector<1x4x384xf32>
    %146 = vector.shape_cast %145 : vector<1x4x384xf32> to vector<4x384xf32>
    %c0_25 = arith.constant 0 : index
    %c1_26 = arith.constant 1 : index
    %c2_27 = arith.constant 2 : index
    %c0_28 = arith.constant 0 : index
    %c0_29 = arith.constant 0 : index
    %147 = vector.load %arg3[%c0_25, %c1_26, %c2_27, %c0_28, %c0_29] : memref<3x3x3x8x4xf32, #tpu.memory_space<vmem>>, vector<1x1x1x8x4xf32>
    %148 = vector.shape_cast %147 : vector<1x1x1x8x4xf32> to vector<8x4xf32>
    %149 = vector.extract_strided_slice %148 {offsets = [0, 0], sizes = [8, 1], strides = [1, 1]} : vector<8x4xf32> to vector<8x1xf32>
    %150 = vector.extract_strided_slice %146 {offsets = [0, 0], sizes = [1, 384], strides = [1, 1]} : vector<4x384xf32> to vector<1x384xf32>
    %151 = vector.broadcast %149 : vector<8x1xf32> to vector<8x384xf32>
    %152 = vector.broadcast %150 : vector<1x384xf32> to vector<8x384xf32>
    %153 = arith.mulf %151, %152 : vector<8x384xf32>
    %154 = arith.addf %144, %153 : vector<8x384xf32>
    %155 = vector.extract_strided_slice %148 {offsets = [0, 1], sizes = [8, 1], strides = [1, 1]} : vector<8x4xf32> to vector<8x1xf32>
    %156 = vector.extract_strided_slice %146 {offsets = [1, 0], sizes = [1, 384], strides = [1, 1]} : vector<4x384xf32> to vector<1x384xf32>
    %157 = vector.broadcast %155 : vector<8x1xf32> to vector<8x384xf32>
    %158 = vector.broadcast %156 : vector<1x384xf32> to vector<8x384xf32>
    %159 = arith.mulf %157, %158 : vector<8x384xf32>
    %160 = arith.addf %154, %159 : vector<8x384xf32>
    %161 = vector.extract_strided_slice %148 {offsets = [0, 2], sizes = [8, 1], strides = [1, 1]} : vector<8x4xf32> to vector<8x1xf32>
    %162 = vector.extract_strided_slice %146 {offsets = [2, 0], sizes = [1, 384], strides = [1, 1]} : vector<4x384xf32> to vector<1x384xf32>
    %163 = vector.broadcast %161 : vector<8x1xf32> to vector<8x384xf32>
    %164 = vector.broadcast %162 : vector<1x384xf32> to vector<8x384xf32>
    %165 = arith.mulf %163, %164 : vector<8x384xf32>
    %166 = arith.addf %160, %165 : vector<8x384xf32>
    %167 = vector.extract_strided_slice %148 {offsets = [0, 3], sizes = [8, 1], strides = [1, 1]} : vector<8x4xf32> to vector<8x1xf32>
    %168 = vector.extract_strided_slice %146 {offsets = [3, 0], sizes = [1, 384], strides = [1, 1]} : vector<4x384xf32> to vector<1x384xf32>
    %169 = vector.broadcast %167 : vector<8x1xf32> to vector<8x384xf32>
    %170 = vector.broadcast %168 : vector<1x384xf32> to vector<8x384xf32>
    %171 = arith.mulf %169, %170 : vector<8x384xf32>
    %172 = arith.addf %166, %171 : vector<8x384xf32>
    %173 = vector.extract_strided_slice %4 {offsets = [0, 0, 48], sizes = [1, 4, 384], strides = [1, 1, 1]} : vector<1x4x512xf32> to vector<1x4x384xf32>
    %174 = vector.shape_cast %173 : vector<1x4x384xf32> to vector<4x384xf32>
    %c0_30 = arith.constant 0 : index
    %c2_31 = arith.constant 2 : index
    %c0_32 = arith.constant 0 : index
    %c0_33 = arith.constant 0 : index
    %c0_34 = arith.constant 0 : index
    %175 = vector.load %arg3[%c0_30, %c2_31, %c0_32, %c0_33, %c0_34] : memref<3x3x3x8x4xf32, #tpu.memory_space<vmem>>, vector<1x1x1x8x4xf32>
    %176 = vector.shape_cast %175 : vector<1x1x1x8x4xf32> to vector<8x4xf32>
    %177 = vector.extract_strided_slice %176 {offsets = [0, 0], sizes = [8, 1], strides = [1, 1]} : vector<8x4xf32> to vector<8x1xf32>
    %178 = vector.extract_strided_slice %174 {offsets = [0, 0], sizes = [1, 384], strides = [1, 1]} : vector<4x384xf32> to vector<1x384xf32>
    %179 = vector.broadcast %177 : vector<8x1xf32> to vector<8x384xf32>
    %180 = vector.broadcast %178 : vector<1x384xf32> to vector<8x384xf32>
    %181 = arith.mulf %179, %180 : vector<8x384xf32>
    %182 = arith.addf %172, %181 : vector<8x384xf32>
    %183 = vector.extract_strided_slice %176 {offsets = [0, 1], sizes = [8, 1], strides = [1, 1]} : vector<8x4xf32> to vector<8x1xf32>
    %184 = vector.extract_strided_slice %174 {offsets = [1, 0], sizes = [1, 384], strides = [1, 1]} : vector<4x384xf32> to vector<1x384xf32>
    %185 = vector.broadcast %183 : vector<8x1xf32> to vector<8x384xf32>
    %186 = vector.broadcast %184 : vector<1x384xf32> to vector<8x384xf32>
    %187 = arith.mulf %185, %186 : vector<8x384xf32>
    %188 = arith.addf %182, %187 : vector<8x384xf32>
    %189 = vector.extract_strided_slice %176 {offsets = [0, 2], sizes = [8, 1], strides = [1, 1]} : vector<8x4xf32> to vector<8x1xf32>
    %190 = vector.extract_strided_slice %174 {offsets = [2, 0], sizes = [1, 384], strides = [1, 1]} : vector<4x384xf32> to vector<1x384xf32>
    %191 = vector.broadcast %189 : vector<8x1xf32> to vector<8x384xf32>
    %192 = vector.broadcast %190 : vector<1x384xf32> to vector<8x384xf32>
    %193 = arith.mulf %191, %192 : vector<8x384xf32>
    %194 = arith.addf %188, %193 : vector<8x384xf32>
    %195 = vector.extract_strided_slice %176 {offsets = [0, 3], sizes = [8, 1], strides = [1, 1]} : vector<8x4xf32> to vector<8x1xf32>
    %196 = vector.extract_strided_slice %174 {offsets = [3, 0], sizes = [1, 384], strides = [1, 1]} : vector<4x384xf32> to vector<1x384xf32>
    %197 = vector.broadcast %195 : vector<8x1xf32> to vector<8x384xf32>
    %198 = vector.broadcast %196 : vector<1x384xf32> to vector<8x384xf32>
    %199 = arith.mulf %197, %198 : vector<8x384xf32>
    %200 = arith.addf %194, %199 : vector<8x384xf32>
    %201 = vector.extract_strided_slice %4 {offsets = [0, 0, 49], sizes = [1, 4, 384], strides = [1, 1, 1]} : vector<1x4x512xf32> to vector<1x4x384xf32>
    %202 = vector.shape_cast %201 : vector<1x4x384xf32> to vector<4x384xf32>
    %c0_35 = arith.constant 0 : index
    %c2_36 = arith.constant 2 : index
    %c1_37 = arith.constant 1 : index
    %c0_38 = arith.constant 0 : index
    %c0_39 = arith.constant 0 : index
    %203 = vector.load %arg3[%c0_35, %c2_36, %c1_37, %c0_38, %c0_39] : memref<3x3x3x8x4xf32, #tpu.memory_space<vmem>>, vector<1x1x1x8x4xf32>
    %204 = vector.shape_cast %203 : vector<1x1x1x8x4xf32> to vector<8x4xf32>
    %205 = vector.extract_strided_slice %204 {offsets = [0, 0], sizes = [8, 1], strides = [1, 1]} : vector<8x4xf32> to vector<8x1xf32>
    %206 = vector.extract_strided_slice %202 {offsets = [0, 0], sizes = [1, 384], strides = [1, 1]} : vector<4x384xf32> to vector<1x384xf32>
    %207 = vector.broadcast %205 : vector<8x1xf32> to vector<8x384xf32>
    %208 = vector.broadcast %206 : vector<1x384xf32> to vector<8x384xf32>
    %209 = arith.mulf %207, %208 : vector<8x384xf32>
    %210 = arith.addf %200, %209 : vector<8x384xf32>
    %211 = vector.extract_strided_slice %204 {offsets = [0, 1], sizes = [8, 1], strides = [1, 1]} : vector<8x4xf32> to vector<8x1xf32>
    %212 = vector.extract_strided_slice %202 {offsets = [1, 0], sizes = [1, 384], strides = [1, 1]} : vector<4x384xf32> to vector<1x384xf32>
    %213 = vector.broadcast %211 : vector<8x1xf32> to vector<8x384xf32>
    %214 = vector.broadcast %212 : vector<1x384xf32> to vector<8x384xf32>
    %215 = arith.mulf %213, %214 : vector<8x384xf32>
    %216 = arith.addf %210, %215 : vector<8x384xf32>
    %217 = vector.extract_strided_slice %204 {offsets = [0, 2], sizes = [8, 1], strides = [1, 1]} : vector<8x4xf32> to vector<8x1xf32>
    %218 = vector.extract_strided_slice %202 {offsets = [2, 0], sizes = [1, 384], strides = [1, 1]} : vector<4x384xf32> to vector<1x384xf32>
    %219 = vector.broadcast %217 : vector<8x1xf32> to vector<8x384xf32>
    %220 = vector.broadcast %218 : vector<1x384xf32> to vector<8x384xf32>
    %221 = arith.mulf %219, %220 : vector<8x384xf32>
    %222 = arith.addf %216, %221 : vector<8x384xf32>
    %223 = vector.extract_strided_slice %204 {offsets = [0, 3], sizes = [8, 1], strides = [1, 1]} : vector<8x4xf32> to vector<8x1xf32>
    %224 = vector.extract_strided_slice %202 {offsets = [3, 0], sizes = [1, 384], strides = [1, 1]} : vector<4x384xf32> to vector<1x384xf32>
    %225 = vector.broadcast %223 : vector<8x1xf32> to vector<8x384xf32>
    %226 = vector.broadcast %224 : vector<1x384xf32> to vector<8x384xf32>
    %227 = arith.mulf %225, %226 : vector<8x384xf32>
    %228 = arith.addf %222, %227 : vector<8x384xf32>
    %229 = vector.extract_strided_slice %4 {offsets = [0, 0, 50], sizes = [1, 4, 384], strides = [1, 1, 1]} : vector<1x4x512xf32> to vector<1x4x384xf32>
    %230 = vector.shape_cast %229 : vector<1x4x384xf32> to vector<4x384xf32>
    %c0_40 = arith.constant 0 : index
    %c2_41 = arith.constant 2 : index
    %c2_42 = arith.constant 2 : index
    %c0_43 = arith.constant 0 : index
    %c0_44 = arith.constant 0 : index
    %231 = vector.load %arg3[%c0_40, %c2_41, %c2_42, %c0_43, %c0_44] : memref<3x3x3x8x4xf32, #tpu.memory_space<vmem>>, vector<1x1x1x8x4xf32>
    %232 = vector.shape_cast %231 : vector<1x1x1x8x4xf32> to vector<8x4xf32>
    %233 = vector.extract_strided_slice %232 {offsets = [0, 0], sizes = [8, 1], strides = [1, 1]} : vector<8x4xf32> to vector<8x1xf32>
    %234 = vector.extract_strided_slice %230 {offsets = [0, 0], sizes = [1, 384], strides = [1, 1]} : vector<4x384xf32> to vector<1x384xf32>
    %235 = vector.broadcast %233 : vector<8x1xf32> to vector<8x384xf32>
    %236 = vector.broadcast %234 : vector<1x384xf32> to vector<8x384xf32>
    %237 = arith.mulf %235, %236 : vector<8x384xf32>
    %238 = arith.addf %228, %237 : vector<8x384xf32>
    %239 = vector.extract_strided_slice %232 {offsets = [0, 1], sizes = [8, 1], strides = [1, 1]} : vector<8x4xf32> to vector<8x1xf32>
    %240 = vector.extract_strided_slice %230 {offsets = [1, 0], sizes = [1, 384], strides = [1, 1]} : vector<4x384xf32> to vector<1x384xf32>
    %241 = vector.broadcast %239 : vector<8x1xf32> to vector<8x384xf32>
    %242 = vector.broadcast %240 : vector<1x384xf32> to vector<8x384xf32>
    %243 = arith.mulf %241, %242 : vector<8x384xf32>
    %244 = arith.addf %238, %243 : vector<8x384xf32>
    %245 = vector.extract_strided_slice %232 {offsets = [0, 2], sizes = [8, 1], strides = [1, 1]} : vector<8x4xf32> to vector<8x1xf32>
    %246 = vector.extract_strided_slice %230 {offsets = [2, 0], sizes = [1, 384], strides = [1, 1]} : vector<4x384xf32> to vector<1x384xf32>
    %247 = vector.broadcast %245 : vector<8x1xf32> to vector<8x384xf32>
    %248 = vector.broadcast %246 : vector<1x384xf32> to vector<8x384xf32>
    %249 = arith.mulf %247, %248 : vector<8x384xf32>
    %250 = arith.addf %244, %249 : vector<8x384xf32>
    %251 = vector.extract_strided_slice %232 {offsets = [0, 3], sizes = [8, 1], strides = [1, 1]} : vector<8x4xf32> to vector<8x1xf32>
    %252 = vector.extract_strided_slice %230 {offsets = [3, 0], sizes = [1, 384], strides = [1, 1]} : vector<4x384xf32> to vector<1x384xf32>
    %253 = vector.broadcast %251 : vector<8x1xf32> to vector<8x384xf32>
    %254 = vector.broadcast %252 : vector<1x384xf32> to vector<8x384xf32>
    %255 = arith.mulf %253, %254 : vector<8x384xf32>
    %256 = arith.addf %250, %255 : vector<8x384xf32>
    %c1_i32 = arith.constant 1 : i32
    %257 = arith.addi %arg1, %c1_i32 : i32
    %c0_45 = arith.constant 0 : index
    %258 = arith.index_cast %257 : i32 to index
    %c0_46 = arith.constant 0 : index
    %c0_47 = arith.constant 0 : index
    %259 = vector.load %arg2[%c0_45, %258, %c0_46, %c0_47] : memref<1x6x4x512xf32, #tpu.memory_space<vmem>>, vector<1x1x4x512xf32>
    %260 = vector.shape_cast %259 : vector<1x1x4x512xf32> to vector<1x4x512xf32>
    %261 = vector.extract_strided_slice %260 {offsets = [0, 0, 0], sizes = [1, 4, 384], strides = [1, 1, 1]} : vector<1x4x512xf32> to vector<1x4x384xf32>
    %262 = vector.shape_cast %261 : vector<1x4x384xf32> to vector<4x384xf32>
    %c1_48 = arith.constant 1 : index
    %c0_49 = arith.constant 0 : index
    %c0_50 = arith.constant 0 : index
    %c0_51 = arith.constant 0 : index
    %c0_52 = arith.constant 0 : index
    %263 = vector.load %arg3[%c1_48, %c0_49, %c0_50, %c0_51, %c0_52] : memref<3x3x3x8x4xf32, #tpu.memory_space<vmem>>, vector<1x1x1x8x4xf32>
    %264 = vector.shape_cast %263 : vector<1x1x1x8x4xf32> to vector<8x4xf32>
    %265 = vector.extract_strided_slice %264 {offsets = [0, 0], sizes = [8, 1], strides = [1, 1]} : vector<8x4xf32> to vector<8x1xf32>
    %266 = vector.extract_strided_slice %262 {offsets = [0, 0], sizes = [1, 384], strides = [1, 1]} : vector<4x384xf32> to vector<1x384xf32>
    %267 = vector.broadcast %265 : vector<8x1xf32> to vector<8x384xf32>
    %268 = vector.broadcast %266 : vector<1x384xf32> to vector<8x384xf32>
    %269 = arith.mulf %267, %268 : vector<8x384xf32>
    %270 = arith.addf %256, %269 : vector<8x384xf32>
    %271 = vector.extract_strided_slice %264 {offsets = [0, 1], sizes = [8, 1], strides = [1, 1]} : vector<8x4xf32> to vector<8x1xf32>
    %272 = vector.extract_strided_slice %262 {offsets = [1, 0], sizes = [1, 384], strides = [1, 1]} : vector<4x384xf32> to vector<1x384xf32>
    %273 = vector.broadcast %271 : vector<8x1xf32> to vector<8x384xf32>
    %274 = vector.broadcast %272 : vector<1x384xf32> to vector<8x384xf32>
    %275 = arith.mulf %273, %274 : vector<8x384xf32>
    %276 = arith.addf %270, %275 : vector<8x384xf32>
    %277 = vector.extract_strided_slice %264 {offsets = [0, 2], sizes = [8, 1], strides = [1, 1]} : vector<8x4xf32> to vector<8x1xf32>
    %278 = vector.extract_strided_slice %262 {offsets = [2, 0], sizes = [1, 384], strides = [1, 1]} : vector<4x384xf32> to vector<1x384xf32>
    %279 = vector.broadcast %277 : vector<8x1xf32> to vector<8x384xf32>
    %280 = vector.broadcast %278 : vector<1x384xf32> to vector<8x384xf32>
    %281 = arith.mulf %279, %280 : vector<8x384xf32>
    %282 = arith.addf %276, %281 : vector<8x384xf32>
    %283 = vector.extract_strided_slice %264 {offsets = [0, 3], sizes = [8, 1], strides = [1, 1]} : vector<8x4xf32> to vector<8x1xf32>
    %284 = vector.extract_strided_slice %262 {offsets = [3, 0], sizes = [1, 384], strides = [1, 1]} : vector<4x384xf32> to vector<1x384xf32>
    %285 = vector.broadcast %283 : vector<8x1xf32> to vector<8x384xf32>
    %286 = vector.broadcast %284 : vector<1x384xf32> to vector<8x384xf32>
    %287 = arith.mulf %285, %286 : vector<8x384xf32>
    %288 = arith.addf %282, %287 : vector<8x384xf32>
    %289 = vector.extract_strided_slice %260 {offsets = [0, 0, 1], sizes = [1, 4, 384], strides = [1, 1, 1]} : vector<1x4x512xf32> to vector<1x4x384xf32>
    %290 = vector.shape_cast %289 : vector<1x4x384xf32> to vector<4x384xf32>
    %c1_53 = arith.constant 1 : index
    %c0_54 = arith.constant 0 : index
    %c1_55 = arith.constant 1 : index
    %c0_56 = arith.constant 0 : index
    %c0_57 = arith.constant 0 : index
    %291 = vector.load %arg3[%c1_53, %c0_54, %c1_55, %c0_56, %c0_57] : memref<3x3x3x8x4xf32, #tpu.memory_space<vmem>>, vector<1x1x1x8x4xf32>
    %292 = vector.shape_cast %291 : vector<1x1x1x8x4xf32> to vector<8x4xf32>
    %293 = vector.extract_strided_slice %292 {offsets = [0, 0], sizes = [8, 1], strides = [1, 1]} : vector<8x4xf32> to vector<8x1xf32>
    %294 = vector.extract_strided_slice %290 {offsets = [0, 0], sizes = [1, 384], strides = [1, 1]} : vector<4x384xf32> to vector<1x384xf32>
    %295 = vector.broadcast %293 : vector<8x1xf32> to vector<8x384xf32>
    %296 = vector.broadcast %294 : vector<1x384xf32> to vector<8x384xf32>
    %297 = arith.mulf %295, %296 : vector<8x384xf32>
    %298 = arith.addf %288, %297 : vector<8x384xf32>
    %299 = vector.extract_strided_slice %292 {offsets = [0, 1], sizes = [8, 1], strides = [1, 1]} : vector<8x4xf32> to vector<8x1xf32>
    %300 = vector.extract_strided_slice %290 {offsets = [1, 0], sizes = [1, 384], strides = [1, 1]} : vector<4x384xf32> to vector<1x384xf32>
    %301 = vector.broadcast %299 : vector<8x1xf32> to vector<8x384xf32>
    %302 = vector.broadcast %300 : vector<1x384xf32> to vector<8x384xf32>
    %303 = arith.mulf %301, %302 : vector<8x384xf32>
    %304 = arith.addf %298, %303 : vector<8x384xf32>
    %305 = vector.extract_strided_slice %292 {offsets = [0, 2], sizes = [8, 1], strides = [1, 1]} : vector<8x4xf32> to vector<8x1xf32>
    %306 = vector.extract_strided_slice %290 {offsets = [2, 0], sizes = [1, 384], strides = [1, 1]} : vector<4x384xf32> to vector<1x384xf32>
    %307 = vector.broadcast %305 : vector<8x1xf32> to vector<8x384xf32>
    %308 = vector.broadcast %306 : vector<1x384xf32> to vector<8x384xf32>
    %309 = arith.mulf %307, %308 : vector<8x384xf32>
    %310 = arith.addf %304, %309 : vector<8x384xf32>
    %311 = vector.extract_strided_slice %292 {offsets = [0, 3], sizes = [8, 1], strides = [1, 1]} : vector<8x4xf32> to vector<8x1xf32>
    %312 = vector.extract_strided_slice %290 {offsets = [3, 0], sizes = [1, 384], strides = [1, 1]} : vector<4x384xf32> to vector<1x384xf32>
    %313 = vector.broadcast %311 : vector<8x1xf32> to vector<8x384xf32>
    %314 = vector.broadcast %312 : vector<1x384xf32> to vector<8x384xf32>
    %315 = arith.mulf %313, %314 : vector<8x384xf32>
    %316 = arith.addf %310, %315 : vector<8x384xf32>
    %317 = vector.extract_strided_slice %260 {offsets = [0, 0, 2], sizes = [1, 4, 384], strides = [1, 1, 1]} : vector<1x4x512xf32> to vector<1x4x384xf32>
    %318 = vector.shape_cast %317 : vector<1x4x384xf32> to vector<4x384xf32>
    %c1_58 = arith.constant 1 : index
    %c0_59 = arith.constant 0 : index
    %c2_60 = arith.constant 2 : index
    %c0_61 = arith.constant 0 : index
    %c0_62 = arith.constant 0 : index
    %319 = vector.load %arg3[%c1_58, %c0_59, %c2_60, %c0_61, %c0_62] : memref<3x3x3x8x4xf32, #tpu.memory_space<vmem>>, vector<1x1x1x8x4xf32>
    %320 = vector.shape_cast %319 : vector<1x1x1x8x4xf32> to vector<8x4xf32>
    %321 = vector.extract_strided_slice %320 {offsets = [0, 0], sizes = [8, 1], strides = [1, 1]} : vector<8x4xf32> to vector<8x1xf32>
    %322 = vector.extract_strided_slice %318 {offsets = [0, 0], sizes = [1, 384], strides = [1, 1]} : vector<4x384xf32> to vector<1x384xf32>
    %323 = vector.broadcast %321 : vector<8x1xf32> to vector<8x384xf32>
    %324 = vector.broadcast %322 : vector<1x384xf32> to vector<8x384xf32>
    %325 = arith.mulf %323, %324 : vector<8x384xf32>
    %326 = arith.addf %316, %325 : vector<8x384xf32>
    %327 = vector.extract_strided_slice %320 {offsets = [0, 1], sizes = [8, 1], strides = [1, 1]} : vector<8x4xf32> to vector<8x1xf32>
    %328 = vector.extract_strided_slice %318 {offsets = [1, 0], sizes = [1, 384], strides = [1, 1]} : vector<4x384xf32> to vector<1x384xf32>
    %329 = vector.broadcast %327 : vector<8x1xf32> to vector<8x384xf32>
    %330 = vector.broadcast %328 : vector<1x384xf32> to vector<8x384xf32>
    %331 = arith.mulf %329, %330 : vector<8x384xf32>
    %332 = arith.addf %326, %331 : vector<8x384xf32>
    %333 = vector.extract_strided_slice %320 {offsets = [0, 2], sizes = [8, 1], strides = [1, 1]} : vector<8x4xf32> to vector<8x1xf32>
    %334 = vector.extract_strided_slice %318 {offsets = [2, 0], sizes = [1, 384], strides = [1, 1]} : vector<4x384xf32> to vector<1x384xf32>
    %335 = vector.broadcast %333 : vector<8x1xf32> to vector<8x384xf32>
    %336 = vector.broadcast %334 : vector<1x384xf32> to vector<8x384xf32>
    %337 = arith.mulf %335, %336 : vector<8x384xf32>
    %338 = arith.addf %332, %337 : vector<8x384xf32>
    %339 = vector.extract_strided_slice %320 {offsets = [0, 3], sizes = [8, 1], strides = [1, 1]} : vector<8x4xf32> to vector<8x1xf32>
    %340 = vector.extract_strided_slice %318 {offsets = [3, 0], sizes = [1, 384], strides = [1, 1]} : vector<4x384xf32> to vector<1x384xf32>
    %341 = vector.broadcast %339 : vector<8x1xf32> to vector<8x384xf32>
    %342 = vector.broadcast %340 : vector<1x384xf32> to vector<8x384xf32>
    %343 = arith.mulf %341, %342 : vector<8x384xf32>
    %344 = arith.addf %338, %343 : vector<8x384xf32>
    %345 = vector.extract_strided_slice %260 {offsets = [0, 0, 24], sizes = [1, 4, 384], strides = [1, 1, 1]} : vector<1x4x512xf32> to vector<1x4x384xf32>
    %346 = vector.shape_cast %345 : vector<1x4x384xf32> to vector<4x384xf32>
    %c1_63 = arith.constant 1 : index
    %c1_64 = arith.constant 1 : index
    %c0_65 = arith.constant 0 : index
    %c0_66 = arith.constant 0 : index
    %c0_67 = arith.constant 0 : index
    %347 = vector.load %arg3[%c1_63, %c1_64, %c0_65, %c0_66, %c0_67] : memref<3x3x3x8x4xf32, #tpu.memory_space<vmem>>, vector<1x1x1x8x4xf32>
    %348 = vector.shape_cast %347 : vector<1x1x1x8x4xf32> to vector<8x4xf32>
    %349 = vector.extract_strided_slice %348 {offsets = [0, 0], sizes = [8, 1], strides = [1, 1]} : vector<8x4xf32> to vector<8x1xf32>
    %350 = vector.extract_strided_slice %346 {offsets = [0, 0], sizes = [1, 384], strides = [1, 1]} : vector<4x384xf32> to vector<1x384xf32>
    %351 = vector.broadcast %349 : vector<8x1xf32> to vector<8x384xf32>
    %352 = vector.broadcast %350 : vector<1x384xf32> to vector<8x384xf32>
    %353 = arith.mulf %351, %352 : vector<8x384xf32>
    %354 = arith.addf %344, %353 : vector<8x384xf32>
    %355 = vector.extract_strided_slice %348 {offsets = [0, 1], sizes = [8, 1], strides = [1, 1]} : vector<8x4xf32> to vector<8x1xf32>
    %356 = vector.extract_strided_slice %346 {offsets = [1, 0], sizes = [1, 384], strides = [1, 1]} : vector<4x384xf32> to vector<1x384xf32>
    %357 = vector.broadcast %355 : vector<8x1xf32> to vector<8x384xf32>
    %358 = vector.broadcast %356 : vector<1x384xf32> to vector<8x384xf32>
    %359 = arith.mulf %357, %358 : vector<8x384xf32>
    %360 = arith.addf %354, %359 : vector<8x384xf32>
    %361 = vector.extract_strided_slice %348 {offsets = [0, 2], sizes = [8, 1], strides = [1, 1]} : vector<8x4xf32> to vector<8x1xf32>
    %362 = vector.extract_strided_slice %346 {offsets = [2, 0], sizes = [1, 384], strides = [1, 1]} : vector<4x384xf32> to vector<1x384xf32>
    %363 = vector.broadcast %361 : vector<8x1xf32> to vector<8x384xf32>
    %364 = vector.broadcast %362 : vector<1x384xf32> to vector<8x384xf32>
    %365 = arith.mulf %363, %364 : vector<8x384xf32>
    %366 = arith.addf %360, %365 : vector<8x384xf32>
    %367 = vector.extract_strided_slice %348 {offsets = [0, 3], sizes = [8, 1], strides = [1, 1]} : vector<8x4xf32> to vector<8x1xf32>
    %368 = vector.extract_strided_slice %346 {offsets = [3, 0], sizes = [1, 384], strides = [1, 1]} : vector<4x384xf32> to vector<1x384xf32>
    %369 = vector.broadcast %367 : vector<8x1xf32> to vector<8x384xf32>
    %370 = vector.broadcast %368 : vector<1x384xf32> to vector<8x384xf32>
    %371 = arith.mulf %369, %370 : vector<8x384xf32>
    %372 = arith.addf %366, %371 : vector<8x384xf32>
    %373 = vector.extract_strided_slice %260 {offsets = [0, 0, 25], sizes = [1, 4, 384], strides = [1, 1, 1]} : vector<1x4x512xf32> to vector<1x4x384xf32>
    %374 = vector.shape_cast %373 : vector<1x4x384xf32> to vector<4x384xf32>
    %c1_68 = arith.constant 1 : index
    %c1_69 = arith.constant 1 : index
    %c1_70 = arith.constant 1 : index
    %c0_71 = arith.constant 0 : index
    %c0_72 = arith.constant 0 : index
    %375 = vector.load %arg3[%c1_68, %c1_69, %c1_70, %c0_71, %c0_72] : memref<3x3x3x8x4xf32, #tpu.memory_space<vmem>>, vector<1x1x1x8x4xf32>
    %376 = vector.shape_cast %375 : vector<1x1x1x8x4xf32> to vector<8x4xf32>
    %377 = vector.extract_strided_slice %376 {offsets = [0, 0], sizes = [8, 1], strides = [1, 1]} : vector<8x4xf32> to vector<8x1xf32>
    %378 = vector.extract_strided_slice %374 {offsets = [0, 0], sizes = [1, 384], strides = [1, 1]} : vector<4x384xf32> to vector<1x384xf32>
    %379 = vector.broadcast %377 : vector<8x1xf32> to vector<8x384xf32>
    %380 = vector.broadcast %378 : vector<1x384xf32> to vector<8x384xf32>
    %381 = arith.mulf %379, %380 : vector<8x384xf32>
    %382 = arith.addf %372, %381 : vector<8x384xf32>
    %383 = vector.extract_strided_slice %376 {offsets = [0, 1], sizes = [8, 1], strides = [1, 1]} : vector<8x4xf32> to vector<8x1xf32>
    %384 = vector.extract_strided_slice %374 {offsets = [1, 0], sizes = [1, 384], strides = [1, 1]} : vector<4x384xf32> to vector<1x384xf32>
    %385 = vector.broadcast %383 : vector<8x1xf32> to vector<8x384xf32>
    %386 = vector.broadcast %384 : vector<1x384xf32> to vector<8x384xf32>
    %387 = arith.mulf %385, %386 : vector<8x384xf32>
    %388 = arith.addf %382, %387 : vector<8x384xf32>
    %389 = vector.extract_strided_slice %376 {offsets = [0, 2], sizes = [8, 1], strides = [1, 1]} : vector<8x4xf32> to vector<8x1xf32>
    %390 = vector.extract_strided_slice %374 {offsets = [2, 0], sizes = [1, 384], strides = [1, 1]} : vector<4x384xf32> to vector<1x384xf32>
    %391 = vector.broadcast %389 : vector<8x1xf32> to vector<8x384xf32>
    %392 = vector.broadcast %390 : vector<1x384xf32> to vector<8x384xf32>
    %393 = arith.mulf %391, %392 : vector<8x384xf32>
    %394 = arith.addf %388, %393 : vector<8x384xf32>
    %395 = vector.extract_strided_slice %376 {offsets = [0, 3], sizes = [8, 1], strides = [1, 1]} : vector<8x4xf32> to vector<8x1xf32>
    %396 = vector.extract_strided_slice %374 {offsets = [3, 0], sizes = [1, 384], strides = [1, 1]} : vector<4x384xf32> to vector<1x384xf32>
    %397 = vector.broadcast %395 : vector<8x1xf32> to vector<8x384xf32>
    %398 = vector.broadcast %396 : vector<1x384xf32> to vector<8x384xf32>
    %399 = arith.mulf %397, %398 : vector<8x384xf32>
    %400 = arith.addf %394, %399 : vector<8x384xf32>
    %401 = vector.extract_strided_slice %260 {offsets = [0, 0, 26], sizes = [1, 4, 384], strides = [1, 1, 1]} : vector<1x4x512xf32> to vector<1x4x384xf32>
    %402 = vector.shape_cast %401 : vector<1x4x384xf32> to vector<4x384xf32>
    %c1_73 = arith.constant 1 : index
    %c1_74 = arith.constant 1 : index
    %c2_75 = arith.constant 2 : index
    %c0_76 = arith.constant 0 : index
    %c0_77 = arith.constant 0 : index
    %403 = vector.load %arg3[%c1_73, %c1_74, %c2_75, %c0_76, %c0_77] : memref<3x3x3x8x4xf32, #tpu.memory_space<vmem>>, vector<1x1x1x8x4xf32>
    %404 = vector.shape_cast %403 : vector<1x1x1x8x4xf32> to vector<8x4xf32>
    %405 = vector.extract_strided_slice %404 {offsets = [0, 0], sizes = [8, 1], strides = [1, 1]} : vector<8x4xf32> to vector<8x1xf32>
    %406 = vector.extract_strided_slice %402 {offsets = [0, 0], sizes = [1, 384], strides = [1, 1]} : vector<4x384xf32> to vector<1x384xf32>
    %407 = vector.broadcast %405 : vector<8x1xf32> to vector<8x384xf32>
    %408 = vector.broadcast %406 : vector<1x384xf32> to vector<8x384xf32>
    %409 = arith.mulf %407, %408 : vector<8x384xf32>
    %410 = arith.addf %400, %409 : vector<8x384xf32>
    %411 = vector.extract_strided_slice %404 {offsets = [0, 1], sizes = [8, 1], strides = [1, 1]} : vector<8x4xf32> to vector<8x1xf32>
    %412 = vector.extract_strided_slice %402 {offsets = [1, 0], sizes = [1, 384], strides = [1, 1]} : vector<4x384xf32> to vector<1x384xf32>
    %413 = vector.broadcast %411 : vector<8x1xf32> to vector<8x384xf32>
    %414 = vector.broadcast %412 : vector<1x384xf32> to vector<8x384xf32>
    %415 = arith.mulf %413, %414 : vector<8x384xf32>
    %416 = arith.addf %410, %415 : vector<8x384xf32>
    %417 = vector.extract_strided_slice %404 {offsets = [0, 2], sizes = [8, 1], strides = [1, 1]} : vector<8x4xf32> to vector<8x1xf32>
    %418 = vector.extract_strided_slice %402 {offsets = [2, 0], sizes = [1, 384], strides = [1, 1]} : vector<4x384xf32> to vector<1x384xf32>
    %419 = vector.broadcast %417 : vector<8x1xf32> to vector<8x384xf32>
    %420 = vector.broadcast %418 : vector<1x384xf32> to vector<8x384xf32>
    %421 = arith.mulf %419, %420 : vector<8x384xf32>
    %422 = arith.addf %416, %421 : vector<8x384xf32>
    %423 = vector.extract_strided_slice %404 {offsets = [0, 3], sizes = [8, 1], strides = [1, 1]} : vector<8x4xf32> to vector<8x1xf32>
    %424 = vector.extract_strided_slice %402 {offsets = [3, 0], sizes = [1, 384], strides = [1, 1]} : vector<4x384xf32> to vector<1x384xf32>
    %425 = vector.broadcast %423 : vector<8x1xf32> to vector<8x384xf32>
    %426 = vector.broadcast %424 : vector<1x384xf32> to vector<8x384xf32>
    %427 = arith.mulf %425, %426 : vector<8x384xf32>
    %428 = arith.addf %422, %427 : vector<8x384xf32>
    %429 = vector.extract_strided_slice %260 {offsets = [0, 0, 48], sizes = [1, 4, 384], strides = [1, 1, 1]} : vector<1x4x512xf32> to vector<1x4x384xf32>
    %430 = vector.shape_cast %429 : vector<1x4x384xf32> to vector<4x384xf32>
    %c1_78 = arith.constant 1 : index
    %c2_79 = arith.constant 2 : index
    %c0_80 = arith.constant 0 : index
    %c0_81 = arith.constant 0 : index
    %c0_82 = arith.constant 0 : index
    %431 = vector.load %arg3[%c1_78, %c2_79, %c0_80, %c0_81, %c0_82] : memref<3x3x3x8x4xf32, #tpu.memory_space<vmem>>, vector<1x1x1x8x4xf32>
    %432 = vector.shape_cast %431 : vector<1x1x1x8x4xf32> to vector<8x4xf32>
    %433 = vector.extract_strided_slice %432 {offsets = [0, 0], sizes = [8, 1], strides = [1, 1]} : vector<8x4xf32> to vector<8x1xf32>
    %434 = vector.extract_strided_slice %430 {offsets = [0, 0], sizes = [1, 384], strides = [1, 1]} : vector<4x384xf32> to vector<1x384xf32>
    %435 = vector.broadcast %433 : vector<8x1xf32> to vector<8x384xf32>
    %436 = vector.broadcast %434 : vector<1x384xf32> to vector<8x384xf32>
    %437 = arith.mulf %435, %436 : vector<8x384xf32>
    %438 = arith.addf %428, %437 : vector<8x384xf32>
    %439 = vector.extract_strided_slice %432 {offsets = [0, 1], sizes = [8, 1], strides = [1, 1]} : vector<8x4xf32> to vector<8x1xf32>
    %440 = vector.extract_strided_slice %430 {offsets = [1, 0], sizes = [1, 384], strides = [1, 1]} : vector<4x384xf32> to vector<1x384xf32>
    %441 = vector.broadcast %439 : vector<8x1xf32> to vector<8x384xf32>
    %442 = vector.broadcast %440 : vector<1x384xf32> to vector<8x384xf32>
    %443 = arith.mulf %441, %442 : vector<8x384xf32>
    %444 = arith.addf %438, %443 : vector<8x384xf32>
    %445 = vector.extract_strided_slice %432 {offsets = [0, 2], sizes = [8, 1], strides = [1, 1]} : vector<8x4xf32> to vector<8x1xf32>
    %446 = vector.extract_strided_slice %430 {offsets = [2, 0], sizes = [1, 384], strides = [1, 1]} : vector<4x384xf32> to vector<1x384xf32>
    %447 = vector.broadcast %445 : vector<8x1xf32> to vector<8x384xf32>
    %448 = vector.broadcast %446 : vector<1x384xf32> to vector<8x384xf32>
    %449 = arith.mulf %447, %448 : vector<8x384xf32>
    %450 = arith.addf %444, %449 : vector<8x384xf32>
    %451 = vector.extract_strided_slice %432 {offsets = [0, 3], sizes = [8, 1], strides = [1, 1]} : vector<8x4xf32> to vector<8x1xf32>
    %452 = vector.extract_strided_slice %430 {offsets = [3, 0], sizes = [1, 384], strides = [1, 1]} : vector<4x384xf32> to vector<1x384xf32>
    %453 = vector.broadcast %451 : vector<8x1xf32> to vector<8x384xf32>
    %454 = vector.broadcast %452 : vector<1x384xf32> to vector<8x384xf32>
    %455 = arith.mulf %453, %454 : vector<8x384xf32>
    %456 = arith.addf %450, %455 : vector<8x384xf32>
    %457 = vector.extract_strided_slice %260 {offsets = [0, 0, 49], sizes = [1, 4, 384], strides = [1, 1, 1]} : vector<1x4x512xf32> to vector<1x4x384xf32>
    %458 = vector.shape_cast %457 : vector<1x4x384xf32> to vector<4x384xf32>
    %c1_83 = arith.constant 1 : index
    %c2_84 = arith.constant 2 : index
    %c1_85 = arith.constant 1 : index
    %c0_86 = arith.constant 0 : index
    %c0_87 = arith.constant 0 : index
    %459 = vector.load %arg3[%c1_83, %c2_84, %c1_85, %c0_86, %c0_87] : memref<3x3x3x8x4xf32, #tpu.memory_space<vmem>>, vector<1x1x1x8x4xf32>
    %460 = vector.shape_cast %459 : vector<1x1x1x8x4xf32> to vector<8x4xf32>
    %461 = vector.extract_strided_slice %460 {offsets = [0, 0], sizes = [8, 1], strides = [1, 1]} : vector<8x4xf32> to vector<8x1xf32>
    %462 = vector.extract_strided_slice %458 {offsets = [0, 0], sizes = [1, 384], strides = [1, 1]} : vector<4x384xf32> to vector<1x384xf32>
    %463 = vector.broadcast %461 : vector<8x1xf32> to vector<8x384xf32>
    %464 = vector.broadcast %462 : vector<1x384xf32> to vector<8x384xf32>
    %465 = arith.mulf %463, %464 : vector<8x384xf32>
    %466 = arith.addf %456, %465 : vector<8x384xf32>
    %467 = vector.extract_strided_slice %460 {offsets = [0, 1], sizes = [8, 1], strides = [1, 1]} : vector<8x4xf32> to vector<8x1xf32>
    %468 = vector.extract_strided_slice %458 {offsets = [1, 0], sizes = [1, 384], strides = [1, 1]} : vector<4x384xf32> to vector<1x384xf32>
    %469 = vector.broadcast %467 : vector<8x1xf32> to vector<8x384xf32>
    %470 = vector.broadcast %468 : vector<1x384xf32> to vector<8x384xf32>
    %471 = arith.mulf %469, %470 : vector<8x384xf32>
    %472 = arith.addf %466, %471 : vector<8x384xf32>
    %473 = vector.extract_strided_slice %460 {offsets = [0, 2], sizes = [8, 1], strides = [1, 1]} : vector<8x4xf32> to vector<8x1xf32>
    %474 = vector.extract_strided_slice %458 {offsets = [2, 0], sizes = [1, 384], strides = [1, 1]} : vector<4x384xf32> to vector<1x384xf32>
    %475 = vector.broadcast %473 : vector<8x1xf32> to vector<8x384xf32>
    %476 = vector.broadcast %474 : vector<1x384xf32> to vector<8x384xf32>
    %477 = arith.mulf %475, %476 : vector<8x384xf32>
    %478 = arith.addf %472, %477 : vector<8x384xf32>
    %479 = vector.extract_strided_slice %460 {offsets = [0, 3], sizes = [8, 1], strides = [1, 1]} : vector<8x4xf32> to vector<8x1xf32>
    %480 = vector.extract_strided_slice %458 {offsets = [3, 0], sizes = [1, 384], strides = [1, 1]} : vector<4x384xf32> to vector<1x384xf32>
    %481 = vector.broadcast %479 : vector<8x1xf32> to vector<8x384xf32>
    %482 = vector.broadcast %480 : vector<1x384xf32> to vector<8x384xf32>
    %483 = arith.mulf %481, %482 : vector<8x384xf32>
    %484 = arith.addf %478, %483 : vector<8x384xf32>
    %485 = vector.extract_strided_slice %260 {offsets = [0, 0, 50], sizes = [1, 4, 384], strides = [1, 1, 1]} : vector<1x4x512xf32> to vector<1x4x384xf32>
    %486 = vector.shape_cast %485 : vector<1x4x384xf32> to vector<4x384xf32>
    %c1_88 = arith.constant 1 : index
    %c2_89 = arith.constant 2 : index
    %c2_90 = arith.constant 2 : index
    %c0_91 = arith.constant 0 : index
    %c0_92 = arith.constant 0 : index
    %487 = vector.load %arg3[%c1_88, %c2_89, %c2_90, %c0_91, %c0_92] : memref<3x3x3x8x4xf32, #tpu.memory_space<vmem>>, vector<1x1x1x8x4xf32>
    %488 = vector.shape_cast %487 : vector<1x1x1x8x4xf32> to vector<8x4xf32>
    %489 = vector.extract_strided_slice %488 {offsets = [0, 0], sizes = [8, 1], strides = [1, 1]} : vector<8x4xf32> to vector<8x1xf32>
    %490 = vector.extract_strided_slice %486 {offsets = [0, 0], sizes = [1, 384], strides = [1, 1]} : vector<4x384xf32> to vector<1x384xf32>
    %491 = vector.broadcast %489 : vector<8x1xf32> to vector<8x384xf32>
    %492 = vector.broadcast %490 : vector<1x384xf32> to vector<8x384xf32>
    %493 = arith.mulf %491, %492 : vector<8x384xf32>
    %494 = arith.addf %484, %493 : vector<8x384xf32>
    %495 = vector.extract_strided_slice %488 {offsets = [0, 1], sizes = [8, 1], strides = [1, 1]} : vector<8x4xf32> to vector<8x1xf32>
    %496 = vector.extract_strided_slice %486 {offsets = [1, 0], sizes = [1, 384], strides = [1, 1]} : vector<4x384xf32> to vector<1x384xf32>
    %497 = vector.broadcast %495 : vector<8x1xf32> to vector<8x384xf32>
    %498 = vector.broadcast %496 : vector<1x384xf32> to vector<8x384xf32>
    %499 = arith.mulf %497, %498 : vector<8x384xf32>
    %500 = arith.addf %494, %499 : vector<8x384xf32>
    %501 = vector.extract_strided_slice %488 {offsets = [0, 2], sizes = [8, 1], strides = [1, 1]} : vector<8x4xf32> to vector<8x1xf32>
    %502 = vector.extract_strided_slice %486 {offsets = [2, 0], sizes = [1, 384], strides = [1, 1]} : vector<4x384xf32> to vector<1x384xf32>
    %503 = vector.broadcast %501 : vector<8x1xf32> to vector<8x384xf32>
    %504 = vector.broadcast %502 : vector<1x384xf32> to vector<8x384xf32>
    %505 = arith.mulf %503, %504 : vector<8x384xf32>
    %506 = arith.addf %500, %505 : vector<8x384xf32>
    %507 = vector.extract_strided_slice %488 {offsets = [0, 3], sizes = [8, 1], strides = [1, 1]} : vector<8x4xf32> to vector<8x1xf32>
    %508 = vector.extract_strided_slice %486 {offsets = [3, 0], sizes = [1, 384], strides = [1, 1]} : vector<4x384xf32> to vector<1x384xf32>
    %509 = vector.broadcast %507 : vector<8x1xf32> to vector<8x384xf32>
    %510 = vector.broadcast %508 : vector<1x384xf32> to vector<8x384xf32>
    %511 = arith.mulf %509, %510 : vector<8x384xf32>
    %512 = arith.addf %506, %511 : vector<8x384xf32>
    %c2_i32 = arith.constant 2 : i32
    %513 = arith.addi %arg1, %c2_i32 : i32
    %c0_93 = arith.constant 0 : index
    %514 = arith.index_cast %513 : i32 to index
    %c0_94 = arith.constant 0 : index
    %c0_95 = arith.constant 0 : index
    %515 = vector.load %arg2[%c0_93, %514, %c0_94, %c0_95] : memref<1x6x4x512xf32, #tpu.memory_space<vmem>>, vector<1x1x4x512xf32>
    %516 = vector.shape_cast %515 : vector<1x1x4x512xf32> to vector<1x4x512xf32>
    %517 = vector.extract_strided_slice %516 {offsets = [0, 0, 0], sizes = [1, 4, 384], strides = [1, 1, 1]} : vector<1x4x512xf32> to vector<1x4x384xf32>
    %518 = vector.shape_cast %517 : vector<1x4x384xf32> to vector<4x384xf32>
    %c2_96 = arith.constant 2 : index
    %c0_97 = arith.constant 0 : index
    %c0_98 = arith.constant 0 : index
    %c0_99 = arith.constant 0 : index
    %c0_100 = arith.constant 0 : index
    %519 = vector.load %arg3[%c2_96, %c0_97, %c0_98, %c0_99, %c0_100] : memref<3x3x3x8x4xf32, #tpu.memory_space<vmem>>, vector<1x1x1x8x4xf32>
    %520 = vector.shape_cast %519 : vector<1x1x1x8x4xf32> to vector<8x4xf32>
    %521 = vector.extract_strided_slice %520 {offsets = [0, 0], sizes = [8, 1], strides = [1, 1]} : vector<8x4xf32> to vector<8x1xf32>
    %522 = vector.extract_strided_slice %518 {offsets = [0, 0], sizes = [1, 384], strides = [1, 1]} : vector<4x384xf32> to vector<1x384xf32>
    %523 = vector.broadcast %521 : vector<8x1xf32> to vector<8x384xf32>
    %524 = vector.broadcast %522 : vector<1x384xf32> to vector<8x384xf32>
    %525 = arith.mulf %523, %524 : vector<8x384xf32>
    %526 = arith.addf %512, %525 : vector<8x384xf32>
    %527 = vector.extract_strided_slice %520 {offsets = [0, 1], sizes = [8, 1], strides = [1, 1]} : vector<8x4xf32> to vector<8x1xf32>
    %528 = vector.extract_strided_slice %518 {offsets = [1, 0], sizes = [1, 384], strides = [1, 1]} : vector<4x384xf32> to vector<1x384xf32>
    %529 = vector.broadcast %527 : vector<8x1xf32> to vector<8x384xf32>
    %530 = vector.broadcast %528 : vector<1x384xf32> to vector<8x384xf32>
    %531 = arith.mulf %529, %530 : vector<8x384xf32>
    %532 = arith.addf %526, %531 : vector<8x384xf32>
    %533 = vector.extract_strided_slice %520 {offsets = [0, 2], sizes = [8, 1], strides = [1, 1]} : vector<8x4xf32> to vector<8x1xf32>
    %534 = vector.extract_strided_slice %518 {offsets = [2, 0], sizes = [1, 384], strides = [1, 1]} : vector<4x384xf32> to vector<1x384xf32>
    %535 = vector.broadcast %533 : vector<8x1xf32> to vector<8x384xf32>
    %536 = vector.broadcast %534 : vector<1x384xf32> to vector<8x384xf32>
    %537 = arith.mulf %535, %536 : vector<8x384xf32>
    %538 = arith.addf %532, %537 : vector<8x384xf32>
    %539 = vector.extract_strided_slice %520 {offsets = [0, 3], sizes = [8, 1], strides = [1, 1]} : vector<8x4xf32> to vector<8x1xf32>
    %540 = vector.extract_strided_slice %518 {offsets = [3, 0], sizes = [1, 384], strides = [1, 1]} : vector<4x384xf32> to vector<1x384xf32>
    %541 = vector.broadcast %539 : vector<8x1xf32> to vector<8x384xf32>
    %542 = vector.broadcast %540 : vector<1x384xf32> to vector<8x384xf32>
    %543 = arith.mulf %541, %542 : vector<8x384xf32>
    %544 = arith.addf %538, %543 : vector<8x384xf32>
    %545 = vector.extract_strided_slice %516 {offsets = [0, 0, 1], sizes = [1, 4, 384], strides = [1, 1, 1]} : vector<1x4x512xf32> to vector<1x4x384xf32>
    %546 = vector.shape_cast %545 : vector<1x4x384xf32> to vector<4x384xf32>
    %c2_101 = arith.constant 2 : index
    %c0_102 = arith.constant 0 : index
    %c1_103 = arith.constant 1 : index
    %c0_104 = arith.constant 0 : index
    %c0_105 = arith.constant 0 : index
    %547 = vector.load %arg3[%c2_101, %c0_102, %c1_103, %c0_104, %c0_105] : memref<3x3x3x8x4xf32, #tpu.memory_space<vmem>>, vector<1x1x1x8x4xf32>
    %548 = vector.shape_cast %547 : vector<1x1x1x8x4xf32> to vector<8x4xf32>
    %549 = vector.extract_strided_slice %548 {offsets = [0, 0], sizes = [8, 1], strides = [1, 1]} : vector<8x4xf32> to vector<8x1xf32>
    %550 = vector.extract_strided_slice %546 {offsets = [0, 0], sizes = [1, 384], strides = [1, 1]} : vector<4x384xf32> to vector<1x384xf32>
    %551 = vector.broadcast %549 : vector<8x1xf32> to vector<8x384xf32>
    %552 = vector.broadcast %550 : vector<1x384xf32> to vector<8x384xf32>
    %553 = arith.mulf %551, %552 : vector<8x384xf32>
    %554 = arith.addf %544, %553 : vector<8x384xf32>
    %555 = vector.extract_strided_slice %548 {offsets = [0, 1], sizes = [8, 1], strides = [1, 1]} : vector<8x4xf32> to vector<8x1xf32>
    %556 = vector.extract_strided_slice %546 {offsets = [1, 0], sizes = [1, 384], strides = [1, 1]} : vector<4x384xf32> to vector<1x384xf32>
    %557 = vector.broadcast %555 : vector<8x1xf32> to vector<8x384xf32>
    %558 = vector.broadcast %556 : vector<1x384xf32> to vector<8x384xf32>
    %559 = arith.mulf %557, %558 : vector<8x384xf32>
    %560 = arith.addf %554, %559 : vector<8x384xf32>
    %561 = vector.extract_strided_slice %548 {offsets = [0, 2], sizes = [8, 1], strides = [1, 1]} : vector<8x4xf32> to vector<8x1xf32>
    %562 = vector.extract_strided_slice %546 {offsets = [2, 0], sizes = [1, 384], strides = [1, 1]} : vector<4x384xf32> to vector<1x384xf32>
    %563 = vector.broadcast %561 : vector<8x1xf32> to vector<8x384xf32>
    %564 = vector.broadcast %562 : vector<1x384xf32> to vector<8x384xf32>
    %565 = arith.mulf %563, %564 : vector<8x384xf32>
    %566 = arith.addf %560, %565 : vector<8x384xf32>
    %567 = vector.extract_strided_slice %548 {offsets = [0, 3], sizes = [8, 1], strides = [1, 1]} : vector<8x4xf32> to vector<8x1xf32>
    %568 = vector.extract_strided_slice %546 {offsets = [3, 0], sizes = [1, 384], strides = [1, 1]} : vector<4x384xf32> to vector<1x384xf32>
    %569 = vector.broadcast %567 : vector<8x1xf32> to vector<8x384xf32>
    %570 = vector.broadcast %568 : vector<1x384xf32> to vector<8x384xf32>
    %571 = arith.mulf %569, %570 : vector<8x384xf32>
    %572 = arith.addf %566, %571 : vector<8x384xf32>
    %573 = vector.extract_strided_slice %516 {offsets = [0, 0, 2], sizes = [1, 4, 384], strides = [1, 1, 1]} : vector<1x4x512xf32> to vector<1x4x384xf32>
    %574 = vector.shape_cast %573 : vector<1x4x384xf32> to vector<4x384xf32>
    %c2_106 = arith.constant 2 : index
    %c0_107 = arith.constant 0 : index
    %c2_108 = arith.constant 2 : index
    %c0_109 = arith.constant 0 : index
    %c0_110 = arith.constant 0 : index
    %575 = vector.load %arg3[%c2_106, %c0_107, %c2_108, %c0_109, %c0_110] : memref<3x3x3x8x4xf32, #tpu.memory_space<vmem>>, vector<1x1x1x8x4xf32>
    %576 = vector.shape_cast %575 : vector<1x1x1x8x4xf32> to vector<8x4xf32>
    %577 = vector.extract_strided_slice %576 {offsets = [0, 0], sizes = [8, 1], strides = [1, 1]} : vector<8x4xf32> to vector<8x1xf32>
    %578 = vector.extract_strided_slice %574 {offsets = [0, 0], sizes = [1, 384], strides = [1, 1]} : vector<4x384xf32> to vector<1x384xf32>
    %579 = vector.broadcast %577 : vector<8x1xf32> to vector<8x384xf32>
    %580 = vector.broadcast %578 : vector<1x384xf32> to vector<8x384xf32>
    %581 = arith.mulf %579, %580 : vector<8x384xf32>
    %582 = arith.addf %572, %581 : vector<8x384xf32>
    %583 = vector.extract_strided_slice %576 {offsets = [0, 1], sizes = [8, 1], strides = [1, 1]} : vector<8x4xf32> to vector<8x1xf32>
    %584 = vector.extract_strided_slice %574 {offsets = [1, 0], sizes = [1, 384], strides = [1, 1]} : vector<4x384xf32> to vector<1x384xf32>
    %585 = vector.broadcast %583 : vector<8x1xf32> to vector<8x384xf32>
    %586 = vector.broadcast %584 : vector<1x384xf32> to vector<8x384xf32>
    %587 = arith.mulf %585, %586 : vector<8x384xf32>
    %588 = arith.addf %582, %587 : vector<8x384xf32>
    %589 = vector.extract_strided_slice %576 {offsets = [0, 2], sizes = [8, 1], strides = [1, 1]} : vector<8x4xf32> to vector<8x1xf32>
    %590 = vector.extract_strided_slice %574 {offsets = [2, 0], sizes = [1, 384], strides = [1, 1]} : vector<4x384xf32> to vector<1x384xf32>
    %591 = vector.broadcast %589 : vector<8x1xf32> to vector<8x384xf32>
    %592 = vector.broadcast %590 : vector<1x384xf32> to vector<8x384xf32>
    %593 = arith.mulf %591, %592 : vector<8x384xf32>
    %594 = arith.addf %588, %593 : vector<8x384xf32>
    %595 = vector.extract_strided_slice %576 {offsets = [0, 3], sizes = [8, 1], strides = [1, 1]} : vector<8x4xf32> to vector<8x1xf32>
    %596 = vector.extract_strided_slice %574 {offsets = [3, 0], sizes = [1, 384], strides = [1, 1]} : vector<4x384xf32> to vector<1x384xf32>
    %597 = vector.broadcast %595 : vector<8x1xf32> to vector<8x384xf32>
    %598 = vector.broadcast %596 : vector<1x384xf32> to vector<8x384xf32>
    %599 = arith.mulf %597, %598 : vector<8x384xf32>
    %600 = arith.addf %594, %599 : vector<8x384xf32>
    %601 = vector.extract_strided_slice %516 {offsets = [0, 0, 24], sizes = [1, 4, 384], strides = [1, 1, 1]} : vector<1x4x512xf32> to vector<1x4x384xf32>
    %602 = vector.shape_cast %601 : vector<1x4x384xf32> to vector<4x384xf32>
    %c2_111 = arith.constant 2 : index
    %c1_112 = arith.constant 1 : index
    %c0_113 = arith.constant 0 : index
    %c0_114 = arith.constant 0 : index
    %c0_115 = arith.constant 0 : index
    %603 = vector.load %arg3[%c2_111, %c1_112, %c0_113, %c0_114, %c0_115] : memref<3x3x3x8x4xf32, #tpu.memory_space<vmem>>, vector<1x1x1x8x4xf32>
    %604 = vector.shape_cast %603 : vector<1x1x1x8x4xf32> to vector<8x4xf32>
    %605 = vector.extract_strided_slice %604 {offsets = [0, 0], sizes = [8, 1], strides = [1, 1]} : vector<8x4xf32> to vector<8x1xf32>
    %606 = vector.extract_strided_slice %602 {offsets = [0, 0], sizes = [1, 384], strides = [1, 1]} : vector<4x384xf32> to vector<1x384xf32>
    %607 = vector.broadcast %605 : vector<8x1xf32> to vector<8x384xf32>
    %608 = vector.broadcast %606 : vector<1x384xf32> to vector<8x384xf32>
    %609 = arith.mulf %607, %608 : vector<8x384xf32>
    %610 = arith.addf %600, %609 : vector<8x384xf32>
    %611 = vector.extract_strided_slice %604 {offsets = [0, 1], sizes = [8, 1], strides = [1, 1]} : vector<8x4xf32> to vector<8x1xf32>
    %612 = vector.extract_strided_slice %602 {offsets = [1, 0], sizes = [1, 384], strides = [1, 1]} : vector<4x384xf32> to vector<1x384xf32>
    %613 = vector.broadcast %611 : vector<8x1xf32> to vector<8x384xf32>
    %614 = vector.broadcast %612 : vector<1x384xf32> to vector<8x384xf32>
    %615 = arith.mulf %613, %614 : vector<8x384xf32>
    %616 = arith.addf %610, %615 : vector<8x384xf32>
    %617 = vector.extract_strided_slice %604 {offsets = [0, 2], sizes = [8, 1], strides = [1, 1]} : vector<8x4xf32> to vector<8x1xf32>
    %618 = vector.extract_strided_slice %602 {offsets = [2, 0], sizes = [1, 384], strides = [1, 1]} : vector<4x384xf32> to vector<1x384xf32>
    %619 = vector.broadcast %617 : vector<8x1xf32> to vector<8x384xf32>
    %620 = vector.broadcast %618 : vector<1x384xf32> to vector<8x384xf32>
    %621 = arith.mulf %619, %620 : vector<8x384xf32>
    %622 = arith.addf %616, %621 : vector<8x384xf32>
    %623 = vector.extract_strided_slice %604 {offsets = [0, 3], sizes = [8, 1], strides = [1, 1]} : vector<8x4xf32> to vector<8x1xf32>
    %624 = vector.extract_strided_slice %602 {offsets = [3, 0], sizes = [1, 384], strides = [1, 1]} : vector<4x384xf32> to vector<1x384xf32>
    %625 = vector.broadcast %623 : vector<8x1xf32> to vector<8x384xf32>
    %626 = vector.broadcast %624 : vector<1x384xf32> to vector<8x384xf32>
    %627 = arith.mulf %625, %626 : vector<8x384xf32>
    %628 = arith.addf %622, %627 : vector<8x384xf32>
    %629 = vector.extract_strided_slice %516 {offsets = [0, 0, 25], sizes = [1, 4, 384], strides = [1, 1, 1]} : vector<1x4x512xf32> to vector<1x4x384xf32>
    %630 = vector.shape_cast %629 : vector<1x4x384xf32> to vector<4x384xf32>
    %c2_116 = arith.constant 2 : index
    %c1_117 = arith.constant 1 : index
    %c1_118 = arith.constant 1 : index
    %c0_119 = arith.constant 0 : index
    %c0_120 = arith.constant 0 : index
    %631 = vector.load %arg3[%c2_116, %c1_117, %c1_118, %c0_119, %c0_120] : memref<3x3x3x8x4xf32, #tpu.memory_space<vmem>>, vector<1x1x1x8x4xf32>
    %632 = vector.shape_cast %631 : vector<1x1x1x8x4xf32> to vector<8x4xf32>
    %633 = vector.extract_strided_slice %632 {offsets = [0, 0], sizes = [8, 1], strides = [1, 1]} : vector<8x4xf32> to vector<8x1xf32>
    %634 = vector.extract_strided_slice %630 {offsets = [0, 0], sizes = [1, 384], strides = [1, 1]} : vector<4x384xf32> to vector<1x384xf32>
    %635 = vector.broadcast %633 : vector<8x1xf32> to vector<8x384xf32>
    %636 = vector.broadcast %634 : vector<1x384xf32> to vector<8x384xf32>
    %637 = arith.mulf %635, %636 : vector<8x384xf32>
    %638 = arith.addf %628, %637 : vector<8x384xf32>
    %639 = vector.extract_strided_slice %632 {offsets = [0, 1], sizes = [8, 1], strides = [1, 1]} : vector<8x4xf32> to vector<8x1xf32>
    %640 = vector.extract_strided_slice %630 {offsets = [1, 0], sizes = [1, 384], strides = [1, 1]} : vector<4x384xf32> to vector<1x384xf32>
    %641 = vector.broadcast %639 : vector<8x1xf32> to vector<8x384xf32>
    %642 = vector.broadcast %640 : vector<1x384xf32> to vector<8x384xf32>
    %643 = arith.mulf %641, %642 : vector<8x384xf32>
    %644 = arith.addf %638, %643 : vector<8x384xf32>
    %645 = vector.extract_strided_slice %632 {offsets = [0, 2], sizes = [8, 1], strides = [1, 1]} : vector<8x4xf32> to vector<8x1xf32>
    %646 = vector.extract_strided_slice %630 {offsets = [2, 0], sizes = [1, 384], strides = [1, 1]} : vector<4x384xf32> to vector<1x384xf32>
    %647 = vector.broadcast %645 : vector<8x1xf32> to vector<8x384xf32>
    %648 = vector.broadcast %646 : vector<1x384xf32> to vector<8x384xf32>
    %649 = arith.mulf %647, %648 : vector<8x384xf32>
    %650 = arith.addf %644, %649 : vector<8x384xf32>
    %651 = vector.extract_strided_slice %632 {offsets = [0, 3], sizes = [8, 1], strides = [1, 1]} : vector<8x4xf32> to vector<8x1xf32>
    %652 = vector.extract_strided_slice %630 {offsets = [3, 0], sizes = [1, 384], strides = [1, 1]} : vector<4x384xf32> to vector<1x384xf32>
    %653 = vector.broadcast %651 : vector<8x1xf32> to vector<8x384xf32>
    %654 = vector.broadcast %652 : vector<1x384xf32> to vector<8x384xf32>
    %655 = arith.mulf %653, %654 : vector<8x384xf32>
    %656 = arith.addf %650, %655 : vector<8x384xf32>
    %657 = vector.extract_strided_slice %516 {offsets = [0, 0, 26], sizes = [1, 4, 384], strides = [1, 1, 1]} : vector<1x4x512xf32> to vector<1x4x384xf32>
    %658 = vector.shape_cast %657 : vector<1x4x384xf32> to vector<4x384xf32>
    %c2_121 = arith.constant 2 : index
    %c1_122 = arith.constant 1 : index
    %c2_123 = arith.constant 2 : index
    %c0_124 = arith.constant 0 : index
    %c0_125 = arith.constant 0 : index
    %659 = vector.load %arg3[%c2_121, %c1_122, %c2_123, %c0_124, %c0_125] : memref<3x3x3x8x4xf32, #tpu.memory_space<vmem>>, vector<1x1x1x8x4xf32>
    %660 = vector.shape_cast %659 : vector<1x1x1x8x4xf32> to vector<8x4xf32>
    %661 = vector.extract_strided_slice %660 {offsets = [0, 0], sizes = [8, 1], strides = [1, 1]} : vector<8x4xf32> to vector<8x1xf32>
    %662 = vector.extract_strided_slice %658 {offsets = [0, 0], sizes = [1, 384], strides = [1, 1]} : vector<4x384xf32> to vector<1x384xf32>
    %663 = vector.broadcast %661 : vector<8x1xf32> to vector<8x384xf32>
    %664 = vector.broadcast %662 : vector<1x384xf32> to vector<8x384xf32>
    %665 = arith.mulf %663, %664 : vector<8x384xf32>
    %666 = arith.addf %656, %665 : vector<8x384xf32>
    %667 = vector.extract_strided_slice %660 {offsets = [0, 1], sizes = [8, 1], strides = [1, 1]} : vector<8x4xf32> to vector<8x1xf32>
    %668 = vector.extract_strided_slice %658 {offsets = [1, 0], sizes = [1, 384], strides = [1, 1]} : vector<4x384xf32> to vector<1x384xf32>
    %669 = vector.broadcast %667 : vector<8x1xf32> to vector<8x384xf32>
    %670 = vector.broadcast %668 : vector<1x384xf32> to vector<8x384xf32>
    %671 = arith.mulf %669, %670 : vector<8x384xf32>
    %672 = arith.addf %666, %671 : vector<8x384xf32>
    %673 = vector.extract_strided_slice %660 {offsets = [0, 2], sizes = [8, 1], strides = [1, 1]} : vector<8x4xf32> to vector<8x1xf32>
    %674 = vector.extract_strided_slice %658 {offsets = [2, 0], sizes = [1, 384], strides = [1, 1]} : vector<4x384xf32> to vector<1x384xf32>
    %675 = vector.broadcast %673 : vector<8x1xf32> to vector<8x384xf32>
    %676 = vector.broadcast %674 : vector<1x384xf32> to vector<8x384xf32>
    %677 = arith.mulf %675, %676 : vector<8x384xf32>
    %678 = arith.addf %672, %677 : vector<8x384xf32>
    %679 = vector.extract_strided_slice %660 {offsets = [0, 3], sizes = [8, 1], strides = [1, 1]} : vector<8x4xf32> to vector<8x1xf32>
    %680 = vector.extract_strided_slice %658 {offsets = [3, 0], sizes = [1, 384], strides = [1, 1]} : vector<4x384xf32> to vector<1x384xf32>
    %681 = vector.broadcast %679 : vector<8x1xf32> to vector<8x384xf32>
    %682 = vector.broadcast %680 : vector<1x384xf32> to vector<8x384xf32>
    %683 = arith.mulf %681, %682 : vector<8x384xf32>
    %684 = arith.addf %678, %683 : vector<8x384xf32>
    %685 = vector.extract_strided_slice %516 {offsets = [0, 0, 48], sizes = [1, 4, 384], strides = [1, 1, 1]} : vector<1x4x512xf32> to vector<1x4x384xf32>
    %686 = vector.shape_cast %685 : vector<1x4x384xf32> to vector<4x384xf32>
    %c2_126 = arith.constant 2 : index
    %c2_127 = arith.constant 2 : index
    %c0_128 = arith.constant 0 : index
    %c0_129 = arith.constant 0 : index
    %c0_130 = arith.constant 0 : index
    %687 = vector.load %arg3[%c2_126, %c2_127, %c0_128, %c0_129, %c0_130] : memref<3x3x3x8x4xf32, #tpu.memory_space<vmem>>, vector<1x1x1x8x4xf32>
    %688 = vector.shape_cast %687 : vector<1x1x1x8x4xf32> to vector<8x4xf32>
    %689 = vector.extract_strided_slice %688 {offsets = [0, 0], sizes = [8, 1], strides = [1, 1]} : vector<8x4xf32> to vector<8x1xf32>
    %690 = vector.extract_strided_slice %686 {offsets = [0, 0], sizes = [1, 384], strides = [1, 1]} : vector<4x384xf32> to vector<1x384xf32>
    %691 = vector.broadcast %689 : vector<8x1xf32> to vector<8x384xf32>
    %692 = vector.broadcast %690 : vector<1x384xf32> to vector<8x384xf32>
    %693 = arith.mulf %691, %692 : vector<8x384xf32>
    %694 = arith.addf %684, %693 : vector<8x384xf32>
    %695 = vector.extract_strided_slice %688 {offsets = [0, 1], sizes = [8, 1], strides = [1, 1]} : vector<8x4xf32> to vector<8x1xf32>
    %696 = vector.extract_strided_slice %686 {offsets = [1, 0], sizes = [1, 384], strides = [1, 1]} : vector<4x384xf32> to vector<1x384xf32>
    %697 = vector.broadcast %695 : vector<8x1xf32> to vector<8x384xf32>
    %698 = vector.broadcast %696 : vector<1x384xf32> to vector<8x384xf32>
    %699 = arith.mulf %697, %698 : vector<8x384xf32>
    %700 = arith.addf %694, %699 : vector<8x384xf32>
    %701 = vector.extract_strided_slice %688 {offsets = [0, 2], sizes = [8, 1], strides = [1, 1]} : vector<8x4xf32> to vector<8x1xf32>
    %702 = vector.extract_strided_slice %686 {offsets = [2, 0], sizes = [1, 384], strides = [1, 1]} : vector<4x384xf32> to vector<1x384xf32>
    %703 = vector.broadcast %701 : vector<8x1xf32> to vector<8x384xf32>
    %704 = vector.broadcast %702 : vector<1x384xf32> to vector<8x384xf32>
    %705 = arith.mulf %703, %704 : vector<8x384xf32>
    %706 = arith.addf %700, %705 : vector<8x384xf32>
    %707 = vector.extract_strided_slice %688 {offsets = [0, 3], sizes = [8, 1], strides = [1, 1]} : vector<8x4xf32> to vector<8x1xf32>
    %708 = vector.extract_strided_slice %686 {offsets = [3, 0], sizes = [1, 384], strides = [1, 1]} : vector<4x384xf32> to vector<1x384xf32>
    %709 = vector.broadcast %707 : vector<8x1xf32> to vector<8x384xf32>
    %710 = vector.broadcast %708 : vector<1x384xf32> to vector<8x384xf32>
    %711 = arith.mulf %709, %710 : vector<8x384xf32>
    %712 = arith.addf %706, %711 : vector<8x384xf32>
    %713 = vector.extract_strided_slice %516 {offsets = [0, 0, 49], sizes = [1, 4, 384], strides = [1, 1, 1]} : vector<1x4x512xf32> to vector<1x4x384xf32>
    %714 = vector.shape_cast %713 : vector<1x4x384xf32> to vector<4x384xf32>
    %c2_131 = arith.constant 2 : index
    %c2_132 = arith.constant 2 : index
    %c1_133 = arith.constant 1 : index
    %c0_134 = arith.constant 0 : index
    %c0_135 = arith.constant 0 : index
    %715 = vector.load %arg3[%c2_131, %c2_132, %c1_133, %c0_134, %c0_135] : memref<3x3x3x8x4xf32, #tpu.memory_space<vmem>>, vector<1x1x1x8x4xf32>
    %716 = vector.shape_cast %715 : vector<1x1x1x8x4xf32> to vector<8x4xf32>
    %717 = vector.extract_strided_slice %716 {offsets = [0, 0], sizes = [8, 1], strides = [1, 1]} : vector<8x4xf32> to vector<8x1xf32>
    %718 = vector.extract_strided_slice %714 {offsets = [0, 0], sizes = [1, 384], strides = [1, 1]} : vector<4x384xf32> to vector<1x384xf32>
    %719 = vector.broadcast %717 : vector<8x1xf32> to vector<8x384xf32>
    %720 = vector.broadcast %718 : vector<1x384xf32> to vector<8x384xf32>
    %721 = arith.mulf %719, %720 : vector<8x384xf32>
    %722 = arith.addf %712, %721 : vector<8x384xf32>
    %723 = vector.extract_strided_slice %716 {offsets = [0, 1], sizes = [8, 1], strides = [1, 1]} : vector<8x4xf32> to vector<8x1xf32>
    %724 = vector.extract_strided_slice %714 {offsets = [1, 0], sizes = [1, 384], strides = [1, 1]} : vector<4x384xf32> to vector<1x384xf32>
    %725 = vector.broadcast %723 : vector<8x1xf32> to vector<8x384xf32>
    %726 = vector.broadcast %724 : vector<1x384xf32> to vector<8x384xf32>
    %727 = arith.mulf %725, %726 : vector<8x384xf32>
    %728 = arith.addf %722, %727 : vector<8x384xf32>
    %729 = vector.extract_strided_slice %716 {offsets = [0, 2], sizes = [8, 1], strides = [1, 1]} : vector<8x4xf32> to vector<8x1xf32>
    %730 = vector.extract_strided_slice %714 {offsets = [2, 0], sizes = [1, 384], strides = [1, 1]} : vector<4x384xf32> to vector<1x384xf32>
    %731 = vector.broadcast %729 : vector<8x1xf32> to vector<8x384xf32>
    %732 = vector.broadcast %730 : vector<1x384xf32> to vector<8x384xf32>
    %733 = arith.mulf %731, %732 : vector<8x384xf32>
    %734 = arith.addf %728, %733 : vector<8x384xf32>
    %735 = vector.extract_strided_slice %716 {offsets = [0, 3], sizes = [8, 1], strides = [1, 1]} : vector<8x4xf32> to vector<8x1xf32>
    %736 = vector.extract_strided_slice %714 {offsets = [3, 0], sizes = [1, 384], strides = [1, 1]} : vector<4x384xf32> to vector<1x384xf32>
    %737 = vector.broadcast %735 : vector<8x1xf32> to vector<8x384xf32>
    %738 = vector.broadcast %736 : vector<1x384xf32> to vector<8x384xf32>
    %739 = arith.mulf %737, %738 : vector<8x384xf32>
    %740 = arith.addf %734, %739 : vector<8x384xf32>
    %741 = vector.extract_strided_slice %516 {offsets = [0, 0, 50], sizes = [1, 4, 384], strides = [1, 1, 1]} : vector<1x4x512xf32> to vector<1x4x384xf32>
    %742 = vector.shape_cast %741 : vector<1x4x384xf32> to vector<4x384xf32>
    %c2_136 = arith.constant 2 : index
    %c2_137 = arith.constant 2 : index
    %c2_138 = arith.constant 2 : index
    %c0_139 = arith.constant 0 : index
    %c0_140 = arith.constant 0 : index
    %743 = vector.load %arg3[%c2_136, %c2_137, %c2_138, %c0_139, %c0_140] : memref<3x3x3x8x4xf32, #tpu.memory_space<vmem>>, vector<1x1x1x8x4xf32>
    %744 = vector.shape_cast %743 : vector<1x1x1x8x4xf32> to vector<8x4xf32>
    %745 = vector.extract_strided_slice %744 {offsets = [0, 0], sizes = [8, 1], strides = [1, 1]} : vector<8x4xf32> to vector<8x1xf32>
    %746 = vector.extract_strided_slice %742 {offsets = [0, 0], sizes = [1, 384], strides = [1, 1]} : vector<4x384xf32> to vector<1x384xf32>
    %747 = vector.broadcast %745 : vector<8x1xf32> to vector<8x384xf32>
    %748 = vector.broadcast %746 : vector<1x384xf32> to vector<8x384xf32>
    %749 = arith.mulf %747, %748 : vector<8x384xf32>
    %750 = arith.addf %740, %749 : vector<8x384xf32>
    %751 = vector.extract_strided_slice %744 {offsets = [0, 1], sizes = [8, 1], strides = [1, 1]} : vector<8x4xf32> to vector<8x1xf32>
    %752 = vector.extract_strided_slice %742 {offsets = [1, 0], sizes = [1, 384], strides = [1, 1]} : vector<4x384xf32> to vector<1x384xf32>
    %753 = vector.broadcast %751 : vector<8x1xf32> to vector<8x384xf32>
    %754 = vector.broadcast %752 : vector<1x384xf32> to vector<8x384xf32>
    %755 = arith.mulf %753, %754 : vector<8x384xf32>
    %756 = arith.addf %750, %755 : vector<8x384xf32>
    %757 = vector.extract_strided_slice %744 {offsets = [0, 2], sizes = [8, 1], strides = [1, 1]} : vector<8x4xf32> to vector<8x1xf32>
    %758 = vector.extract_strided_slice %742 {offsets = [2, 0], sizes = [1, 384], strides = [1, 1]} : vector<4x384xf32> to vector<1x384xf32>
    %759 = vector.broadcast %757 : vector<8x1xf32> to vector<8x384xf32>
    %760 = vector.broadcast %758 : vector<1x384xf32> to vector<8x384xf32>
    %761 = arith.mulf %759, %760 : vector<8x384xf32>
    %762 = arith.addf %756, %761 : vector<8x384xf32>
    %763 = vector.extract_strided_slice %744 {offsets = [0, 3], sizes = [8, 1], strides = [1, 1]} : vector<8x4xf32> to vector<8x1xf32>
    %764 = vector.extract_strided_slice %742 {offsets = [3, 0], sizes = [1, 384], strides = [1, 1]} : vector<4x384xf32> to vector<1x384xf32>
    %765 = vector.broadcast %763 : vector<8x1xf32> to vector<8x384xf32>
    %766 = vector.broadcast %764 : vector<1x384xf32> to vector<8x384xf32>
    %767 = arith.mulf %765, %766 : vector<8x384xf32>
    %768 = arith.addf %762, %767 : vector<8x384xf32>
    %c0_141 = arith.constant 0 : index
    %c0_142 = arith.constant 0 : index
    %769 = vector.load %arg4[%c0_141, %c0_142] : memref<8x1xf32, #tpu.memory_space<vmem>>, vector<8x1xf32>
    %770 = vector.broadcast %769 : vector<8x1xf32> to vector<8x384xf32>
    %771 = arith.addf %768, %770 : vector<8x384xf32>
    %cst_143 = arith.constant 0.000000e+00 : f32
    %772 = vector.broadcast %cst_143 : f32 to vector<8x384xf32>
    %773 = arith.cmpf oge, %771, %772 : vector<8x384xf32>
    %cst_144 = arith.constant 2.000000e-01 : f32
    %774 = vector.broadcast %cst_144 : f32 to vector<8x384xf32>
    %775 = arith.mulf %774, %771 : vector<8x384xf32>
    %776 = arith.select %773, %771, %775 : vector<8x384xi1>, vector<8x384xf32>
    %c0_145 = arith.constant 0 : index
    %c0_146 = arith.constant 0 : index
    %c0_147 = arith.constant 0 : index
    %c0_148 = arith.constant 0 : index
    %777 = vector.load %arg5[%c0_145, %c0_146, %c0_147, %c0_148] : memref<1x1x8x384xf32, #tpu.memory_space<vmem>>, vector<1x1x8x384xf32>
    %778 = vector.shape_cast %777 : vector<1x1x8x384xf32> to vector<8x384xf32>
    %779 = vector.shape_cast %776 : vector<8x384xf32> to vector<1x1x8x384xf32>
    tpu.vector_store %arg5[%c0_145, %c0_146, %c0_147, %c0_148], %779 {strides = array<i32>} : memref<1x1x8x384xf32, #tpu.memory_space<vmem>>, vector<1x1x8x384xf32>,
    return
  }
  func.func @transform_0(%arg0: i32, %arg1: i32) -> (i32, i32, i32, i32) {
    %c0_i32 = arith.constant 0 : i32
    %c0_i32_0 = arith.constant 0 : i32
    %c0_i32_1 = arith.constant 0 : i32
    %c0_i32_2 = arith.constant 0 : i32
    return %arg0, %c0_i32, %c0_i32_0, %c0_i32_1 : i32, i32, i32, i32
  }
  func.func @transform_1(%arg0: i32, %arg1: i32) -> (i32, i32, i32, i32, i32) {
    %c0_i32 = arith.constant 0 : i32
    %c0_i32_0 = arith.constant 0 : i32
    %c0_i32_1 = arith.constant 0 : i32
    %c0_i32_2 = arith.constant 0 : i32
    %c0_i32_3 = arith.constant 0 : i32
    %c0_i32_4 = arith.constant 0 : i32
    return %c0_i32, %c0_i32_0, %c0_i32_1, %c0_i32_2, %c0_i32_3 : i32, i32, i32, i32, i32
  }
  func.func @transform_2(%arg0: i32, %arg1: i32) -> (i32, i32) {
    %c0_i32 = arith.constant 0 : i32
    %c0_i32_0 = arith.constant 0 : i32
    %c0_i32_1 = arith.constant 0 : i32
    return %c0_i32, %c0_i32_0 : i32, i32
  }
  func.func @transform_3(%arg0: i32, %arg1: i32) -> (i32, i32, i32, i32) {
    %c0_i32 = arith.constant 0 : i32
    %c0_i32_0 = arith.constant 0 : i32
    %c0_i32_1 = arith.constant 0 : i32
    return %arg0, %arg1, %c0_i32, %c0_i32_0 : i32, i32, i32, i32
  }
}

</mosaic_0001>

<llo_original>
// kernel: tpu_custom_call.1
$region0: #{tpu_custom_call.1}
  #allocation0 [shape = 'u32[]', space=smem, size = 0x4, offset = 0x4, fixed_abs, tag = 'smem constant byte address 0x4 - core index']
  #allocation1 [shape = 'u32[144,128]{1,0:T(1,128)}', space=vmem, size = 0x12000, scoped, tag = 'internal scratch']
  %s0 = inlined_call_operand.vmem [shape: f32[2,6,4,512], index: 0, kind: input, shape index: {}]
  %s1 = inlined_call_operand.vmem [shape: f32[3,3,3,8,4], index: 1, kind: input, shape index: {}]
  %s2 = inlined_call_operand.vmem [shape: f32[8,1], index: 2, kind: input, shape index: {}]
  %s3 = inlined_call_operand.hbm [shape: f32[2,4,8,384], index: 3, kind: output, shape index: {}]
  %s4 = sld [smem:[#allocation0]]
  $region45: #{tpu_custom_call.1} parent=0
    _
  %s6 = ssub.s32 1, %s4
  %s7 = scalar_select 0, %s6, %s4
  $region1: #{tpu_custom_call.1} parent=0
    #allocation2 [shape = 'u8[24576]{0}', space=vmem, size = 0x6000, scoped, tag = 'output window, operand 0']
    #allocation3 [shape = 's32[2]{0}', space=sflag, size = 0x8, scoped, tag = 'scoped memory for tpu_custom_call.1']
    %8 = vsyncpa [#allocation3], 0
    %s9 = scalar_lea.sflag [#allocation3], 1
    %10 = vsyncpa %s9, 0
    loop: start=0, step=1, limit=10
    $region2: #{tpu_custom_call.1} parent=1 // loop_pre_header
      _
    $region3: #{tpu_custom_call.1} parent=1 // loop_header
      %s12 = sphi 0, %s16
      %p13 = scmp.ge.s32.totalorder %s12, 10
      %s19 = sphi 0, %s31
      %s20 = sphi 0, %s27
      %s21 = sphi 0, %s19
      %s22 = sphi 0, %s20
      %s23 = sphi 0, %s21
      %s24 = sphi 0, %s22
      %s34 = sphi 0, %s36
      %s37 = sphi 0, %s34
      %s38 = sphi 0, %s37
      %s54 = sphi 0, %s38
      %s58 = sphi 0, %s58
      %s60 = sphi 0, %s58
      %s61 = sphi 0, %s60
      %s75 = sphi 0, %s61
      %s79 = sphi 0, %s79
      %s81 = sphi 0, %s79
      %s82 = sphi 0, %s81
      %s96 = sphi 0, %s82
      %s104 = sphi 0, %s106
      %s107 = sphi 0, %s104
      %s108 = sphi 0, %s107
      %s124 = sphi 0, %s108
    $region4: #{tpu_custom_call.1} parent=1 // loop_header_branch
      %15 = sbr.rel (%p13) target = $region8
    $region5: #{tpu_custom_call.1} parent=1 // loop_body
      %s17 = ssub.s32 %s12, 1
      %s18 = ssub.s32 %s12, 2
      %s25 = sadd.s32 1, %s20
      %p26 = scmp.ge.s32.totalorder %s25, 4
      %s27 = scalar_select %p26, 0, %s25
      %s28 = sadd.s32 1, %s19
      %s29 = scalar_select %p26, %s28, %s19
      %p30 = scmp.ge.s32.totalorder %s29, 2
      %s31 = scalar_select %p30, 0, %s29
      %s32 = ssub.s32 %s19, %s31
      %p33 = scmp.eq.s32.totalorder %s32, 0
      %s35 = sadd.s32 %s34, 1
      %s36 = scalar_select %p33, %s34, %s35
      %p39 = pneg %p33
      %p40 = scmp.eq.s32.totalorder %s12, 7
      %p41 = por %p39, %p40
      %p42 = scmp.ne.s32.totalorder %s34, %s37
      %p43 = scmp.eq.s32.totalorder %s12, 0
      %p44 = por %p42, %p43
      %p45 = scmp.ne.s32.totalorder %s34, %s37
      %p46 = scmp.eq.s32.totalorder %s17, 7
      %p47 = por %p45, %p46
      %p48 = scmp.ne.s32.totalorder %s37, %s38
      %p49 = scmp.eq.s32.totalorder %s17, 0
      %p50 = por %p48, %p49
      %p51 = scmp.ne.s32.totalorder %s37, %s38
      %p52 = scmp.eq.s32.totalorder %s18, 7
      %p53 = por %p51, %p52
      %p55 = scmp.ne.s32.totalorder %s38, %s54
      %p56 = scmp.eq.s32.totalorder %s18, 0
      %p57 = por %p55, %p56
      %s59 = sadd.s32 %s58, 1
      %p62 = scmp.eq.s32.totalorder %s12, 7
      %p63 = scmp.ne.s32.totalorder %s58, %s60
      %p64 = scmp.eq.s32.totalorder %s12, 0
      %p65 = por %p63, %p64
      %p66 = scmp.ne.s32.totalorder %s58, %s60
      %p67 = scmp.eq.s32.totalorder %s17, 7
      %p68 = por %p66, %p67
      %p69 = scmp.ne.s32.totalorder %s60, %s61
      %p70 = scmp.eq.s32.totalorder %s17, 0
      %p71 = por %p69, %p70
      %p72 = scmp.ne.s32.totalorder %s60, %s61
      %p73 = scmp.eq.s32.totalorder %s18, 7
      %p74 = por %p72, %p73
      %p76 = scmp.ne.s32.totalorder %s61, %s75
      %p77 = scmp.eq.s32.totalorder %s18, 0
      %p78 = por %p76, %p77
      %s80 = sadd.s32 %s79, 1
      %p83 = scmp.eq.s32.totalorder %s12, 7
      %p84 = scmp.ne.s32.totalorder %s79, %s81
      %p85 = scmp.eq.s32.totalorder %s12, 0
      %p86 = por %p84, %p85
      %p87 = scmp.ne.s32.totalorder %s79, %s81
      %p88 = scmp.eq.s32.totalorder %s17, 7
      %p89 = por %p87, %p88
      %p90 = scmp.ne.s32.totalorder %s81, %s82
      %p91 = scmp.eq.s32.totalorder %s17, 0
      %p92 = por %p90, %p91
      %p93 = scmp.ne.s32.totalorder %s81, %s82
      %p94 = scmp.eq.s32.totalorder %s18, 7
      %p95 = por %p93, %p94
      %p97 = scmp.ne.s32.totalorder %s82, %s96
      %p98 = scmp.eq.s32.totalorder %s18, 0
      %p99 = por %p97, %p98
      %s100 = ssub.s32 %s19, %s31
      %s101 = ssub.s32 %s20, %s27
      %s102 = sor.u32 %s100, %s101
      %p103 = scmp.eq.s32.totalorder %s102, 0
      %s105 = sadd.s32 %s104, 1
      %s106 = scalar_select %p103, %s104, %s105
      %p109 = pneg %p103
      %p110 = scmp.eq.s32.totalorder %s12, 7
      %p111 = por %p109, %p110
      %p112 = scmp.ne.s32.totalorder %s104, %s107
      %p113 = scmp.eq.s32.totalorder %s12, 0
      %p114 = por %p112, %p113
      %p115 = scmp.ne.s32.totalorder %s104, %s107
      %p116 = scmp.eq.s32.totalorder %s17, 7
      %p117 = por %p115, %p116
      %p118 = scmp.ne.s32.totalorder %s107, %s108
      %p119 = scmp.eq.s32.totalorder %s17, 0
      %p120 = por %p118, %p119
      %p121 = scmp.ne.s32.totalorder %s107, %s108
      %p122 = scmp.eq.s32.totalorder %s18, 7
      %p123 = por %p121, %p122
      %p125 = scmp.ne.s32.totalorder %s108, %s124
      %p126 = scmp.eq.s32.totalorder %s18, 0
      %p127 = por %p125, %p126
      %p128 = scmp.le.s32.totalorder 1, %s12
      %p129 = scmp.lt.s32.totalorder %s12, 9
      %p130 = pnand %p128, %p129
      %p131 = pneg %p130
      // Predicated region
      $region9: #{tpu_custom_call.1} parent=5 // pred_check
        _
      $region10: #{tpu_custom_call.1} parent=5 // pred_check_branch
        %133 = sbr.rel (%p130) target = $region12
      $region11: #{tpu_custom_call.1} parent=5 // pred_region
        %s134 = ssub.s32 %s12, 1
        // Predicated region
        $region13: #{tpu_custom_call.1} parent=11 // pred_check
          %p135 = pneg %p71
        $region14: #{tpu_custom_call.1} parent=11 // pred_check_branch
          %137 = sbr.rel (%p135) target = $region16
        $region15: #{tpu_custom_call.1} parent=11 // pred_region
          _
        $region16: #{tpu_custom_call.1} parent=11 // pred_fallthru
          _
        // Predicated region
        $region17: #{tpu_custom_call.1} parent=11 // pred_check
          %p138 = pneg %p92
        $region18: #{tpu_custom_call.1} parent=11 // pred_check_branch
          %140 = sbr.rel (%p138) target = $region20
        $region19: #{tpu_custom_call.1} parent=11 // pred_region
          _
        $region20: #{tpu_custom_call.1} parent=11 // pred_fallthru
          _
      $region12: #{tpu_custom_call.1} parent=5 // pred_fallthru
        _
      %p141 = scmp.lt.s32.totalorder %s12, 8
      // Predicated region
      $region21: #{tpu_custom_call.1} parent=5 // pred_check
        %p142 = pneg %p141
      $region22: #{tpu_custom_call.1} parent=5 // pred_check_branch
        %144 = sbr.rel (%p142) target = $region24
      $region23: #{tpu_custom_call.1} parent=5 // pred_region
        // Predicated region
        $region25: #{tpu_custom_call.1} parent=23 // pred_check
          %p145 = pneg %p44
        $region26: #{tpu_custom_call.1} parent=23 // pred_check_branch
          %147 = sbr.rel (%p145) target = $region28
        $region27: #{tpu_custom_call.1} parent=23 // pred_region
          %p148 = scmp.lt.s32.totalorder %s19, 1
          %s149 = scalar_select %p148, %s19, 1
          %s150 = smul.addr %s149, 24
          %s151 = smul.addr %s150, 4
          %s152 = scalar_lea.vmem %s0, %s151
        $region28: #{tpu_custom_call.1} parent=23 // pred_fallthru
          _
      $region24: #{tpu_custom_call.1} parent=5 // pred_fallthru
        _
      %p153 = scmp.le.s32.totalorder 1, %s12
      %p154 = scmp.lt.s32.totalorder %s12, 9
      %p155 = pnand %p153, %p154
      %p156 = pneg %p155
      // Predicated region
      $region29: #{tpu_custom_call.1} parent=5 // pred_check
        _
      $region30: #{tpu_custom_call.1} parent=5 // pred_check_branch
        %158 = sbr.rel (%p155) target = $region32
      $region31: #{tpu_custom_call.1} parent=5 // pred_region
        %s159 = ssub.s32 %s12, 1
        %p160 = scmp.lt.s32.totalorder %s21, 1
        %s161 = scalar_select %p160, %s21, 1
        %s162 = smul.addr %s161, 24
        %s163 = smul.addr %s162, 4
        %s164 = scalar_lea.vmem %s0, %s163
        %p165 = pneg %p50
        %p166 = pneg %p47
        %p167 = pneg %p71
        %p168 = pneg %p68
        %p169 = pneg %p92
        %p170 = pneg %p89
        %p171 = pneg %p120
        %p172 = pneg %p117
        %s173 = sand.u32 %s107, 1
        %s174 = scalar_lea.sflag [#allocation3], %s173
        %s175 = sand.u32 %s107, 1
        %s176 = smul.addr %s175, 24
        %s177 = scalar_lea.vmem [#allocation2], %s176
        %p178 = scmp.lt.s32.totalorder %s21, 1
        %s179 = scalar_select %p178, %s21, 1
        %s180 = smul.addr %s179, 24
        %s181 = smul.addr %s180, 4
        %s182 = scalar_lea.vmem %s0, %s181
        %s183 = smul.u32 %s22, 4
        %s184 = smul.addr %s183, 4
        %s185 = scalar_lea.vmem %s182, %s184
        %v186 = vld [vmem:[%s185] sm:$0xff]
        %v187 = vld [vmem:[%s185 + $0x8] sm:$0xff]
        %v188 = vld [vmem:[%s1] sm:$0xff]
        %190 = vset.pattern.permute.xlu0 0
        %191 = vperm.xlu0 %190, %v188
        %v192 = vpop.permute.xlu0 %191
        %v196 = vlaneseq
        %v197 = vshrl.u32 %v196, 7
        %v198 = vsub.s32 0, %v197
        %v199 = vrot.slane %v186, %v198
        %v200 = vlaneseq
        %v201 = vshrl.u32 %v200, 7
        %v202 = vsub.s32 4, %v201
        %v203 = vrot.slane %v186, %v202
        %v204 = vlaneseq
        %v205 = vshrl.u32 %v204, 7
        %v206 = vsub.s32 0, %v205
        %v207 = vrot.slane %v187, %v206
        %v211 = vlaneseq
        %v212 = vshrl.u32 %v211, 7
        %v213 = vsub.s32 0, %v212
        %v214 = vrot.slane %v199, %v213
        %v215 = vlaneseq
        %v216 = vshrl.u32 %v215, 7
        %v217 = vsub.s32 0, %v216
        %v218 = vrot.slane %v203, %v217
        %v219 = vlaneseq
        %v220 = vshrl.u32 %v219, 7
        %v221 = vsub.s32 0, %v220
        %v222 = vrot.slane %v207, %v221
        %v223 = vmul.f32 %v192, %v214
        %v224 = vmul.f32 %v192, %v218
        %v225 = vmul.f32 %v192, %v222
        %v226 = vadd.f32 %v223, 0.0
        %v227 = vadd.f32 %v224, 0.0
        %v228 = vadd.f32 %v225, 0.0
        %229 = vset.pattern.permute.xlu0 1
        %230 = vperm.xlu0 %229, %v188
        %v231 = vpop.permute.xlu0 %230
        %v233 = vlaneseq
        %v234 = vshrl.u32 %v233, 7
        %v235 = vsub.s32 1, %v234
        %v236 = vrot.slane %v186, %v235
        %v237 = vlaneseq
        %v238 = vshrl.u32 %v237, 7
        %v239 = vsub.s32 5, %v238
        %v240 = vrot.slane %v186, %v239
        %v241 = vlaneseq
        %v242 = vshrl.u32 %v241, 7
        %v243 = vsub.s32 1, %v242
        %v244 = vrot.slane %v187, %v243
        %v248 = vlaneseq
        %v249 = vshrl.u32 %v248, 7
        %v250 = vsub.s32 1, %v249
        %v251 = vrot.slane %v236, %v250
        %v252 = vlaneseq
        %v253 = vshrl.u32 %v252, 7
        %v254 = vsub.s32 1, %v253
        %v255 = vrot.slane %v240, %v254
        %v256 = vlaneseq
        %v257 = vshrl.u32 %v256, 7
        %v258 = vsub.s32 1, %v257
        %v259 = vrot.slane %v244, %v258
        %v260 = vmul.f32 %v231, %v251
        %v261 = vmul.f32 %v231, %v255
        %v262 = vmul.f32 %v231, %v259
        %v263 = vadd.f32 %v226, %v260
        %v264 = vadd.f32 %v227, %v261
        %v265 = vadd.f32 %v228, %v262
        %266 = vset.pattern.permute.xlu0 2
        %267 = vperm.xlu0 %266, %v188
        %v268 = vpop.permute.xlu0 %267
        %v270 = vlaneseq
        %v271 = vshrl.u32 %v270, 7
        %v272 = vsub.s32 2, %v271
        %v273 = vrot.slane %v186, %v272
        %v274 = vlaneseq
        %v275 = vshrl.u32 %v274, 7
        %v276 = vsub.s32 6, %v275
        %v277 = vrot.slane %v186, %v276
        %v278 = vlaneseq
        %v279 = vshrl.u32 %v278, 7
        %v280 = vsub.s32 2, %v279
        %v281 = vrot.slane %v187, %v280
        %v285 = vlaneseq
        %v286 = vshrl.u32 %v285, 7
        %v287 = vsub.s32 2, %v286
        %v288 = vrot.slane %v273, %v287
        %v289 = vlaneseq
        %v290 = vshrl.u32 %v289, 7
        %v291 = vsub.s32 2, %v290
        %v292 = vrot.slane %v277, %v291
        %v293 = vlaneseq
        %v294 = vshrl.u32 %v293, 7
        %v295 = vsub.s32 2, %v294
        %v296 = vrot.slane %v281, %v295
        %v297 = vmul.f32 %v268, %v288
        %v298 = vmul.f32 %v268, %v292
        %v299 = vmul.f32 %v268, %v296
        %v300 = vadd.f32 %v263, %v297
        %v301 = vadd.f32 %v264, %v298
        %v302 = vadd.f32 %v265, %v299
        %303 = vset.pattern.permute.xlu0 3
        %304 = vperm.xlu0 %303, %v188
        %v305 = vpop.permute.xlu0 %304
        %v307 = vlaneseq
        %v308 = vshrl.u32 %v307, 7
        %v309 = vsub.s32 3, %v308
        %v310 = vrot.slane %v186, %v309
        %v311 = vlaneseq
        %v312 = vshrl.u32 %v311, 7
        %v313 = vsub.s32 7, %v312
        %v314 = vrot.slane %v186, %v313
        %v315 = vlaneseq
        %v316 = vshrl.u32 %v315, 7
        %v317 = vsub.s32 3, %v316
        %v318 = vrot.slane %v187, %v317
        %v322 = vlaneseq
        %v323 = vshrl.u32 %v322, 7
        %v324 = vsub.s32 3, %v323
        %v325 = vrot.slane %v310, %v324
        %v326 = vlaneseq
        %v327 = vshrl.u32 %v326, 7
        %v328 = vsub.s32 3, %v327
        %v329 = vrot.slane %v314, %v328
        %v330 = vlaneseq
        %v331 = vshrl.u32 %v330, 7
        %v332 = vsub.s32 3, %v331
        %v333 = vrot.slane %v318, %v332
        %v334 = vmul.f32 %v305, %v325
        %v335 = vmul.f32 %v305, %v329
        %v336 = vmul.f32 %v305, %v333
        %v337 = vadd.f32 %v300, %v334
        %v338 = vadd.f32 %v301, %v335
        %v339 = vadd.f32 %v302, %v336
        %s340 = scalar_lea.vmem %s1, 8
        %v341 = vld [vmem:[%s340] sm:$0xff]
        %343 = vset.pattern.permute.xlu0 0
        %344 = vperm.xlu0 %343, %v341
        %v345 = vpop.permute.xlu0 %344
        %v347 = vlaneseq
        %v348 = vshrl.u32 %v347, 7
        %v349 = vsub.s32 4, %v348
        %v350 = vrot.slane %v187, %v349
        %v352 = vlaneseq
        %v353 = vshrl.u32 %v352, 7
        %v354 = vsub.s32 0, %v353
        %v355 = vrot.slane %v350, %v354
        %v356 = vmul.f32 %v345, %v214
        %v357 = vmul.f32 %v345, %v218
        %v358 = vmul.f32 %v345, %v222
        %v359 = vmul.f32 %v345, %v355
        %364 = vrot.lane.b32.xlu0 %v356, 127
        %v365 = vpop.permute.xlu0 %364
        %366 = vrot.lane.b32.xlu0 %v357, 127
        %v367 = vpop.permute.xlu0 %366
        %368 = vrot.lane.b32.xlu0 %v358, 127
        %v369 = vpop.permute.xlu0 %368
        %370 = vrot.lane.b32.xlu0 %v359, 127
        %v371 = vpop.permute.xlu0 %370
        %vm372 = vcmask 1039360
        %v373 = vsel %vm372, %v365, %v367
        %v374 = vsel %vm372, %v367, %v369
        %v375 = vsel %vm372, %v369, %v371
        %v379 = vadd.f32 %v337, %v373
        %v380 = vadd.f32 %v338, %v374
        %v381 = vadd.f32 %v339, %v375
        %382 = vset.pattern.permute.xlu0 1
        %383 = vperm.xlu0 %382, %v341
        %v384 = vpop.permute.xlu0 %383
        %v386 = vlaneseq
        %v387 = vshrl.u32 %v386, 7
        %v388 = vsub.s32 5, %v387
        %v389 = vrot.slane %v187, %v388
        %v391 = vlaneseq
        %v392 = vshrl.u32 %v391, 7
        %v393 = vsub.s32 1, %v392
        %v394 = vrot.slane %v389, %v393
        %v395 = vmul.f32 %v384, %v251
        %v396 = vmul.f32 %v384, %v255
        %v397 = vmul.f32 %v384, %v259
        %v398 = vmul.f32 %v384, %v394
        %403 = vrot.lane.b32.xlu0 %v395, 127
        %v404 = vpop.permute.xlu0 %403
        %405 = vrot.lane.b32.xlu0 %v396, 127
        %v406 = vpop.permute.xlu0 %405
        %407 = vrot.lane.b32.xlu0 %v397, 127
        %v408 = vpop.permute.xlu0 %407
        %409 = vrot.lane.b32.xlu0 %v398, 127
        %v410 = vpop.permute.xlu0 %409
        %v411 = vsel %vm372, %v404, %v406
        %v412 = vsel %vm372, %v406, %v408
        %v413 = vsel %vm372, %v408, %v410
        %v417 = vadd.f32 %v379, %v411
        %v418 = vadd.f32 %v380, %v412
        %v419 = vadd.f32 %v381, %v413
        %420 = vset.pattern.permute.xlu0 2
        %421 = vperm.xlu0 %420, %v341
        %v422 = vpop.permute.xlu0 %421
        %v424 = vlaneseq
        %v425 = vshrl.u32 %v424, 7
        %v426 = vsub.s32 6, %v425
        %v427 = vrot.slane %v187, %v426
        %v429 = vlaneseq
        %v430 = vshrl.u32 %v429, 7
        %v431 = vsub.s32 2, %v430
        %v432 = vrot.slane %v427, %v431
        %v433 = vmul.f32 %v422, %v288
        %v434 = vmul.f32 %v422, %v292
        %v435 = vmul.f32 %v422, %v296
        %v436 = vmul.f32 %v422, %v432
        %441 = vrot.lane.b32.xlu0 %v433, 127
        %v442 = vpop.permute.xlu0 %441
        %443 = vrot.lane.b32.xlu0 %v434, 127
        %v444 = vpop.permute.xlu0 %443
        %445 = vrot.lane.b32.xlu0 %v435, 127
        %v446 = vpop.permute.xlu0 %445
        %447 = vrot.lane.b32.xlu0 %v436, 127
        %v448 = vpop.permute.xlu0 %447
        %v449 = vsel %vm372, %v442, %v444
        %v450 = vsel %vm372, %v444, %v446
        %v451 = vsel %vm372, %v446, %v448
        %v455 = vadd.f32 %v417, %v449
        %v456 = vadd.f32 %v418, %v450
        %v457 = vadd.f32 %v419, %v451
        %458 = vset.pattern.permute.xlu0 3
        %459 = vperm.xlu0 %458, %v341
        %v460 = vpop.permute.xlu0 %459
        %v462 = vlaneseq
        %v463 = vshrl.u32 %v462, 7
        %v464 = vsub.s32 7, %v463
        %v465 = vrot.slane %v187, %v464
        %v467 = vlaneseq
        %v468 = vshrl.u32 %v467, 7
        %v469 = vsub.s32 3, %v468
        %v470 = vrot.slane %v465, %v469
        %v471 = vmul.f32 %v460, %v325
        %v472 = vmul.f32 %v460, %v329
        %v473 = vmul.f32 %v460, %v333
        %v474 = vmul.f32 %v460, %v470
        %479 = vrot.lane.b32.xlu0 %v471, 127
        %v480 = vpop.permute.xlu0 %479
        %481 = vrot.lane.b32.xlu0 %v472, 127
        %v482 = vpop.permute.xlu0 %481
        %483 = vrot.lane.b32.xlu0 %v473, 127
        %v484 = vpop.permute.xlu0 %483
        %485 = vrot.lane.b32.xlu0 %v474, 127
        %v486 = vpop.permute.xlu0 %485
        %v487 = vsel %vm372, %v480, %v482
        %v488 = vsel %vm372, %v482, %v484
        %v489 = vsel %vm372, %v484, %v486
        %v493 = vadd.f32 %v455, %v487
        %v494 = vadd.f32 %v456, %v488
        %v495 = vadd.f32 %v457, %v489
        %s496 = scalar_lea.vmem %s1, 16
        %v497 = vld [vmem:[%s496] sm:$0xff]
        %499 = vset.pattern.permute.xlu0 0
        %500 = vperm.xlu0 %499, %v497
        %v501 = vpop.permute.xlu0 %500
        %v503 = vmul.f32 %v501, %v214
        %v504 = vmul.f32 %v501, %v218
        %v505 = vmul.f32 %v501, %v222
        %v506 = vmul.f32 %v501, %v355
        %511 = vrot.lane.b32.xlu0 %v503, 126
        %v512 = vpop.permute.xlu0 %511
        %513 = vrot.lane.b32.xlu0 %v504, 126
        %v514 = vpop.permute.xlu0 %513
        %515 = vrot.lane.b32.xlu0 %v505, 126
        %v516 = vpop.permute.xlu0 %515
        %517 = vrot.lane.b32.xlu0 %v506, 126
        %v518 = vpop.permute.xlu0 %517
        %vm519 = vcmask 1031168
        %v520 = vsel %vm519, %v512, %v514
        %v521 = vsel %vm519, %v514, %v516
        %v522 = vsel %vm519, %v516, %v518
        %v526 = vadd.f32 %v493, %v520
        %v527 = vadd.f32 %v494, %v521
        %v528 = vadd.f32 %v495, %v522
        %529 = vset.pattern.permute.xlu0 1
        %530 = vperm.xlu0 %529, %v497
        %v531 = vpop.permute.xlu0 %530
        %v533 = vmul.f32 %v531, %v251
        %v534 = vmul.f32 %v531, %v255
        %v535 = vmul.f32 %v531, %v259
        %v536 = vmul.f32 %v531, %v394
        %541 = vrot.lane.b32.xlu0 %v533, 126
        %v542 = vpop.permute.xlu0 %541
        %543 = vrot.lane.b32.xlu0 %v534, 126
        %v544 = vpop.permute.xlu0 %543
        %545 = vrot.lane.b32.xlu0 %v535, 126
        %v546 = vpop.permute.xlu0 %545
        %547 = vrot.lane.b32.xlu0 %v536, 126
        %v548 = vpop.permute.xlu0 %547
        %v549 = vsel %vm519, %v542, %v544
        %v550 = vsel %vm519, %v544, %v546
        %v551 = vsel %vm519, %v546, %v548
        %v555 = vadd.f32 %v526, %v549
        %v556 = vadd.f32 %v527, %v550
        %v557 = vadd.f32 %v528, %v551
        %558 = vset.pattern.permute.xlu0 2
        %559 = vperm.xlu0 %558, %v497
        %v560 = vpop.permute.xlu0 %559
        %v562 = vmul.f32 %v560, %v288
        %v563 = vmul.f32 %v560, %v292
        %v564 = vmul.f32 %v560, %v296
        %v565 = vmul.f32 %v560, %v432
        %570 = vrot.lane.b32.xlu0 %v562, 126
        %v571 = vpop.permute.xlu0 %570
        %572 = vrot.lane.b32.xlu0 %v563, 126
        %v573 = vpop.permute.xlu0 %572
        %574 = vrot.lane.b32.xlu0 %v564, 126
        %v575 = vpop.permute.xlu0 %574
        %576 = vrot.lane.b32.xlu0 %v565, 126
        %v577 = vpop.permute.xlu0 %576
        %v578 = vsel %vm519, %v571, %v573
        %v579 = vsel %vm519, %v573, %v575
        %v580 = vsel %vm519, %v575, %v577
        %v584 = vadd.f32 %v555, %v578
        %v585 = vadd.f32 %v556, %v579
        %v586 = vadd.f32 %v557, %v580
        %587 = vset.pattern.permute.xlu0 3
        %588 = vperm.xlu0 %587, %v497
        %v589 = vpop.permute.xlu0 %588
        %v591 = vmul.f32 %v589, %v325
        %v592 = vmul.f32 %v589, %v329
        %v593 = vmul.f32 %v589, %v333
        %v594 = vmul.f32 %v589, %v470
        %599 = vrot.lane.b32.xlu0 %v591, 126
        %v600 = vpop.permute.xlu0 %599
        %601 = vrot.lane.b32.xlu0 %v592, 126
        %v602 = vpop.permute.xlu0 %601
        %603 = vrot.lane.b32.xlu0 %v593, 126
        %v604 = vpop.permute.xlu0 %603
        %605 = vrot.lane.b32.xlu0 %v594, 126
        %v606 = vpop.permute.xlu0 %605
        %v607 = vsel %vm519, %v600, %v602
        %v608 = vsel %vm519, %v602, %v604
        %v609 = vsel %vm519, %v604, %v606
        %v613 = vadd.f32 %v584, %v607
        %v614 = vadd.f32 %v585, %v608
        %v615 = vadd.f32 %v586, %v609
        %s616 = scalar_lea.vmem %s1, 24
        %v617 = vld [vmem:[%s616] sm:$0xff]
        %619 = vset.pattern.permute.xlu0 0
        %620 = vperm.xlu0 %619, %v617
        %v621 = vpop.permute.xlu0 %620
        %v623 = vmul.f32 %v621, %v214
        %v624 = vmul.f32 %v621, %v218
        %v625 = vmul.f32 %v621, %v222
        %v626 = vmul.f32 %v621, %v355
        %631 = vrot.lane.b32.xlu0 %v623, 104
        %v632 = vpop.permute.xlu0 %631
        %633 = vrot.lane.b32.xlu0 %v624, 104
        %v634 = vpop.permute.xlu0 %633
        %635 = vrot.lane.b32.xlu0 %v625, 104
        %v636 = vpop.permute.xlu0 %635
        %637 = vrot.lane.b32.xlu0 %v626, 104
        %v638 = vpop.permute.xlu0 %637
        %vm639 = vcmask 850944
        %v640 = vsel %vm639, %v632, %v634
        %v641 = vsel %vm639, %v634, %v636
        %v642 = vsel %vm639, %v636, %v638
        %v646 = vadd.f32 %v613, %v640
        %v647 = vadd.f32 %v614, %v641
        %v648 = vadd.f32 %v615, %v642
        %649 = vset.pattern.permute.xlu0 1
        %650 = vperm.xlu0 %649, %v617
        %v651 = vpop.permute.xlu0 %650
        %v653 = vmul.f32 %v651, %v251
        %v654 = vmul.f32 %v651, %v255
        %v655 = vmul.f32 %v651, %v259
        %v656 = vmul.f32 %v651, %v394
        %661 = vrot.lane.b32.xlu0 %v653, 104
        %v662 = vpop.permute.xlu0 %661
        %663 = vrot.lane.b32.xlu0 %v654, 104
        %v664 = vpop.permute.xlu0 %663
        %665 = vrot.lane.b32.xlu0 %v655, 104
        %v666 = vpop.permute.xlu0 %665
        %667 = vrot.lane.b32.xlu0 %v656, 104
        %v668 = vpop.permute.xlu0 %667
        %v669 = vsel %vm639, %v662, %v664
        %v670 = vsel %vm639, %v664, %v666
        %v671 = vsel %vm639, %v666, %v668
        %v675 = vadd.f32 %v646, %v669
        %v676 = vadd.f32 %v647, %v670
        %v677 = vadd.f32 %v648, %v671
        %678 = vset.pattern.permute.xlu0 2
        %679 = vperm.xlu0 %678, %v617
        %v680 = vpop.permute.xlu0 %679
        %v682 = vmul.f32 %v680, %v288
        %v683 = vmul.f32 %v680, %v292
        %v684 = vmul.f32 %v680, %v296
        %v685 = vmul.f32 %v680, %v432
        %690 = vrot.lane.b32.xlu0 %v682, 104
        %v691 = vpop.permute.xlu0 %690
        %692 = vrot.lane.b32.xlu0 %v683, 104
        %v693 = vpop.permute.xlu0 %692
        %694 = vrot.lane.b32.xlu0 %v684, 104
        %v695 = vpop.permute.xlu0 %694
        %696 = vrot.lane.b32.xlu0 %v685, 104
        %v697 = vpop.permute.xlu0 %696
        %v698 = vsel %vm639, %v691, %v693
        %v699 = vsel %vm639, %v693, %v695
        %v700 = vsel %vm639, %v695, %v697
        %v704 = vadd.f32 %v675, %v698
        %v705 = vadd.f32 %v676, %v699
        %v706 = vadd.f32 %v677, %v700
        %707 = vset.pattern.permute.xlu0 3
        %708 = vperm.xlu0 %707, %v617
        %v709 = vpop.permute.xlu0 %708
        %v711 = vmul.f32 %v709, %v325
        %v712 = vmul.f32 %v709, %v329
        %v713 = vmul.f32 %v709, %v333
        %v714 = vmul.f32 %v709, %v470
        %719 = vrot.lane.b32.xlu0 %v711, 104
        %v720 = vpop.permute.xlu0 %719
        %721 = vrot.lane.b32.xlu0 %v712, 104
        %v722 = vpop.permute.xlu0 %721
        %723 = vrot.lane.b32.xlu0 %v713, 104
        %v724 = vpop.permute.xlu0 %723
        %725 = vrot.lane.b32.xlu0 %v714, 104
        %v726 = vpop.permute.xlu0 %725
        %v727 = vsel %vm639, %v720, %v722
        %v728 = vsel %vm639, %v722, %v724
        %v729 = vsel %vm639, %v724, %v726
        %v733 = vadd.f32 %v704, %v727
        %v734 = vadd.f32 %v705, %v728
        %v735 = vadd.f32 %v706, %v729
        %s736 = scalar_lea.vmem %s1, 32
        %v737 = vld [vmem:[%s736] sm:$0xff]
        %739 = vset.pattern.permute.xlu0 0
        %740 = vperm.xlu0 %739, %v737
        %v741 = vpop.permute.xlu0 %740
        %v743 = vmul.f32 %v741, %v214
        %v744 = vmul.f32 %v741, %v218
        %v745 = vmul.f32 %v741, %v222
        %v746 = vmul.f32 %v741, %v355
        %751 = vrot.lane.b32.xlu0 %v743, 103
        %v752 = vpop.permute.xlu0 %751
        %753 = vrot.lane.b32.xlu0 %v744, 103
        %v754 = vpop.permute.xlu0 %753
        %755 = vrot.lane.b32.xlu0 %v745, 103
        %v756 = vpop.permute.xlu0 %755
        %757 = vrot.lane.b32.xlu0 %v746, 103
        %v758 = vpop.permute.xlu0 %757
        %vm759 = vcmask 842752
        %v760 = vsel %vm759, %v752, %v754
        %v761 = vsel %vm759, %v754, %v756
        %v762 = vsel %vm759, %v756, %v758
        %v766 = vadd.f32 %v733, %v760
        %v767 = vadd.f32 %v734, %v761
        %v768 = vadd.f32 %v735, %v762
        %769 = vset.pattern.permute.xlu0 1
        %770 = vperm.xlu0 %769, %v737
        %v771 = vpop.permute.xlu0 %770
        %v773 = vmul.f32 %v771, %v251
        %v774 = vmul.f32 %v771, %v255
        %v775 = vmul.f32 %v771, %v259
        %v776 = vmul.f32 %v771, %v394
        %781 = vrot.lane.b32.xlu0 %v773, 103
        %v782 = vpop.permute.xlu0 %781
        %783 = vrot.lane.b32.xlu0 %v774, 103
        %v784 = vpop.permute.xlu0 %783
        %785 = vrot.lane.b32.xlu0 %v775, 103
        %v786 = vpop.permute.xlu0 %785
        %787 = vrot.lane.b32.xlu0 %v776, 103
        %v788 = vpop.permute.xlu0 %787
        %v789 = vsel %vm759, %v782, %v784
        %v790 = vsel %vm759, %v784, %v786
        %v791 = vsel %vm759, %v786, %v788
        %v795 = vadd.f32 %v766, %v789
        %v796 = vadd.f32 %v767, %v790
        %v797 = vadd.f32 %v768, %v791
        %798 = vset.pattern.permute.xlu0 2
        %799 = vperm.xlu0 %798, %v737
        %v800 = vpop.permute.xlu0 %799
        %v802 = vmul.f32 %v800, %v288
        %v803 = vmul.f32 %v800, %v292
        %v804 = vmul.f32 %v800, %v296
        %v805 = vmul.f32 %v800, %v432
        %810 = vrot.lane.b32.xlu0 %v802, 103
        %v811 = vpop.permute.xlu0 %810
        %812 = vrot.lane.b32.xlu0 %v803, 103
        %v813 = vpop.permute.xlu0 %812
        %814 = vrot.lane.b32.xlu0 %v804, 103
        %v815 = vpop.permute.xlu0 %814
        %816 = vrot.lane.b32.xlu0 %v805, 103
        %v817 = vpop.permute.xlu0 %816
        %v818 = vsel %vm759, %v811, %v813
        %v819 = vsel %vm759, %v813, %v815
        %v820 = vsel %vm759, %v815, %v817
        %v824 = vadd.f32 %v795, %v818
        %v825 = vadd.f32 %v796, %v819
        %v826 = vadd.f32 %v797, %v820
        %827 = vset.pattern.permute.xlu0 3
        %828 = vperm.xlu0 %827, %v737
        %v829 = vpop.permute.xlu0 %828
        %v831 = vmul.f32 %v829, %v325
        %v832 = vmul.f32 %v829, %v329
        %v833 = vmul.f32 %v829, %v333
        %v834 = vmul.f32 %v829, %v470
        %839 = vrot.lane.b32.xlu0 %v831, 103
        %v840 = vpop.permute.xlu0 %839
        %841 = vrot.lane.b32.xlu0 %v832, 103
        %v842 = vpop.permute.xlu0 %841
        %843 = vrot.lane.b32.xlu0 %v833, 103
        %v844 = vpop.permute.xlu0 %843
        %845 = vrot.lane.b32.xlu0 %v834, 103
        %v846 = vpop.permute.xlu0 %845
        %v847 = vsel %vm759, %v840, %v842
        %v848 = vsel %vm759, %v842, %v844
        %v849 = vsel %vm759, %v844, %v846
        %v853 = vadd.f32 %v824, %v847
        %v854 = vadd.f32 %v825, %v848
        %v855 = vadd.f32 %v826, %v849
        %s856 = scalar_lea.vmem %s1, 40
        %v857 = vld [vmem:[%s856] sm:$0xff]
        %859 = vset.pattern.permute.xlu0 0
        %860 = vperm.xlu0 %859, %v857
        %v861 = vpop.permute.xlu0 %860
        %v863 = vmul.f32 %v861, %v214
        %v864 = vmul.f32 %v861, %v218
        %v865 = vmul.f32 %v861, %v222
        %v866 = vmul.f32 %v861, %v355
        %871 = vrot.lane.b32.xlu0 %v863, 102
        %v872 = vpop.permute.xlu0 %871
        %873 = vrot.lane.b32.xlu0 %v864, 102
        %v874 = vpop.permute.xlu0 %873
        %875 = vrot.lane.b32.xlu0 %v865, 102
        %v876 = vpop.permute.xlu0 %875
        %877 = vrot.lane.b32.xlu0 %v866, 102
        %v878 = vpop.permute.xlu0 %877
        %vm879 = vcmask 834560
        %v880 = vsel %vm879, %v872, %v874
        %v881 = vsel %vm879, %v874, %v876
        %v882 = vsel %vm879, %v876, %v878
        %v886 = vadd.f32 %v853, %v880
        %v887 = vadd.f32 %v854, %v881
        %v888 = vadd.f32 %v855, %v882
        %889 = vset.pattern.permute.xlu0 1
        %890 = vperm.xlu0 %889, %v857
        %v891 = vpop.permute.xlu0 %890
        %v893 = vmul.f32 %v891, %v251
        %v894 = vmul.f32 %v891, %v255
        %v895 = vmul.f32 %v891, %v259
        %v896 = vmul.f32 %v891, %v394
        %901 = vrot.lane.b32.xlu0 %v893, 102
        %v902 = vpop.permute.xlu0 %901
        %903 = vrot.lane.b32.xlu0 %v894, 102
        %v904 = vpop.permute.xlu0 %903
        %905 = vrot.lane.b32.xlu0 %v895, 102
        %v906 = vpop.permute.xlu0 %905
        %907 = vrot.lane.b32.xlu0 %v896, 102
        %v908 = vpop.permute.xlu0 %907
        %v909 = vsel %vm879, %v902, %v904
        %v910 = vsel %vm879, %v904, %v906
        %v911 = vsel %vm879, %v906, %v908
        %v915 = vadd.f32 %v886, %v909
        %v916 = vadd.f32 %v887, %v910
        %v917 = vadd.f32 %v888, %v911
        %918 = vset.pattern.permute.xlu0 2
        %919 = vperm.xlu0 %918, %v857
        %v920 = vpop.permute.xlu0 %919
        %v922 = vmul.f32 %v920, %v288
        %v923 = vmul.f32 %v920, %v292
        %v924 = vmul.f32 %v920, %v296
        %v925 = vmul.f32 %v920, %v432
        %930 = vrot.lane.b32.xlu0 %v922, 102
        %v931 = vpop.permute.xlu0 %930
        %932 = vrot.lane.b32.xlu0 %v923, 102
        %v933 = vpop.permute.xlu0 %932
        %934 = vrot.lane.b32.xlu0 %v924, 102
        %v935 = vpop.permute.xlu0 %934
        %936 = vrot.lane.b32.xlu0 %v925, 102
        %v937 = vpop.permute.xlu0 %936
        %v938 = vsel %vm879, %v931, %v933
        %v939 = vsel %vm879, %v933, %v935
        %v940 = vsel %vm879, %v935, %v937
        %v944 = vadd.f32 %v915, %v938
        %v945 = vadd.f32 %v916, %v939
        %v946 = vadd.f32 %v917, %v940
        %947 = vset.pattern.permute.xlu0 3
        %948 = vperm.xlu0 %947, %v857
        %v949 = vpop.permute.xlu0 %948
        %v951 = vmul.f32 %v949, %v325
        %v952 = vmul.f32 %v949, %v329
        %v953 = vmul.f32 %v949, %v333
        %v954 = vmul.f32 %v949, %v470
        %959 = vrot.lane.b32.xlu0 %v951, 102
        %v960 = vpop.permute.xlu0 %959
        %961 = vrot.lane.b32.xlu0 %v952, 102
        %v962 = vpop.permute.xlu0 %961
        %963 = vrot.lane.b32.xlu0 %v953, 102
        %v964 = vpop.permute.xlu0 %963
        %965 = vrot.lane.b32.xlu0 %v954, 102
        %v966 = vpop.permute.xlu0 %965
        %v967 = vsel %vm879, %v960, %v962
        %v968 = vsel %vm879, %v962, %v964
        %v969 = vsel %vm879, %v964, %v966
        %v973 = vadd.f32 %v944, %v967
        %v974 = vadd.f32 %v945, %v968
        %v975 = vadd.f32 %v946, %v969
        %s976 = scalar_lea.vmem %s1, 48
        %v977 = vld [vmem:[%s976] sm:$0xff]
        %979 = vset.pattern.permute.xlu0 0
        %980 = vperm.xlu0 %979, %v977
        %v981 = vpop.permute.xlu0 %980
        %v983 = vmul.f32 %v981, %v214
        %v984 = vmul.f32 %v981, %v218
        %v985 = vmul.f32 %v981, %v222
        %v986 = vmul.f32 %v981, %v355
        %991 = vrot.lane.b32.xlu0 %v983, 80
        %v992 = vpop.permute.xlu0 %991
        %993 = vrot.lane.b32.xlu0 %v984, 80
        %v994 = vpop.permute.xlu0 %993
        %995 = vrot.lane.b32.xlu0 %v985, 80
        %v996 = vpop.permute.xlu0 %995
        %997 = vrot.lane.b32.xlu0 %v986, 80
        %v998 = vpop.permute.xlu0 %997
        %vm999 = vcmask 654336
        %v1000 = vsel %vm999, %v992, %v994
        %v1001 = vsel %vm999, %v994, %v996
        %v1002 = vsel %vm999, %v996, %v998
        %v1006 = vadd.f32 %v973, %v1000
        %v1007 = vadd.f32 %v974, %v1001
        %v1008 = vadd.f32 %v975, %v1002
        %1009 = vset.pattern.permute.xlu0 1
        %1010 = vperm.xlu0 %1009, %v977
        %v1011 = vpop.permute.xlu0 %1010
        %v1013 = vmul.f32 %v1011, %v251
        %v1014 = vmul.f32 %v1011, %v255
        %v1015 = vmul.f32 %v1011, %v259
        %v1016 = vmul.f32 %v1011, %v394
        %1021 = vrot.lane.b32.xlu0 %v1013, 80
        %v1022 = vpop.permute.xlu0 %1021
        %1023 = vrot.lane.b32.xlu0 %v1014, 80
        %v1024 = vpop.permute.xlu0 %1023
        %1025 = vrot.lane.b32.xlu0 %v1015, 80
        %v1026 = vpop.permute.xlu0 %1025
        %1027 = vrot.lane.b32.xlu0 %v1016, 80
        %v1028 = vpop.permute.xlu0 %1027
        %v1029 = vsel %vm999, %v1022, %v1024
        %v1030 = vsel %vm999, %v1024, %v1026
        %v1031 = vsel %vm999, %v1026, %v1028
        %v1035 = vadd.f32 %v1006, %v1029
        %v1036 = vadd.f32 %v1007, %v1030
        %v1037 = vadd.f32 %v1008, %v1031
        %1038 = vset.pattern.permute.xlu0 2
        %1039 = vperm.xlu0 %1038, %v977
        %v1040 = vpop.permute.xlu0 %1039
        %v1042 = vmul.f32 %v1040, %v288
        %v1043 = vmul.f32 %v1040, %v292
        %v1044 = vmul.f32 %v1040, %v296
        %v1045 = vmul.f32 %v1040, %v432
        %1050 = vrot.lane.b32.xlu0 %v1042, 80
        %v1051 = vpop.permute.xlu0 %1050
        %1052 = vrot.lane.b32.xlu0 %v1043, 80
        %v1053 = vpop.permute.xlu0 %1052
        %1054 = vrot.lane.b32.xlu0 %v1044, 80
        %v1055 = vpop.permute.xlu0 %1054
        %1056 = vrot.lane.b32.xlu0 %v1045, 80
        %v1057 = vpop.permute.xlu0 %1056
        %v1058 = vsel %vm999, %v1051, %v1053
        %v1059 = vsel %vm999, %v1053, %v1055
        %v1060 = vsel %vm999, %v1055, %v1057
        %v1064 = vadd.f32 %v1035, %v1058
        %v1065 = vadd.f32 %v1036, %v1059
        %v1066 = vadd.f32 %v1037, %v1060
        %1067 = vset.pattern.permute.xlu0 3
        %1068 = vperm.xlu0 %1067, %v977
        %v1069 = vpop.permute.xlu0 %1068
        %v1071 = vmul.f32 %v1069, %v325
        %v1072 = vmul.f32 %v1069, %v329
        %v1073 = vmul.f32 %v1069, %v333
        %v1074 = vmul.f32 %v1069, %v470
        %1079 = vrot.lane.b32.xlu0 %v1071, 80
        %v1080 = vpop.permute.xlu0 %1079
        %1081 = vrot.lane.b32.xlu0 %v1072, 80
        %v1082 = vpop.permute.xlu0 %1081
        %1083 = vrot.lane.b32.xlu0 %v1073, 80
        %v1084 = vpop.permute.xlu0 %1083
        %1085 = vrot.lane.b32.xlu0 %v1074, 80
        %v1086 = vpop.permute.xlu0 %1085
        %v1087 = vsel %vm999, %v1080, %v1082
        %v1088 = vsel %vm999, %v1082, %v1084
        %v1089 = vsel %vm999, %v1084, %v1086
        %v1093 = vadd.f32 %v1064, %v1087
        %v1094 = vadd.f32 %v1065, %v1088
        %v1095 = vadd.f32 %v1066, %v1089
        %s1096 = scalar_lea.vmem %s1, 56
        %v1097 = vld [vmem:[%s1096] sm:$0xff]
        %1099 = vset.pattern.permute.xlu0 0
        %1100 = vperm.xlu0 %1099, %v1097
        %v1101 = vpop.permute.xlu0 %1100
        %v1103 = vmul.f32 %v1101, %v214
        %v1104 = vmul.f32 %v1101, %v218
        %v1105 = vmul.f32 %v1101, %v222
        %v1106 = vmul.f32 %v1101, %v355
        %1111 = vrot.lane.b32.xlu0 %v1103, 79
        %v1112 = vpop.permute.xlu0 %1111
        %1113 = vrot.lane.b32.xlu0 %v1104, 79
        %v1114 = vpop.permute.xlu0 %1113
        %1115 = vrot.lane.b32.xlu0 %v1105, 79
        %v1116 = vpop.permute.xlu0 %1115
        %1117 = vrot.lane.b32.xlu0 %v1106, 79
        %v1118 = vpop.permute.xlu0 %1117
        %vm1119 = vcmask 646144
        %v1120 = vsel %vm1119, %v1112, %v1114
        %v1121 = vsel %vm1119, %v1114, %v1116
        %v1122 = vsel %vm1119, %v1116, %v1118
        %v1126 = vadd.f32 %v1093, %v1120
        %v1127 = vadd.f32 %v1094, %v1121
        %v1128 = vadd.f32 %v1095, %v1122
        %1129 = vset.pattern.permute.xlu0 1
        %1130 = vperm.xlu0 %1129, %v1097
        %v1131 = vpop.permute.xlu0 %1130
        %v1133 = vmul.f32 %v1131, %v251
        %v1134 = vmul.f32 %v1131, %v255
        %v1135 = vmul.f32 %v1131, %v259
        %v1136 = vmul.f32 %v1131, %v394
        %1141 = vrot.lane.b32.xlu0 %v1133, 79
        %v1142 = vpop.permute.xlu0 %1141
        %1143 = vrot.lane.b32.xlu0 %v1134, 79
        %v1144 = vpop.permute.xlu0 %1143
        %1145 = vrot.lane.b32.xlu0 %v1135, 79
        %v1146 = vpop.permute.xlu0 %1145
        %1147 = vrot.lane.b32.xlu0 %v1136, 79
        %v1148 = vpop.permute.xlu0 %1147
        %v1149 = vsel %vm1119, %v1142, %v1144
        %v1150 = vsel %vm1119, %v1144, %v1146
        %v1151 = vsel %vm1119, %v1146, %v1148
        %v1155 = vadd.f32 %v1126, %v1149
        %v1156 = vadd.f32 %v1127, %v1150
        %v1157 = vadd.f32 %v1128, %v1151
        %1158 = vset.pattern.permute.xlu0 2
        %1159 = vperm.xlu0 %1158, %v1097
        %v1160 = vpop.permute.xlu0 %1159
        %v1162 = vmul.f32 %v1160, %v288
        %v1163 = vmul.f32 %v1160, %v292
        %v1164 = vmul.f32 %v1160, %v296
        %v1165 = vmul.f32 %v1160, %v432
        %1170 = vrot.lane.b32.xlu0 %v1162, 79
        %v1171 = vpop.permute.xlu0 %1170
        %1172 = vrot.lane.b32.xlu0 %v1163, 79
        %v1173 = vpop.permute.xlu0 %1172
        %1174 = vrot.lane.b32.xlu0 %v1164, 79
        %v1175 = vpop.permute.xlu0 %1174
        %1176 = vrot.lane.b32.xlu0 %v1165, 79
        %v1177 = vpop.permute.xlu0 %1176
        %v1178 = vsel %vm1119, %v1171, %v1173
        %v1179 = vsel %vm1119, %v1173, %v1175
        %v1180 = vsel %vm1119, %v1175, %v1177
        %v1184 = vadd.f32 %v1155, %v1178
        %v1185 = vadd.f32 %v1156, %v1179
        %v1186 = vadd.f32 %v1157, %v1180
        %1187 = vset.pattern.permute.xlu0 3
        %1188 = vperm.xlu0 %1187, %v1097
        %v1189 = vpop.permute.xlu0 %1188
        %v1191 = vmul.f32 %v1189, %v325
        %v1192 = vmul.f32 %v1189, %v329
        %v1193 = vmul.f32 %v1189, %v333
        %v1194 = vmul.f32 %v1189, %v470
        %1199 = vrot.lane.b32.xlu0 %v1191, 79
        %v1200 = vpop.permute.xlu0 %1199
        %1201 = vrot.lane.b32.xlu0 %v1192, 79
        %v1202 = vpop.permute.xlu0 %1201
        %1203 = vrot.lane.b32.xlu0 %v1193, 79
        %v1204 = vpop.permute.xlu0 %1203
        %1205 = vrot.lane.b32.xlu0 %v1194, 79
        %v1206 = vpop.permute.xlu0 %1205
        %v1207 = vsel %vm1119, %v1200, %v1202
        %v1208 = vsel %vm1119, %v1202, %v1204
        %v1209 = vsel %vm1119, %v1204, %v1206
        %v1213 = vadd.f32 %v1184, %v1207
        %v1214 = vadd.f32 %v1185, %v1208
        %v1215 = vadd.f32 %v1186, %v1209
        %s1216 = scalar_lea.vmem %s1, 64
        %v1217 = vld [vmem:[%s1216] sm:$0xff]
        %1219 = vset.pattern.permute.xlu0 0
        %1220 = vperm.xlu0 %1219, %v1217
        %v1221 = vpop.permute.xlu0 %1220
        %v1223 = vmul.f32 %v1221, %v214
        %v1224 = vmul.f32 %v1221, %v218
        %v1225 = vmul.f32 %v1221, %v222
        %v1226 = vmul.f32 %v1221, %v355
        %1231 = vrot.lane.b32.xlu0 %v1223, 78
        %v1232 = vpop.permute.xlu0 %1231
        %1233 = vrot.lane.b32.xlu0 %v1224, 78
        %v1234 = vpop.permute.xlu0 %1233
        %1235 = vrot.lane.b32.xlu0 %v1225, 78
        %v1236 = vpop.permute.xlu0 %1235
        %1237 = vrot.lane.b32.xlu0 %v1226, 78
        %v1238 = vpop.permute.xlu0 %1237
        %vm1239 = vcmask 637952
        %v1240 = vsel %vm1239, %v1232, %v1234
        %v1241 = vsel %vm1239, %v1234, %v1236
        %v1242 = vsel %vm1239, %v1236, %v1238
        %v1246 = vadd.f32 %v1213, %v1240
        %v1247 = vadd.f32 %v1214, %v1241
        %v1248 = vadd.f32 %v1215, %v1242
        %1249 = vset.pattern.permute.xlu0 1
        %1250 = vperm.xlu0 %1249, %v1217
        %v1251 = vpop.permute.xlu0 %1250
        %v1253 = vmul.f32 %v1251, %v251
        %v1254 = vmul.f32 %v1251, %v255
        %v1255 = vmul.f32 %v1251, %v259
        %v1256 = vmul.f32 %v1251, %v394
        %1261 = vrot.lane.b32.xlu0 %v1253, 78
        %v1262 = vpop.permute.xlu0 %1261
        %1263 = vrot.lane.b32.xlu0 %v1254, 78
        %v1264 = vpop.permute.xlu0 %1263
        %1265 = vrot.lane.b32.xlu0 %v1255, 78
        %v1266 = vpop.permute.xlu0 %1265
        %1267 = vrot.lane.b32.xlu0 %v1256, 78
        %v1268 = vpop.permute.xlu0 %1267
        %v1269 = vsel %vm1239, %v1262, %v1264
        %v1270 = vsel %vm1239, %v1264, %v1266
        %v1271 = vsel %vm1239, %v1266, %v1268
        %v1275 = vadd.f32 %v1246, %v1269
        %v1276 = vadd.f32 %v1247, %v1270
        %v1277 = vadd.f32 %v1248, %v1271
        %1278 = vset.pattern.permute.xlu0 2
        %1279 = vperm.xlu0 %1278, %v1217
        %v1280 = vpop.permute.xlu0 %1279
        %v1282 = vmul.f32 %v1280, %v288
        %v1283 = vmul.f32 %v1280, %v292
        %v1284 = vmul.f32 %v1280, %v296
        %v1285 = vmul.f32 %v1280, %v432
        %1290 = vrot.lane.b32.xlu0 %v1282, 78
        %v1291 = vpop.permute.xlu0 %1290
        %1292 = vrot.lane.b32.xlu0 %v1283, 78
        %v1293 = vpop.permute.xlu0 %1292
        %1294 = vrot.lane.b32.xlu0 %v1284, 78
        %v1295 = vpop.permute.xlu0 %1294
        %1296 = vrot.lane.b32.xlu0 %v1285, 78
        %v1297 = vpop.permute.xlu0 %1296
        %v1298 = vsel %vm1239, %v1291, %v1293
        %v1299 = vsel %vm1239, %v1293, %v1295
        %v1300 = vsel %vm1239, %v1295, %v1297
        %v1304 = vadd.f32 %v1275, %v1298
        %v1305 = vadd.f32 %v1276, %v1299
        %v1306 = vadd.f32 %v1277, %v1300
        %1307 = vset.pattern.permute.xlu0 3
        %1308 = vperm.xlu0 %1307, %v1217
        %v1309 = vpop.permute.xlu0 %1308
        %v1311 = vmul.f32 %v1309, %v325
        %v1312 = vmul.f32 %v1309, %v329
        %v1313 = vmul.f32 %v1309, %v333
        %v1314 = vmul.f32 %v1309, %v470
        %1319 = vrot.lane.b32.xlu0 %v1311, 78
        %v1320 = vpop.permute.xlu0 %1319
        %1321 = vrot.lane.b32.xlu0 %v1312, 78
        %v1322 = vpop.permute.xlu0 %1321
        %1323 = vrot.lane.b32.xlu0 %v1313, 78
        %v1324 = vpop.permute.xlu0 %1323
        %1325 = vrot.lane.b32.xlu0 %v1314, 78
        %v1326 = vpop.permute.xlu0 %1325
        %v1327 = vsel %vm1239, %v1320, %v1322
        %v1328 = vsel %vm1239, %v1322, %v1324
        %v1329 = vsel %vm1239, %v1324, %v1326
        %v1333 = vadd.f32 %v1304, %v1327
        %v1334 = vadd.f32 %v1305, %v1328
        %v1335 = vadd.f32 %v1306, %v1329
        %s1336 = sadd.s32 %s22, 1
        %s1337 = smul.u32 %s1336, 4
        %s1338 = smul.addr %s1337, 4
        %s1339 = scalar_lea.vmem %s182, %s1338
        %v1340 = vld [vmem:[%s1339] sm:$0xff]
        %v1341 = vld [vmem:[%s1339 + $0x8] sm:$0xff]
        %s1342 = scalar_lea.vmem %s1, 72
        %v1343 = vld [vmem:[%s1342] sm:$0xff]
        %1345 = vset.pattern.permute.xlu0 0
        %1346 = vperm.xlu0 %1345, %v1343
        %v1347 = vpop.permute.xlu0 %1346
        %v1351 = vlaneseq
        %v1352 = vshrl.u32 %v1351, 7
        %v1353 = vsub.s32 0, %v1352
        %v1354 = vrot.slane %v1340, %v1353
        %v1355 = vlaneseq
        %v1356 = vshrl.u32 %v1355, 7
        %v1357 = vsub.s32 4, %v1356
        %v1358 = vrot.slane %v1340, %v1357
        %v1359 = vlaneseq
        %v1360 = vshrl.u32 %v1359, 7
        %v1361 = vsub.s32 0, %v1360
        %v1362 = vrot.slane %v1341, %v1361
        %v1366 = vlaneseq
        %v1367 = vshrl.u32 %v1366, 7
        %v1368 = vsub.s32 0, %v1367
        %v1369 = vrot.slane %v1354, %v1368
        %v1370 = vlaneseq
        %v1371 = vshrl.u32 %v1370, 7
        %v1372 = vsub.s32 0, %v1371
        %v1373 = vrot.slane %v1358, %v1372
        %v1374 = vlaneseq
        %v1375 = vshrl.u32 %v1374, 7
        %v1376 = vsub.s32 0, %v1375
        %v1377 = vrot.slane %v1362, %v1376
        %v1378 = vmul.f32 %v1347, %v1369
        %v1379 = vmul.f32 %v1347, %v1373
        %v1380 = vmul.f32 %v1347, %v1377
        %v1381 = vadd.f32 %v1333, %v1378
        %v1382 = vadd.f32 %v1334, %v1379
        %v1383 = vadd.f32 %v1335, %v1380
        %1384 = vset.pattern.permute.xlu0 1
        %1385 = vperm.xlu0 %1384, %v1343
        %v1386 = vpop.permute.xlu0 %1385
        %v1388 = vlaneseq
        %v1389 = vshrl.u32 %v1388, 7
        %v1390 = vsub.s32 1, %v1389
        %v1391 = vrot.slane %v1340, %v1390
        %v1392 = vlaneseq
        %v1393 = vshrl.u32 %v1392, 7
        %v1394 = vsub.s32 5, %v1393
        %v1395 = vrot.slane %v1340, %v1394
        %v1396 = vlaneseq
        %v1397 = vshrl.u32 %v1396, 7
        %v1398 = vsub.s32 1, %v1397
        %v1399 = vrot.slane %v1341, %v1398
        %v1403 = vlaneseq
        %v1404 = vshrl.u32 %v1403, 7
        %v1405 = vsub.s32 1, %v1404
        %v1406 = vrot.slane %v1391, %v1405
        %v1407 = vlaneseq
        %v1408 = vshrl.u32 %v1407, 7
        %v1409 = vsub.s32 1, %v1408
        %v1410 = vrot.slane %v1395, %v1409
        %v1411 = vlaneseq
        %v1412 = vshrl.u32 %v1411, 7
        %v1413 = vsub.s32 1, %v1412
        %v1414 = vrot.slane %v1399, %v1413
        %v1415 = vmul.f32 %v1386, %v1406
        %v1416 = vmul.f32 %v1386, %v1410
        %v1417 = vmul.f32 %v1386, %v1414
        %v1418 = vadd.f32 %v1381, %v1415
        %v1419 = vadd.f32 %v1382, %v1416
        %v1420 = vadd.f32 %v1383, %v1417
        %1421 = vset.pattern.permute.xlu0 2
        %1422 = vperm.xlu0 %1421, %v1343
        %v1423 = vpop.permute.xlu0 %1422
        %v1425 = vlaneseq
        %v1426 = vshrl.u32 %v1425, 7
        %v1427 = vsub.s32 2, %v1426
        %v1428 = vrot.slane %v1340, %v1427
        %v1429 = vlaneseq
        %v1430 = vshrl.u32 %v1429, 7
        %v1431 = vsub.s32 6, %v1430
        %v1432 = vrot.slane %v1340, %v1431
        %v1433 = vlaneseq
        %v1434 = vshrl.u32 %v1433, 7
        %v1435 = vsub.s32 2, %v1434
        %v1436 = vrot.slane %v1341, %v1435
        %v1440 = vlaneseq
        %v1441 = vshrl.u32 %v1440, 7
        %v1442 = vsub.s32 2, %v1441
        %v1443 = vrot.slane %v1428, %v1442
        %v1444 = vlaneseq
        %v1445 = vshrl.u32 %v1444, 7
        %v1446 = vsub.s32 2, %v1445
        %v1447 = vrot.slane %v1432, %v1446
        %v1448 = vlaneseq
        %v1449 = vshrl.u32 %v1448, 7
        %v1450 = vsub.s32 2, %v1449
        %v1451 = vrot.slane %v1436, %v1450
        %v1452 = vmul.f32 %v1423, %v1443
        %v1453 = vmul.f32 %v1423, %v1447
        %v1454 = vmul.f32 %v1423, %v1451
        %v1455 = vadd.f32 %v1418, %v1452
        %v1456 = vadd.f32 %v1419, %v1453
        %v1457 = vadd.f32 %v1420, %v1454
        %1458 = vset.pattern.permute.xlu0 3
        %1459 = vperm.xlu0 %1458, %v1343
        %v1460 = vpop.permute.xlu0 %1459
        %v1462 = vlaneseq
        %v1463 = vshrl.u32 %v1462, 7
        %v1464 = vsub.s32 3, %v1463
        %v1465 = vrot.slane %v1340, %v1464
        %v1466 = vlaneseq
        %v1467 = vshrl.u32 %v1466, 7
        %v1468 = vsub.s32 7, %v1467
        %v1469 = vrot.slane %v1340, %v1468
        %v1470 = vlaneseq
        %v1471 = vshrl.u32 %v1470, 7
        %v1472 = vsub.s32 3, %v1471
        %v1473 = vrot.slane %v1341, %v1472
        %v1477 = vlaneseq
        %v1478 = vshrl.u32 %v1477, 7
        %v1479 = vsub.s32 3, %v1478
        %v1480 = vrot.slane %v1465, %v1479
        %v1481 = vlaneseq
        %v1482 = vshrl.u32 %v1481, 7
        %v1483 = vsub.s32 3, %v1482
        %v1484 = vrot.slane %v1469, %v1483
        %v1485 = vlaneseq
        %v1486 = vshrl.u32 %v1485, 7
        %v1487 = vsub.s32 3, %v1486
        %v1488 = vrot.slane %v1473, %v1487
        %v1489 = vmul.f32 %v1460, %v1480
        %v1490 = vmul.f32 %v1460, %v1484
        %v1491 = vmul.f32 %v1460, %v1488
        %v1492 = vadd.f32 %v1455, %v1489
        %v1493 = vadd.f32 %v1456, %v1490
        %v1494 = vadd.f32 %v1457, %v1491
        %s1495 = scalar_lea.vmem %s1, 80
        %v1496 = vld [vmem:[%s1495] sm:$0xff]
        %1498 = vset.pattern.permute.xlu0 0
        %1499 = vperm.xlu0 %1498, %v1496
        %v1500 = vpop.permute.xlu0 %1499
        %v1502 = vlaneseq
        %v1503 = vshrl.u32 %v1502, 7
        %v1504 = vsub.s32 4, %v1503
        %v1505 = vrot.slane %v1341, %v1504
        %v1507 = vlaneseq
        %v1508 = vshrl.u32 %v1507, 7
        %v1509 = vsub.s32 0, %v1508
        %v1510 = vrot.slane %v1505, %v1509
        %v1511 = vmul.f32 %v1500, %v1369
        %v1512 = vmul.f32 %v1500, %v1373
        %v1513 = vmul.f32 %v1500, %v1377
        %v1514 = vmul.f32 %v1500, %v1510
        %1519 = vrot.lane.b32.xlu0 %v1511, 127
        %v1520 = vpop.permute.xlu0 %1519
        %1521 = vrot.lane.b32.xlu0 %v1512, 127
        %v1522 = vpop.permute.xlu0 %1521
        %1523 = vrot.lane.b32.xlu0 %v1513, 127
        %v1524 = vpop.permute.xlu0 %1523
        %1525 = vrot.lane.b32.xlu0 %v1514, 127
        %v1526 = vpop.permute.xlu0 %1525
        %v1527 = vsel %vm372, %v1520, %v1522
        %v1528 = vsel %vm372, %v1522, %v1524
        %v1529 = vsel %vm372, %v1524, %v1526
        %v1533 = vadd.f32 %v1492, %v1527
        %v1534 = vadd.f32 %v1493, %v1528
        %v1535 = vadd.f32 %v1494, %v1529
        %1536 = vset.pattern.permute.xlu0 1
        %1537 = vperm.xlu0 %1536, %v1496
        %v1538 = vpop.permute.xlu0 %1537
        %v1540 = vlaneseq
        %v1541 = vshrl.u32 %v1540, 7
        %v1542 = vsub.s32 5, %v1541
        %v1543 = vrot.slane %v1341, %v1542
        %v1545 = vlaneseq
        %v1546 = vshrl.u32 %v1545, 7
        %v1547 = vsub.s32 1, %v1546
        %v1548 = vrot.slane %v1543, %v1547
        %v1549 = vmul.f32 %v1538, %v1406
        %v1550 = vmul.f32 %v1538, %v1410
        %v1551 = vmul.f32 %v1538, %v1414
        %v1552 = vmul.f32 %v1538, %v1548
        %1557 = vrot.lane.b32.xlu0 %v1549, 127
        %v1558 = vpop.permute.xlu0 %1557
        %1559 = vrot.lane.b32.xlu0 %v1550, 127
        %v1560 = vpop.permute.xlu0 %1559
        %1561 = vrot.lane.b32.xlu0 %v1551, 127
        %v1562 = vpop.permute.xlu0 %1561
        %1563 = vrot.lane.b32.xlu0 %v1552, 127
        %v1564 = vpop.permute.xlu0 %1563
        %v1565 = vsel %vm372, %v1558, %v1560
        %v1566 = vsel %vm372, %v1560, %v1562
        %v1567 = vsel %vm372, %v1562, %v1564
        %v1571 = vadd.f32 %v1533, %v1565
        %v1572 = vadd.f32 %v1534, %v1566
        %v1573 = vadd.f32 %v1535, %v1567
        %1574 = vset.pattern.permute.xlu0 2
        %1575 = vperm.xlu0 %1574, %v1496
        %v1576 = vpop.permute.xlu0 %1575
        %v1578 = vlaneseq
        %v1579 = vshrl.u32 %v1578, 7
        %v1580 = vsub.s32 6, %v1579
        %v1581 = vrot.slane %v1341, %v1580
        %v1583 = vlaneseq
        %v1584 = vshrl.u32 %v1583, 7
        %v1585 = vsub.s32 2, %v1584
        %v1586 = vrot.slane %v1581, %v1585
        %v1587 = vmul.f32 %v1576, %v1443
        %v1588 = vmul.f32 %v1576, %v1447
        %v1589 = vmul.f32 %v1576, %v1451
        %v1590 = vmul.f32 %v1576, %v1586
        %1595 = vrot.lane.b32.xlu0 %v1587, 127
        %v1596 = vpop.permute.xlu0 %1595
        %1597 = vrot.lane.b32.xlu0 %v1588, 127
        %v1598 = vpop.permute.xlu0 %1597
        %1599 = vrot.lane.b32.xlu0 %v1589, 127
        %v1600 = vpop.permute.xlu0 %1599
        %1601 = vrot.lane.b32.xlu0 %v1590, 127
        %v1602 = vpop.permute.xlu0 %1601
        %v1603 = vsel %vm372, %v1596, %v1598
        %v1604 = vsel %vm372, %v1598, %v1600
        %v1605 = vsel %vm372, %v1600, %v1602
        %v1609 = vadd.f32 %v1571, %v1603
        %v1610 = vadd.f32 %v1572, %v1604
        %v1611 = vadd.f32 %v1573, %v1605
        %1612 = vset.pattern.permute.xlu0 3
        %1613 = vperm.xlu0 %1612, %v1496
        %v1614 = vpop.permute.xlu0 %1613
        %v1616 = vlaneseq
        %v1617 = vshrl.u32 %v1616, 7
        %v1618 = vsub.s32 7, %v1617
        %v1619 = vrot.slane %v1341, %v1618
        %v1621 = vlaneseq
        %v1622 = vshrl.u32 %v1621, 7
        %v1623 = vsub.s32 3, %v1622
        %v1624 = vrot.slane %v1619, %v1623
        %v1625 = vmul.f32 %v1614, %v1480
        %v1626 = vmul.f32 %v1614, %v1484
        %v1627 = vmul.f32 %v1614, %v1488
        %v1628 = vmul.f32 %v1614, %v1624
        %1633 = vrot.lane.b32.xlu0 %v1625, 127
        %v1634 = vpop.permute.xlu0 %1633
        %1635 = vrot.lane.b32.xlu0 %v1626, 127
        %v1636 = vpop.permute.xlu0 %1635
        %1637 = vrot.lane.b32.xlu0 %v1627, 127
        %v1638 = vpop.permute.xlu0 %1637
        %1639 = vrot.lane.b32.xlu0 %v1628, 127
        %v1640 = vpop.permute.xlu0 %1639
        %v1641 = vsel %vm372, %v1634, %v1636
        %v1642 = vsel %vm372, %v1636, %v1638
        %v1643 = vsel %vm372, %v1638, %v1640
        %v1647 = vadd.f32 %v1609, %v1641
        %v1648 = vadd.f32 %v1610, %v1642
        %v1649 = vadd.f32 %v1611, %v1643
        %s1650 = scalar_lea.vmem %s1, 88
        %v1651 = vld [vmem:[%s1650] sm:$0xff]
        %1653 = vset.pattern.permute.xlu0 0
        %1654 = vperm.xlu0 %1653, %v1651
        %v1655 = vpop.permute.xlu0 %1654
        %v1657 = vmul.f32 %v1655, %v1369
        %v1658 = vmul.f32 %v1655, %v1373
        %v1659 = vmul.f32 %v1655, %v1377
        %v1660 = vmul.f32 %v1655, %v1510
        %1665 = vrot.lane.b32.xlu0 %v1657, 126
        %v1666 = vpop.permute.xlu0 %1665
        %1667 = vrot.lane.b32.xlu0 %v1658, 126
        %v1668 = vpop.permute.xlu0 %1667
        %1669 = vrot.lane.b32.xlu0 %v1659, 126
        %v1670 = vpop.permute.xlu0 %1669
        %1671 = vrot.lane.b32.xlu0 %v1660, 126
        %v1672 = vpop.permute.xlu0 %1671
        %v1673 = vsel %vm519, %v1666, %v1668
        %v1674 = vsel %vm519, %v1668, %v1670
        %v1675 = vsel %vm519, %v1670, %v1672
        %v1679 = vadd.f32 %v1647, %v1673
        %v1680 = vadd.f32 %v1648, %v1674
        %v1681 = vadd.f32 %v1649, %v1675
        %1682 = vset.pattern.permute.xlu0 1
        %1683 = vperm.xlu0 %1682, %v1651
        %v1684 = vpop.permute.xlu0 %1683
        %v1686 = vmul.f32 %v1684, %v1406
        %v1687 = vmul.f32 %v1684, %v1410
        %v1688 = vmul.f32 %v1684, %v1414
        %v1689 = vmul.f32 %v1684, %v1548
        %1694 = vrot.lane.b32.xlu0 %v1686, 126
        %v1695 = vpop.permute.xlu0 %1694
        %1696 = vrot.lane.b32.xlu0 %v1687, 126
        %v1697 = vpop.permute.xlu0 %1696
        %1698 = vrot.lane.b32.xlu0 %v1688, 126
        %v1699 = vpop.permute.xlu0 %1698
        %1700 = vrot.lane.b32.xlu0 %v1689, 126
        %v1701 = vpop.permute.xlu0 %1700
        %v1702 = vsel %vm519, %v1695, %v1697
        %v1703 = vsel %vm519, %v1697, %v1699
        %v1704 = vsel %vm519, %v1699, %v1701
        %v1708 = vadd.f32 %v1679, %v1702
        %v1709 = vadd.f32 %v1680, %v1703
        %v1710 = vadd.f32 %v1681, %v1704
        %1711 = vset.pattern.permute.xlu0 2
        %1712 = vperm.xlu0 %1711, %v1651
        %v1713 = vpop.permute.xlu0 %1712
        %v1715 = vmul.f32 %v1713, %v1443
        %v1716 = vmul.f32 %v1713, %v1447
        %v1717 = vmul.f32 %v1713, %v1451
        %v1718 = vmul.f32 %v1713, %v1586
        %1723 = vrot.lane.b32.xlu0 %v1715, 126
        %v1724 = vpop.permute.xlu0 %1723
        %1725 = vrot.lane.b32.xlu0 %v1716, 126
        %v1726 = vpop.permute.xlu0 %1725
        %1727 = vrot.lane.b32.xlu0 %v1717, 126
        %v1728 = vpop.permute.xlu0 %1727
        %1729 = vrot.lane.b32.xlu0 %v1718, 126
        %v1730 = vpop.permute.xlu0 %1729
        %v1731 = vsel %vm519, %v1724, %v1726
        %v1732 = vsel %vm519, %v1726, %v1728
        %v1733 = vsel %vm519, %v1728, %v1730
        %v1737 = vadd.f32 %v1708, %v1731
        %v1738 = vadd.f32 %v1709, %v1732
        %v1739 = vadd.f32 %v1710, %v1733
        %1740 = vset.pattern.permute.xlu0 3
        %1741 = vperm.xlu0 %1740, %v1651
        %v1742 = vpop.permute.xlu0 %1741
        %v1744 = vmul.f32 %v1742, %v1480
        %v1745 = vmul.f32 %v1742, %v1484
        %v1746 = vmul.f32 %v1742, %v1488
        %v1747 = vmul.f32 %v1742, %v1624
        %1752 = vrot.lane.b32.xlu0 %v1744, 126
        %v1753 = vpop.permute.xlu0 %1752
        %1754 = vrot.lane.b32.xlu0 %v1745, 126
        %v1755 = vpop.permute.xlu0 %1754
        %1756 = vrot.lane.b32.xlu0 %v1746, 126
        %v1757 = vpop.permute.xlu0 %1756
        %1758 = vrot.lane.b32.xlu0 %v1747, 126
        %v1759 = vpop.permute.xlu0 %1758
        %v1760 = vsel %vm519, %v1753, %v1755
        %v1761 = vsel %vm519, %v1755, %v1757
        %v1762 = vsel %vm519, %v1757, %v1759
        %v1766 = vadd.f32 %v1737, %v1760
        %v1767 = vadd.f32 %v1738, %v1761
        %v1768 = vadd.f32 %v1739, %v1762
        %s1769 = scalar_lea.vmem %s1, 96
        %v1770 = vld [vmem:[%s1769] sm:$0xff]
        %1772 = vset.pattern.permute.xlu0 0
        %1773 = vperm.xlu0 %1772, %v1770
        %v1774 = vpop.permute.xlu0 %1773
        %v1776 = vmul.f32 %v1774, %v1369
        %v1777 = vmul.f32 %v1774, %v1373
        %v1778 = vmul.f32 %v1774, %v1377
        %v1779 = vmul.f32 %v1774, %v1510
        %1784 = vrot.lane.b32.xlu0 %v1776, 104
        %v1785 = vpop.permute.xlu0 %1784
        %1786 = vrot.lane.b32.xlu0 %v1777, 104
        %v1787 = vpop.permute.xlu0 %1786
        %1788 = vrot.lane.b32.xlu0 %v1778, 104
        %v1789 = vpop.permute.xlu0 %1788
        %1790 = vrot.lane.b32.xlu0 %v1779, 104
        %v1791 = vpop.permute.xlu0 %1790
        %v1792 = vsel %vm639, %v1785, %v1787
        %v1793 = vsel %vm639, %v1787, %v1789
        %v1794 = vsel %vm639, %v1789, %v1791
        %v1798 = vadd.f32 %v1766, %v1792
        %v1799 = vadd.f32 %v1767, %v1793
        %v1800 = vadd.f32 %v1768, %v1794
        %1801 = vset.pattern.permute.xlu0 1
        %1802 = vperm.xlu0 %1801, %v1770
        %v1803 = vpop.permute.xlu0 %1802
        %v1805 = vmul.f32 %v1803, %v1406
        %v1806 = vmul.f32 %v1803, %v1410
        %v1807 = vmul.f32 %v1803, %v1414
        %v1808 = vmul.f32 %v1803, %v1548
        %1813 = vrot.lane.b32.xlu0 %v1805, 104
        %v1814 = vpop.permute.xlu0 %1813
        %1815 = vrot.lane.b32.xlu0 %v1806, 104
        %v1816 = vpop.permute.xlu0 %1815
        %1817 = vrot.lane.b32.xlu0 %v1807, 104
        %v1818 = vpop.permute.xlu0 %1817
        %1819 = vrot.lane.b32.xlu0 %v1808, 104
        %v1820 = vpop.permute.xlu0 %1819
        %v1821 = vsel %vm639, %v1814, %v1816
        %v1822 = vsel %vm639, %v1816, %v1818
        %v1823 = vsel %vm639, %v1818, %v1820
        %v1827 = vadd.f32 %v1798, %v1821
        %v1828 = vadd.f32 %v1799, %v1822
        %v1829 = vadd.f32 %v1800, %v1823
        %1830 = vset.pattern.permute.xlu0 2
        %1831 = vperm.xlu0 %1830, %v1770
        %v1832 = vpop.permute.xlu0 %1831
        %v1834 = vmul.f32 %v1832, %v1443
        %v1835 = vmul.f32 %v1832, %v1447
        %v1836 = vmul.f32 %v1832, %v1451
        %v1837 = vmul.f32 %v1832, %v1586
        %1842 = vrot.lane.b32.xlu0 %v1834, 104
        %v1843 = vpop.permute.xlu0 %1842
        %1844 = vrot.lane.b32.xlu0 %v1835, 104
        %v1845 = vpop.permute.xlu0 %1844
        %1846 = vrot.lane.b32.xlu0 %v1836, 104
        %v1847 = vpop.permute.xlu0 %1846
        %1848 = vrot.lane.b32.xlu0 %v1837, 104
        %v1849 = vpop.permute.xlu0 %1848
        %v1850 = vsel %vm639, %v1843, %v1845
        %v1851 = vsel %vm639, %v1845, %v1847
        %v1852 = vsel %vm639, %v1847, %v1849
        %v1856 = vadd.f32 %v1827, %v1850
        %v1857 = vadd.f32 %v1828, %v1851
        %v1858 = vadd.f32 %v1829, %v1852
        %1859 = vset.pattern.permute.xlu0 3
        %1860 = vperm.xlu0 %1859, %v1770
        %v1861 = vpop.permute.xlu0 %1860
        %v1863 = vmul.f32 %v1861, %v1480
        %v1864 = vmul.f32 %v1861, %v1484
        %v1865 = vmul.f32 %v1861, %v1488
        %v1866 = vmul.f32 %v1861, %v1624
        %1871 = vrot.lane.b32.xlu0 %v1863, 104
        %v1872 = vpop.permute.xlu0 %1871
        %1873 = vrot.lane.b32.xlu0 %v1864, 104
        %v1874 = vpop.permute.xlu0 %1873
        %1875 = vrot.lane.b32.xlu0 %v1865, 104
        %v1876 = vpop.permute.xlu0 %1875
        %1877 = vrot.lane.b32.xlu0 %v1866, 104
        %v1878 = vpop.permute.xlu0 %1877
        %v1879 = vsel %vm639, %v1872, %v1874
        %v1880 = vsel %vm639, %v1874, %v1876
        %v1881 = vsel %vm639, %v1876, %v1878
        %v1885 = vadd.f32 %v1856, %v1879
        %v1886 = vadd.f32 %v1857, %v1880
        %v1887 = vadd.f32 %v1858, %v1881
        %s1888 = scalar_lea.vmem %s1, 104
        %v1889 = vld [vmem:[%s1888] sm:$0xff]
        %1891 = vset.pattern.permute.xlu0 0
        %1892 = vperm.xlu0 %1891, %v1889
        %v1893 = vpop.permute.xlu0 %1892
        %v1895 = vmul.f32 %v1893, %v1369
        %v1896 = vmul.f32 %v1893, %v1373
        %v1897 = vmul.f32 %v1893, %v1377
        %v1898 = vmul.f32 %v1893, %v1510
        %1903 = vrot.lane.b32.xlu0 %v1895, 103
        %v1904 = vpop.permute.xlu0 %1903
        %1905 = vrot.lane.b32.xlu0 %v1896, 103
        %v1906 = vpop.permute.xlu0 %1905
        %1907 = vrot.lane.b32.xlu0 %v1897, 103
        %v1908 = vpop.permute.xlu0 %1907
        %1909 = vrot.lane.b32.xlu0 %v1898, 103
        %v1910 = vpop.permute.xlu0 %1909
        %v1911 = vsel %vm759, %v1904, %v1906
        %v1912 = vsel %vm759, %v1906, %v1908
        %v1913 = vsel %vm759, %v1908, %v1910
        %v1917 = vadd.f32 %v1885, %v1911
        %v1918 = vadd.f32 %v1886, %v1912
        %v1919 = vadd.f32 %v1887, %v1913
        %1920 = vset.pattern.permute.xlu0 1
        %1921 = vperm.xlu0 %1920, %v1889
        %v1922 = vpop.permute.xlu0 %1921
        %v1924 = vmul.f32 %v1922, %v1406
        %v1925 = vmul.f32 %v1922, %v1410
        %v1926 = vmul.f32 %v1922, %v1414
        %v1927 = vmul.f32 %v1922, %v1548
        %1932 = vrot.lane.b32.xlu0 %v1924, 103
        %v1933 = vpop.permute.xlu0 %1932
        %1934 = vrot.lane.b32.xlu0 %v1925, 103
        %v1935 = vpop.permute.xlu0 %1934
        %1936 = vrot.lane.b32.xlu0 %v1926, 103
        %v1937 = vpop.permute.xlu0 %1936
        %1938 = vrot.lane.b32.xlu0 %v1927, 103
        %v1939 = vpop.permute.xlu0 %1938
        %v1940 = vsel %vm759, %v1933, %v1935
        %v1941 = vsel %vm759, %v1935, %v1937
        %v1942 = vsel %vm759, %v1937, %v1939
        %v1946 = vadd.f32 %v1917, %v1940
        %v1947 = vadd.f32 %v1918, %v1941
        %v1948 = vadd.f32 %v1919, %v1942
        %1949 = vset.pattern.permute.xlu0 2
        %1950 = vperm.xlu0 %1949, %v1889
        %v1951 = vpop.permute.xlu0 %1950
        %v1953 = vmul.f32 %v1951, %v1443
        %v1954 = vmul.f32 %v1951, %v1447
        %v1955 = vmul.f32 %v1951, %v1451
        %v1956 = vmul.f32 %v1951, %v1586
        %1961 = vrot.lane.b32.xlu0 %v1953, 103
        %v1962 = vpop.permute.xlu0 %1961
        %1963 = vrot.lane.b32.xlu0 %v1954, 103
        %v1964 = vpop.permute.xlu0 %1963
        %1965 = vrot.lane.b32.xlu0 %v1955, 103
        %v1966 = vpop.permute.xlu0 %1965
        %1967 = vrot.lane.b32.xlu0 %v1956, 103
        %v1968 = vpop.permute.xlu0 %1967
        %v1969 = vsel %vm759, %v1962, %v1964
        %v1970 = vsel %vm759, %v1964, %v1966
        %v1971 = vsel %vm759, %v1966, %v1968
        %v1975 = vadd.f32 %v1946, %v1969
        %v1976 = vadd.f32 %v1947, %v1970
        %v1977 = vadd.f32 %v1948, %v1971
        %1978 = vset.pattern.permute.xlu0 3
        %1979 = vperm.xlu0 %1978, %v1889
        %v1980 = vpop.permute.xlu0 %1979
        %v1982 = vmul.f32 %v1980, %v1480
        %v1983 = vmul.f32 %v1980, %v1484
        %v1984 = vmul.f32 %v1980, %v1488
        %v1985 = vmul.f32 %v1980, %v1624
        %1990 = vrot.lane.b32.xlu0 %v1982, 103
        %v1991 = vpop.permute.xlu0 %1990
        %1992 = vrot.lane.b32.xlu0 %v1983, 103
        %v1993 = vpop.permute.xlu0 %1992
        %1994 = vrot.lane.b32.xlu0 %v1984, 103
        %v1995 = vpop.permute.xlu0 %1994
        %1996 = vrot.lane.b32.xlu0 %v1985, 103
        %v1997 = vpop.permute.xlu0 %1996
        %v1998 = vsel %vm759, %v1991, %v1993
        %v1999 = vsel %vm759, %v1993, %v1995
        %v2000 = vsel %vm759, %v1995, %v1997
        %v2004 = vadd.f32 %v1975, %v1998
        %v2005 = vadd.f32 %v1976, %v1999
        %v2006 = vadd.f32 %v1977, %v2000
        %s2007 = scalar_lea.vmem %s1, 112
        %v2008 = vld [vmem:[%s2007] sm:$0xff]
        %2010 = vset.pattern.permute.xlu0 0
        %2011 = vperm.xlu0 %2010, %v2008
        %v2012 = vpop.permute.xlu0 %2011
        %v2014 = vmul.f32 %v2012, %v1369
        %v2015 = vmul.f32 %v2012, %v1373
        %v2016 = vmul.f32 %v2012, %v1377
        %v2017 = vmul.f32 %v2012, %v1510
        %2022 = vrot.lane.b32.xlu0 %v2014, 102
        %v2023 = vpop.permute.xlu0 %2022
        %2024 = vrot.lane.b32.xlu0 %v2015, 102
        %v2025 = vpop.permute.xlu0 %2024
        %2026 = vrot.lane.b32.xlu0 %v2016, 102
        %v2027 = vpop.permute.xlu0 %2026
        %2028 = vrot.lane.b32.xlu0 %v2017, 102
        %v2029 = vpop.permute.xlu0 %2028
        %v2030 = vsel %vm879, %v2023, %v2025
        %v2031 = vsel %vm879, %v2025, %v2027
        %v2032 = vsel %vm879, %v2027, %v2029
        %v2036 = vadd.f32 %v2004, %v2030
        %v2037 = vadd.f32 %v2005, %v2031
        %v2038 = vadd.f32 %v2006, %v2032
        %2039 = vset.pattern.permute.xlu0 1
        %2040 = vperm.xlu0 %2039, %v2008
        %v2041 = vpop.permute.xlu0 %2040
        %v2043 = vmul.f32 %v2041, %v1406
        %v2044 = vmul.f32 %v2041, %v1410
        %v2045 = vmul.f32 %v2041, %v1414
        %v2046 = vmul.f32 %v2041, %v1548
        %2051 = vrot.lane.b32.xlu0 %v2043, 102
        %v2052 = vpop.permute.xlu0 %2051
        %2053 = vrot.lane.b32.xlu0 %v2044, 102
        %v2054 = vpop.permute.xlu0 %2053
        %2055 = vrot.lane.b32.xlu0 %v2045, 102
        %v2056 = vpop.permute.xlu0 %2055
        %2057 = vrot.lane.b32.xlu0 %v2046, 102
        %v2058 = vpop.permute.xlu0 %2057
        %v2059 = vsel %vm879, %v2052, %v2054
        %v2060 = vsel %vm879, %v2054, %v2056
        %v2061 = vsel %vm879, %v2056, %v2058
        %v2065 = vadd.f32 %v2036, %v2059
        %v2066 = vadd.f32 %v2037, %v2060
        %v2067 = vadd.f32 %v2038, %v2061
        %2068 = vset.pattern.permute.xlu0 2
        %2069 = vperm.xlu0 %2068, %v2008
        %v2070 = vpop.permute.xlu0 %2069
        %v2072 = vmul.f32 %v2070, %v1443
        %v2073 = vmul.f32 %v2070, %v1447
        %v2074 = vmul.f32 %v2070, %v1451
        %v2075 = vmul.f32 %v2070, %v1586
        %2080 = vrot.lane.b32.xlu0 %v2072, 102
        %v2081 = vpop.permute.xlu0 %2080
        %2082 = vrot.lane.b32.xlu0 %v2073, 102
        %v2083 = vpop.permute.xlu0 %2082
        %2084 = vrot.lane.b32.xlu0 %v2074, 102
        %v2085 = vpop.permute.xlu0 %2084
        %2086 = vrot.lane.b32.xlu0 %v2075, 102
        %v2087 = vpop.permute.xlu0 %2086
        %v2088 = vsel %vm879, %v2081, %v2083
        %v2089 = vsel %vm879, %v2083, %v2085
        %v2090 = vsel %vm879, %v2085, %v2087
        %v2094 = vadd.f32 %v2065, %v2088
        %v2095 = vadd.f32 %v2066, %v2089
        %v2096 = vadd.f32 %v2067, %v2090
        %2097 = vset.pattern.permute.xlu0 3
        %2098 = vperm.xlu0 %2097, %v2008
        %v2099 = vpop.permute.xlu0 %2098
        %v2101 = vmul.f32 %v2099, %v1480
        %v2102 = vmul.f32 %v2099, %v1484
        %v2103 = vmul.f32 %v2099, %v1488
        %v2104 = vmul.f32 %v2099, %v1624
        %2109 = vrot.lane.b32.xlu0 %v2101, 102
        %v2110 = vpop.permute.xlu0 %2109
        %2111 = vrot.lane.b32.xlu0 %v2102, 102
        %v2112 = vpop.permute.xlu0 %2111
        %2113 = vrot.lane.b32.xlu0 %v2103, 102
        %v2114 = vpop.permute.xlu0 %2113
        %2115 = vrot.lane.b32.xlu0 %v2104, 102
        %v2116 = vpop.permute.xlu0 %2115
        %v2117 = vsel %vm879, %v2110, %v2112
        %v2118 = vsel %vm879, %v2112, %v2114
        %v2119 = vsel %vm879, %v2114, %v2116
        %v2123 = vadd.f32 %v2094, %v2117
        %v2124 = vadd.f32 %v2095, %v2118
        %v2125 = vadd.f32 %v2096, %v2119
        %s2126 = scalar_lea.vmem %s1, 120
        %v2127 = vld [vmem:[%s2126] sm:$0xff]
        %2129 = vset.pattern.permute.xlu0 0
        %2130 = vperm.xlu0 %2129, %v2127
        %v2131 = vpop.permute.xlu0 %2130
        %v2133 = vmul.f32 %v2131, %v1369
        %v2134 = vmul.f32 %v2131, %v1373
        %v2135 = vmul.f32 %v2131, %v1377
        %v2136 = vmul.f32 %v2131, %v1510
        %2141 = vrot.lane.b32.xlu0 %v2133, 80
        %v2142 = vpop.permute.xlu0 %2141
        %2143 = vrot.lane.b32.xlu0 %v2134, 80
        %v2144 = vpop.permute.xlu0 %2143
        %2145 = vrot.lane.b32.xlu0 %v2135, 80
        %v2146 = vpop.permute.xlu0 %2145
        %2147 = vrot.lane.b32.xlu0 %v2136, 80
        %v2148 = vpop.permute.xlu0 %2147
        %v2149 = vsel %vm999, %v2142, %v2144
        %v2150 = vsel %vm999, %v2144, %v2146
        %v2151 = vsel %vm999, %v2146, %v2148
        %v2155 = vadd.f32 %v2123, %v2149
        %v2156 = vadd.f32 %v2124, %v2150
        %v2157 = vadd.f32 %v2125, %v2151
        %2158 = vset.pattern.permute.xlu0 1
        %2159 = vperm.xlu0 %2158, %v2127
        %v2160 = vpop.permute.xlu0 %2159
        %v2162 = vmul.f32 %v2160, %v1406
        %v2163 = vmul.f32 %v2160, %v1410
        %v2164 = vmul.f32 %v2160, %v1414
        %v2165 = vmul.f32 %v2160, %v1548
        %2170 = vrot.lane.b32.xlu0 %v2162, 80
        %v2171 = vpop.permute.xlu0 %2170
        %2172 = vrot.lane.b32.xlu0 %v2163, 80
        %v2173 = vpop.permute.xlu0 %2172
        %2174 = vrot.lane.b32.xlu0 %v2164, 80
        %v2175 = vpop.permute.xlu0 %2174
        %2176 = vrot.lane.b32.xlu0 %v2165, 80
        %v2177 = vpop.permute.xlu0 %2176
        %v2178 = vsel %vm999, %v2171, %v2173
        %v2179 = vsel %vm999, %v2173, %v2175
        %v2180 = vsel %vm999, %v2175, %v2177
        %v2184 = vadd.f32 %v2155, %v2178
        %v2185 = vadd.f32 %v2156, %v2179
        %v2186 = vadd.f32 %v2157, %v2180
        %2187 = vset.pattern.permute.xlu0 2
        %2188 = vperm.xlu0 %2187, %v2127
        %v2189 = vpop.permute.xlu0 %2188
        %v2191 = vmul.f32 %v2189, %v1443
        %v2192 = vmul.f32 %v2189, %v1447
        %v2193 = vmul.f32 %v2189, %v1451
        %v2194 = vmul.f32 %v2189, %v1586
        %2199 = vrot.lane.b32.xlu0 %v2191, 80
        %v2200 = vpop.permute.xlu0 %2199
        %2201 = vrot.lane.b32.xlu0 %v2192, 80
        %v2202 = vpop.permute.xlu0 %2201
        %2203 = vrot.lane.b32.xlu0 %v2193, 80
        %v2204 = vpop.permute.xlu0 %2203
        %2205 = vrot.lane.b32.xlu0 %v2194, 80
        %v2206 = vpop.permute.xlu0 %2205
        %v2207 = vsel %vm999, %v2200, %v2202
        %v2208 = vsel %vm999, %v2202, %v2204
        %v2209 = vsel %vm999, %v2204, %v2206
        %v2213 = vadd.f32 %v2184, %v2207
        %v2214 = vadd.f32 %v2185, %v2208
        %v2215 = vadd.f32 %v2186, %v2209
        %2216 = vset.pattern.permute.xlu0 3
        %2217 = vperm.xlu0 %2216, %v2127
        %v2218 = vpop.permute.xlu0 %2217
        %v2220 = vmul.f32 %v2218, %v1480
        %v2221 = vmul.f32 %v2218, %v1484
        %v2222 = vmul.f32 %v2218, %v1488
        %v2223 = vmul.f32 %v2218, %v1624
        %2228 = vrot.lane.b32.xlu0 %v2220, 80
        %v2229 = vpop.permute.xlu0 %2228
        %2230 = vrot.lane.b32.xlu0 %v2221, 80
        %v2231 = vpop.permute.xlu0 %2230
        %2232 = vrot.lane.b32.xlu0 %v2222, 80
        %v2233 = vpop.permute.xlu0 %2232
        %2234 = vrot.lane.b32.xlu0 %v2223, 80
        %v2235 = vpop.permute.xlu0 %2234
        %v2236 = vsel %vm999, %v2229, %v2231
        %v2237 = vsel %vm999, %v2231, %v2233
        %v2238 = vsel %vm999, %v2233, %v2235
        %v2242 = vadd.f32 %v2213, %v2236
        %v2243 = vadd.f32 %v2214, %v2237
        %v2244 = vadd.f32 %v2215, %v2238
        %s2245 = scalar_lea.vmem %s1, 128
        %v2246 = vld [vmem:[%s2245] sm:$0xff]
        %2248 = vset.pattern.permute.xlu0 0
        %2249 = vperm.xlu0 %2248, %v2246
        %v2250 = vpop.permute.xlu0 %2249
        %v2252 = vmul.f32 %v2250, %v1369
        %v2253 = vmul.f32 %v2250, %v1373
        %v2254 = vmul.f32 %v2250, %v1377
        %v2255 = vmul.f32 %v2250, %v1510
        %2260 = vrot.lane.b32.xlu0 %v2252, 79
        %v2261 = vpop.permute.xlu0 %2260
        %2262 = vrot.lane.b32.xlu0 %v2253, 79
        %v2263 = vpop.permute.xlu0 %2262
        %2264 = vrot.lane.b32.xlu0 %v2254, 79
        %v2265 = vpop.permute.xlu0 %2264
        %2266 = vrot.lane.b32.xlu0 %v2255, 79
        %v2267 = vpop.permute.xlu0 %2266
        %v2268 = vsel %vm1119, %v2261, %v2263
        %v2269 = vsel %vm1119, %v2263, %v2265
        %v2270 = vsel %vm1119, %v2265, %v2267
        %v2274 = vadd.f32 %v2242, %v2268
        %v2275 = vadd.f32 %v2243, %v2269
        %v2276 = vadd.f32 %v2244, %v2270
        %2277 = vset.pattern.permute.xlu0 1
        %2278 = vperm.xlu0 %2277, %v2246
        %v2279 = vpop.permute.xlu0 %2278
        %v2281 = vmul.f32 %v2279, %v1406
        %v2282 = vmul.f32 %v2279, %v1410
        %v2283 = vmul.f32 %v2279, %v1414
        %v2284 = vmul.f32 %v2279, %v1548
        %2289 = vrot.lane.b32.xlu0 %v2281, 79
        %v2290 = vpop.permute.xlu0 %2289
        %2291 = vrot.lane.b32.xlu0 %v2282, 79
        %v2292 = vpop.permute.xlu0 %2291
        %2293 = vrot.lane.b32.xlu0 %v2283, 79
        %v2294 = vpop.permute.xlu0 %2293
        %2295 = vrot.lane.b32.xlu0 %v2284, 79
        %v2296 = vpop.permute.xlu0 %2295
        %v2297 = vsel %vm1119, %v2290, %v2292
        %v2298 = vsel %vm1119, %v2292, %v2294
        %v2299 = vsel %vm1119, %v2294, %v2296
        %v2303 = vadd.f32 %v2274, %v2297
        %v2304 = vadd.f32 %v2275, %v2298
        %v2305 = vadd.f32 %v2276, %v2299
        %2306 = vset.pattern.permute.xlu0 2
        %2307 = vperm.xlu0 %2306, %v2246
        %v2308 = vpop.permute.xlu0 %2307
        %v2310 = vmul.f32 %v2308, %v1443
        %v2311 = vmul.f32 %v2308, %v1447
        %v2312 = vmul.f32 %v2308, %v1451
        %v2313 = vmul.f32 %v2308, %v1586
        %2318 = vrot.lane.b32.xlu0 %v2310, 79
        %v2319 = vpop.permute.xlu0 %2318
        %2320 = vrot.lane.b32.xlu0 %v2311, 79
        %v2321 = vpop.permute.xlu0 %2320
        %2322 = vrot.lane.b32.xlu0 %v2312, 79
        %v2323 = vpop.permute.xlu0 %2322
        %2324 = vrot.lane.b32.xlu0 %v2313, 79
        %v2325 = vpop.permute.xlu0 %2324
        %v2326 = vsel %vm1119, %v2319, %v2321
        %v2327 = vsel %vm1119, %v2321, %v2323
        %v2328 = vsel %vm1119, %v2323, %v2325
        %v2332 = vadd.f32 %v2303, %v2326
        %v2333 = vadd.f32 %v2304, %v2327
        %v2334 = vadd.f32 %v2305, %v2328
        %2335 = vset.pattern.permute.xlu0 3
        %2336 = vperm.xlu0 %2335, %v2246
        %v2337 = vpop.permute.xlu0 %2336
        %v2339 = vmul.f32 %v2337, %v1480
        %v2340 = vmul.f32 %v2337, %v1484
        %v2341 = vmul.f32 %v2337, %v1488
        %v2342 = vmul.f32 %v2337, %v1624
        %2347 = vrot.lane.b32.xlu0 %v2339, 79
        %v2348 = vpop.permute.xlu0 %2347
        %2349 = vrot.lane.b32.xlu0 %v2340, 79
        %v2350 = vpop.permute.xlu0 %2349
        %2351 = vrot.lane.b32.xlu0 %v2341, 79
        %v2352 = vpop.permute.xlu0 %2351
        %2353 = vrot.lane.b32.xlu0 %v2342, 79
        %v2354 = vpop.permute.xlu0 %2353
        %v2355 = vsel %vm1119, %v2348, %v2350
        %v2356 = vsel %vm1119, %v2350, %v2352
        %v2357 = vsel %vm1119, %v2352, %v2354
        %v2361 = vadd.f32 %v2332, %v2355
        %v2362 = vadd.f32 %v2333, %v2356
        %v2363 = vadd.f32 %v2334, %v2357
        %s2364 = scalar_lea.vmem %s1, 136
        %v2365 = vld [vmem:[%s2364] sm:$0xff]
        %2367 = vset.pattern.permute.xlu0 0
        %2368 = vperm.xlu0 %2367, %v2365
        %v2369 = vpop.permute.xlu0 %2368
        %v2371 = vmul.f32 %v2369, %v1369
        %v2372 = vmul.f32 %v2369, %v1373
        %v2373 = vmul.f32 %v2369, %v1377
        %v2374 = vmul.f32 %v2369, %v1510
        %2379 = vrot.lane.b32.xlu0 %v2371, 78
        %v2380 = vpop.permute.xlu0 %2379
        %2381 = vrot.lane.b32.xlu0 %v2372, 78
        %v2382 = vpop.permute.xlu0 %2381
        %2383 = vrot.lane.b32.xlu0 %v2373, 78
        %v2384 = vpop.permute.xlu0 %2383
        %2385 = vrot.lane.b32.xlu0 %v2374, 78
        %v2386 = vpop.permute.xlu0 %2385
        %v2387 = vsel %vm1239, %v2380, %v2382
        %v2388 = vsel %vm1239, %v2382, %v2384
        %v2389 = vsel %vm1239, %v2384, %v2386
        %v2393 = vadd.f32 %v2361, %v2387
        %v2394 = vadd.f32 %v2362, %v2388
        %v2395 = vadd.f32 %v2363, %v2389
        %2396 = vset.pattern.permute.xlu0 1
        %2397 = vperm.xlu0 %2396, %v2365
        %v2398 = vpop.permute.xlu0 %2397
        %v2400 = vmul.f32 %v2398, %v1406
        %v2401 = vmul.f32 %v2398, %v1410
        %v2402 = vmul.f32 %v2398, %v1414
        %v2403 = vmul.f32 %v2398, %v1548
        %2408 = vrot.lane.b32.xlu0 %v2400, 78
        %v2409 = vpop.permute.xlu0 %2408
        %2410 = vrot.lane.b32.xlu0 %v2401, 78
        %v2411 = vpop.permute.xlu0 %2410
        %2412 = vrot.lane.b32.xlu0 %v2402, 78
        %v2413 = vpop.permute.xlu0 %2412
        %2414 = vrot.lane.b32.xlu0 %v2403, 78
        %v2415 = vpop.permute.xlu0 %2414
        %v2416 = vsel %vm1239, %v2409, %v2411
        %v2417 = vsel %vm1239, %v2411, %v2413
        %v2418 = vsel %vm1239, %v2413, %v2415
        %v2422 = vadd.f32 %v2393, %v2416
        %v2423 = vadd.f32 %v2394, %v2417
        %v2424 = vadd.f32 %v2395, %v2418
        %2425 = vset.pattern.permute.xlu0 2
        %2426 = vperm.xlu0 %2425, %v2365
        %v2427 = vpop.permute.xlu0 %2426
        %v2429 = vmul.f32 %v2427, %v1443
        %v2430 = vmul.f32 %v2427, %v1447
        %v2431 = vmul.f32 %v2427, %v1451
        %v2432 = vmul.f32 %v2427, %v1586
        %2437 = vrot.lane.b32.xlu0 %v2429, 78
        %v2438 = vpop.permute.xlu0 %2437
        %2439 = vrot.lane.b32.xlu0 %v2430, 78
        %v2440 = vpop.permute.xlu0 %2439
        %2441 = vrot.lane.b32.xlu0 %v2431, 78
        %v2442 = vpop.permute.xlu0 %2441
        %2443 = vrot.lane.b32.xlu0 %v2432, 78
        %v2444 = vpop.permute.xlu0 %2443
        %v2445 = vsel %vm1239, %v2438, %v2440
        %v2446 = vsel %vm1239, %v2440, %v2442
        %v2447 = vsel %vm1239, %v2442, %v2444
        %v2451 = vadd.f32 %v2422, %v2445
        %v2452 = vadd.f32 %v2423, %v2446
        %v2453 = vadd.f32 %v2424, %v2447
        %2454 = vset.pattern.permute.xlu0 3
        %2455 = vperm.xlu0 %2454, %v2365
        %v2456 = vpop.permute.xlu0 %2455
        %v2458 = vmul.f32 %v2456, %v1480
        %v2459 = vmul.f32 %v2456, %v1484
        %v2460 = vmul.f32 %v2456, %v1488
        %v2461 = vmul.f32 %v2456, %v1624
        %2466 = vrot.lane.b32.xlu0 %v2458, 78
        %v2467 = vpop.permute.xlu0 %2466
        %2468 = vrot.lane.b32.xlu0 %v2459, 78
        %v2469 = vpop.permute.xlu0 %2468
        %2470 = vrot.lane.b32.xlu0 %v2460, 78
        %v2471 = vpop.permute.xlu0 %2470
        %2472 = vrot.lane.b32.xlu0 %v2461, 78
        %v2473 = vpop.permute.xlu0 %2472
        %v2474 = vsel %vm1239, %v2467, %v2469
        %v2475 = vsel %vm1239, %v2469, %v2471
        %v2476 = vsel %vm1239, %v2471, %v2473
        %v2480 = vadd.f32 %v2451, %v2474
        %v2481 = vadd.f32 %v2452, %v2475
        %v2482 = vadd.f32 %v2453, %v2476
        %s2483 = sadd.s32 %s22, 2
        %s2484 = smul.u32 %s2483, 4
        %s2485 = smul.addr %s2484, 4
        %s2486 = scalar_lea.vmem %s182, %s2485
        %v2487 = vld [vmem:[%s2486] sm:$0xff]
        %v2488 = vld [vmem:[%s2486 + $0x8] sm:$0xff]
        %s2489 = scalar_lea.vmem %s1, 144
        %v2490 = vld [vmem:[%s2489] sm:$0xff]
        %2492 = vset.pattern.permute.xlu0 0
        %2493 = vperm.xlu0 %2492, %v2490
        %v2494 = vpop.permute.xlu0 %2493
        %v2498 = vlaneseq
        %v2499 = vshrl.u32 %v2498, 7
        %v2500 = vsub.s32 0, %v2499
        %v2501 = vrot.slane %v2487, %v2500
        %v2502 = vlaneseq
        %v2503 = vshrl.u32 %v2502, 7
        %v2504 = vsub.s32 4, %v2503
        %v2505 = vrot.slane %v2487, %v2504
        %v2506 = vlaneseq
        %v2507 = vshrl.u32 %v2506, 7
        %v2508 = vsub.s32 0, %v2507
        %v2509 = vrot.slane %v2488, %v2508
        %v2513 = vlaneseq
        %v2514 = vshrl.u32 %v2513, 7
        %v2515 = vsub.s32 0, %v2514
        %v2516 = vrot.slane %v2501, %v2515
        %v2517 = vlaneseq
        %v2518 = vshrl.u32 %v2517, 7
        %v2519 = vsub.s32 0, %v2518
        %v2520 = vrot.slane %v2505, %v2519
        %v2521 = vlaneseq
        %v2522 = vshrl.u32 %v2521, 7
        %v2523 = vsub.s32 0, %v2522
        %v2524 = vrot.slane %v2509, %v2523
        %v2525 = vmul.f32 %v2494, %v2516
        %v2526 = vmul.f32 %v2494, %v2520
        %v2527 = vmul.f32 %v2494, %v2524
        %v2528 = vadd.f32 %v2480, %v2525
        %v2529 = vadd.f32 %v2481, %v2526
        %v2530 = vadd.f32 %v2482, %v2527
        %2531 = vset.pattern.permute.xlu0 1
        %2532 = vperm.xlu0 %2531, %v2490
        %v2533 = vpop.permute.xlu0 %2532
        %v2535 = vlaneseq
        %v2536 = vshrl.u32 %v2535, 7
        %v2537 = vsub.s32 1, %v2536
        %v2538 = vrot.slane %v2487, %v2537
        %v2539 = vlaneseq
        %v2540 = vshrl.u32 %v2539, 7
        %v2541 = vsub.s32 5, %v2540
        %v2542 = vrot.slane %v2487, %v2541
        %v2543 = vlaneseq
        %v2544 = vshrl.u32 %v2543, 7
        %v2545 = vsub.s32 1, %v2544
        %v2546 = vrot.slane %v2488, %v2545
        %v2550 = vlaneseq
        %v2551 = vshrl.u32 %v2550, 7
        %v2552 = vsub.s32 1, %v2551
        %v2553 = vrot.slane %v2538, %v2552
        %v2554 = vlaneseq
        %v2555 = vshrl.u32 %v2554, 7
        %v2556 = vsub.s32 1, %v2555
        %v2557 = vrot.slane %v2542, %v2556
        %v2558 = vlaneseq
        %v2559 = vshrl.u32 %v2558, 7
        %v2560 = vsub.s32 1, %v2559
        %v2561 = vrot.slane %v2546, %v2560
        %v2562 = vmul.f32 %v2533, %v2553
        %v2563 = vmul.f32 %v2533, %v2557
        %v2564 = vmul.f32 %v2533, %v2561
        %v2565 = vadd.f32 %v2528, %v2562
        %v2566 = vadd.f32 %v2529, %v2563
        %v2567 = vadd.f32 %v2530, %v2564
        %2568 = vset.pattern.permute.xlu0 2
        %2569 = vperm.xlu0 %2568, %v2490
        %v2570 = vpop.permute.xlu0 %2569
        %v2572 = vlaneseq
        %v2573 = vshrl.u32 %v2572, 7
        %v2574 = vsub.s32 2, %v2573
        %v2575 = vrot.slane %v2487, %v2574
        %v2576 = vlaneseq
        %v2577 = vshrl.u32 %v2576, 7
        %v2578 = vsub.s32 6, %v2577
        %v2579 = vrot.slane %v2487, %v2578
        %v2580 = vlaneseq
        %v2581 = vshrl.u32 %v2580, 7
        %v2582 = vsub.s32 2, %v2581
        %v2583 = vrot.slane %v2488, %v2582
        %v2587 = vlaneseq
        %v2588 = vshrl.u32 %v2587, 7
        %v2589 = vsub.s32 2, %v2588
        %v2590 = vrot.slane %v2575, %v2589
        %v2591 = vlaneseq
        %v2592 = vshrl.u32 %v2591, 7
        %v2593 = vsub.s32 2, %v2592
        %v2594 = vrot.slane %v2579, %v2593
        %v2595 = vlaneseq
        %v2596 = vshrl.u32 %v2595, 7
        %v2597 = vsub.s32 2, %v2596
        %v2598 = vrot.slane %v2583, %v2597
        %v2599 = vmul.f32 %v2570, %v2590
        %v2600 = vmul.f32 %v2570, %v2594
        %v2601 = vmul.f32 %v2570, %v2598
        %v2602 = vadd.f32 %v2565, %v2599
        %v2603 = vadd.f32 %v2566, %v2600
        %v2604 = vadd.f32 %v2567, %v2601
        %2605 = vset.pattern.permute.xlu0 3
        %2606 = vperm.xlu0 %2605, %v2490
        %v2607 = vpop.permute.xlu0 %2606
        %v2609 = vlaneseq
        %v2610 = vshrl.u32 %v2609, 7
        %v2611 = vsub.s32 3, %v2610
        %v2612 = vrot.slane %v2487, %v2611
        %v2613 = vlaneseq
        %v2614 = vshrl.u32 %v2613, 7
        %v2615 = vsub.s32 7, %v2614
        %v2616 = vrot.slane %v2487, %v2615
        %v2617 = vlaneseq
        %v2618 = vshrl.u32 %v2617, 7
        %v2619 = vsub.s32 3, %v2618
        %v2620 = vrot.slane %v2488, %v2619
        %v2624 = vlaneseq
        %v2625 = vshrl.u32 %v2624, 7
        %v2626 = vsub.s32 3, %v2625
        %v2627 = vrot.slane %v2612, %v2626
        %v2628 = vlaneseq
        %v2629 = vshrl.u32 %v2628, 7
        %v2630 = vsub.s32 3, %v2629
        %v2631 = vrot.slane %v2616, %v2630
        %v2632 = vlaneseq
        %v2633 = vshrl.u32 %v2632, 7
        %v2634 = vsub.s32 3, %v2633
        %v2635 = vrot.slane %v2620, %v2634
        %v2636 = vmul.f32 %v2607, %v2627
        %v2637 = vmul.f32 %v2607, %v2631
        %v2638 = vmul.f32 %v2607, %v2635
        %v2639 = vadd.f32 %v2602, %v2636
        %v2640 = vadd.f32 %v2603, %v2637
        %v2641 = vadd.f32 %v2604, %v2638
        %s2642 = scalar_lea.vmem %s1, 152
        %v2643 = vld [vmem:[%s2642] sm:$0xff]
        %2645 = vset.pattern.permute.xlu0 0
        %2646 = vperm.xlu0 %2645, %v2643
        %v2647 = vpop.permute.xlu0 %2646
        %v2649 = vlaneseq
        %v2650 = vshrl.u32 %v2649, 7
        %v2651 = vsub.s32 4, %v2650
        %v2652 = vrot.slane %v2488, %v2651
        %v2654 = vlaneseq
        %v2655 = vshrl.u32 %v2654, 7
        %v2656 = vsub.s32 0, %v2655
        %v2657 = vrot.slane %v2652, %v2656
        %v2658 = vmul.f32 %v2647, %v2516
        %v2659 = vmul.f32 %v2647, %v2520
        %v2660 = vmul.f32 %v2647, %v2524
        %v2661 = vmul.f32 %v2647, %v2657
        %2666 = vrot.lane.b32.xlu0 %v2658, 127
        %v2667 = vpop.permute.xlu0 %2666
        %2668 = vrot.lane.b32.xlu0 %v2659, 127
        %v2669 = vpop.permute.xlu0 %2668
        %2670 = vrot.lane.b32.xlu0 %v2660, 127
        %v2671 = vpop.permute.xlu0 %2670
        %2672 = vrot.lane.b32.xlu0 %v2661, 127
        %v2673 = vpop.permute.xlu0 %2672
        %v2674 = vsel %vm372, %v2667, %v2669
        %v2675 = vsel %vm372, %v2669, %v2671
        %v2676 = vsel %vm372, %v2671, %v2673
        %v2680 = vadd.f32 %v2639, %v2674
        %v2681 = vadd.f32 %v2640, %v2675
        %v2682 = vadd.f32 %v2641, %v2676
        %2683 = vset.pattern.permute.xlu0 1
        %2684 = vperm.xlu0 %2683, %v2643
        %v2685 = vpop.permute.xlu0 %2684
        %v2687 = vlaneseq
        %v2688 = vshrl.u32 %v2687, 7
        %v2689 = vsub.s32 5, %v2688
        %v2690 = vrot.slane %v2488, %v2689
        %v2692 = vlaneseq
        %v2693 = vshrl.u32 %v2692, 7
        %v2694 = vsub.s32 1, %v2693
        %v2695 = vrot.slane %v2690, %v2694
        %v2696 = vmul.f32 %v2685, %v2553
        %v2697 = vmul.f32 %v2685, %v2557
        %v2698 = vmul.f32 %v2685, %v2561
        %v2699 = vmul.f32 %v2685, %v2695
        %2704 = vrot.lane.b32.xlu0 %v2696, 127
        %v2705 = vpop.permute.xlu0 %2704
        %2706 = vrot.lane.b32.xlu0 %v2697, 127
        %v2707 = vpop.permute.xlu0 %2706
        %2708 = vrot.lane.b32.xlu0 %v2698, 127
        %v2709 = vpop.permute.xlu0 %2708
        %2710 = vrot.lane.b32.xlu0 %v2699, 127
        %v2711 = vpop.permute.xlu0 %2710
        %v2712 = vsel %vm372, %v2705, %v2707
        %v2713 = vsel %vm372, %v2707, %v2709
        %v2714 = vsel %vm372, %v2709, %v2711
        %v2718 = vadd.f32 %v2680, %v2712
        %v2719 = vadd.f32 %v2681, %v2713
        %v2720 = vadd.f32 %v2682, %v2714
        %2721 = vset.pattern.permute.xlu0 2
        %2722 = vperm.xlu0 %2721, %v2643
        %v2723 = vpop.permute.xlu0 %2722
        %v2725 = vlaneseq
        %v2726 = vshrl.u32 %v2725, 7
        %v2727 = vsub.s32 6, %v2726
        %v2728 = vrot.slane %v2488, %v2727
        %v2730 = vlaneseq
        %v2731 = vshrl.u32 %v2730, 7
        %v2732 = vsub.s32 2, %v2731
        %v2733 = vrot.slane %v2728, %v2732
        %v2734 = vmul.f32 %v2723, %v2590
        %v2735 = vmul.f32 %v2723, %v2594
        %v2736 = vmul.f32 %v2723, %v2598
        %v2737 = vmul.f32 %v2723, %v2733
        %2742 = vrot.lane.b32.xlu0 %v2734, 127
        %v2743 = vpop.permute.xlu0 %2742
        %2744 = vrot.lane.b32.xlu0 %v2735, 127
        %v2745 = vpop.permute.xlu0 %2744
        %2746 = vrot.lane.b32.xlu0 %v2736, 127
        %v2747 = vpop.permute.xlu0 %2746
        %2748 = vrot.lane.b32.xlu0 %v2737, 127
        %v2749 = vpop.permute.xlu0 %2748
        %v2750 = vsel %vm372, %v2743, %v2745
        %v2751 = vsel %vm372, %v2745, %v2747
        %v2752 = vsel %vm372, %v2747, %v2749
        %v2756 = vadd.f32 %v2718, %v2750
        %v2757 = vadd.f32 %v2719, %v2751
        %v2758 = vadd.f32 %v2720, %v2752
        %2759 = vset.pattern.permute.xlu0 3
        %2760 = vperm.xlu0 %2759, %v2643
        %v2761 = vpop.permute.xlu0 %2760
        %v2763 = vlaneseq
        %v2764 = vshrl.u32 %v2763, 7
        %v2765 = vsub.s32 7, %v2764
        %v2766 = vrot.slane %v2488, %v2765
        %v2768 = vlaneseq
        %v2769 = vshrl.u32 %v2768, 7
        %v2770 = vsub.s32 3, %v2769
        %v2771 = vrot.slane %v2766, %v2770
        %v2772 = vmul.f32 %v2761, %v2627
        %v2773 = vmul.f32 %v2761, %v2631
        %v2774 = vmul.f32 %v2761, %v2635
        %v2775 = vmul.f32 %v2761, %v2771
        %2780 = vrot.lane.b32.xlu0 %v2772, 127
        %v2781 = vpop.permute.xlu0 %2780
        %2782 = vrot.lane.b32.xlu0 %v2773, 127
        %v2783 = vpop.permute.xlu0 %2782
        %2784 = vrot.lane.b32.xlu0 %v2774, 127
        %v2785 = vpop.permute.xlu0 %2784
        %2786 = vrot.lane.b32.xlu0 %v2775, 127
        %v2787 = vpop.permute.xlu0 %2786
        %v2788 = vsel %vm372, %v2781, %v2783
        %v2789 = vsel %vm372, %v2783, %v2785
        %v2790 = vsel %vm372, %v2785, %v2787
        %v2794 = vadd.f32 %v2756, %v2788
        %v2795 = vadd.f32 %v2757, %v2789
        %v2796 = vadd.f32 %v2758, %v2790
        %s2797 = scalar_lea.vmem %s1, 160
        %v2798 = vld [vmem:[%s2797] sm:$0xff]
        %2800 = vset.pattern.permute.xlu0 0
        %2801 = vperm.xlu0 %2800, %v2798
        %v2802 = vpop.permute.xlu0 %2801
        %v2804 = vmul.f32 %v2802, %v2516
        %v2805 = vmul.f32 %v2802, %v2520
        %v2806 = vmul.f32 %v2802, %v2524
        %v2807 = vmul.f32 %v2802, %v2657
        %2812 = vrot.lane.b32.xlu0 %v2804, 126
        %v2813 = vpop.permute.xlu0 %2812
        %2814 = vrot.lane.b32.xlu0 %v2805, 126
        %v2815 = vpop.permute.xlu0 %2814
        %2816 = vrot.lane.b32.xlu0 %v2806, 126
        %v2817 = vpop.permute.xlu0 %2816
        %2818 = vrot.lane.b32.xlu0 %v2807, 126
        %v2819 = vpop.permute.xlu0 %2818
        %v2820 = vsel %vm519, %v2813, %v2815
        %v2821 = vsel %vm519, %v2815, %v2817
        %v2822 = vsel %vm519, %v2817, %v2819
        %v2826 = vadd.f32 %v2794, %v2820
        %v2827 = vadd.f32 %v2795, %v2821
        %v2828 = vadd.f32 %v2796, %v2822
        %2829 = vset.pattern.permute.xlu0 1
        %2830 = vperm.xlu0 %2829, %v2798
        %v2831 = vpop.permute.xlu0 %2830
        %v2833 = vmul.f32 %v2831, %v2553
        %v2834 = vmul.f32 %v2831, %v2557
        %v2835 = vmul.f32 %v2831, %v2561
        %v2836 = vmul.f32 %v2831, %v2695
        %2841 = vrot.lane.b32.xlu0 %v2833, 126
        %v2842 = vpop.permute.xlu0 %2841
        %2843 = vrot.lane.b32.xlu0 %v2834, 126
        %v2844 = vpop.permute.xlu0 %2843
        %2845 = vrot.lane.b32.xlu0 %v2835, 126
        %v2846 = vpop.permute.xlu0 %2845
        %2847 = vrot.lane.b32.xlu0 %v2836, 126
        %v2848 = vpop.permute.xlu0 %2847
        %v2849 = vsel %vm519, %v2842, %v2844
        %v2850 = vsel %vm519, %v2844, %v2846
        %v2851 = vsel %vm519, %v2846, %v2848
        %v2855 = vadd.f32 %v2826, %v2849
        %v2856 = vadd.f32 %v2827, %v2850
        %v2857 = vadd.f32 %v2828, %v2851
        %2858 = vset.pattern.permute.xlu0 2
        %2859 = vperm.xlu0 %2858, %v2798
        %v2860 = vpop.permute.xlu0 %2859
        %v2862 = vmul.f32 %v2860, %v2590
        %v2863 = vmul.f32 %v2860, %v2594
        %v2864 = vmul.f32 %v2860, %v2598
        %v2865 = vmul.f32 %v2860, %v2733
        %2870 = vrot.lane.b32.xlu0 %v2862, 126
        %v2871 = vpop.permute.xlu0 %2870
        %2872 = vrot.lane.b32.xlu0 %v2863, 126
        %v2873 = vpop.permute.xlu0 %2872
        %2874 = vrot.lane.b32.xlu0 %v2864, 126
        %v2875 = vpop.permute.xlu0 %2874
        %2876 = vrot.lane.b32.xlu0 %v2865, 126
        %v2877 = vpop.permute.xlu0 %2876
        %v2878 = vsel %vm519, %v2871, %v2873
        %v2879 = vsel %vm519, %v2873, %v2875
        %v2880 = vsel %vm519, %v2875, %v2877
        %v2884 = vadd.f32 %v2855, %v2878
        %v2885 = vadd.f32 %v2856, %v2879
        %v2886 = vadd.f32 %v2857, %v2880
        %2887 = vset.pattern.permute.xlu0 3
        %2888 = vperm.xlu0 %2887, %v2798
        %v2889 = vpop.permute.xlu0 %2888
        %v2891 = vmul.f32 %v2889, %v2627
        %v2892 = vmul.f32 %v2889, %v2631
        %v2893 = vmul.f32 %v2889, %v2635
        %v2894 = vmul.f32 %v2889, %v2771
        %2899 = vrot.lane.b32.xlu0 %v2891, 126
        %v2900 = vpop.permute.xlu0 %2899
        %2901 = vrot.lane.b32.xlu0 %v2892, 126
        %v2902 = vpop.permute.xlu0 %2901
        %2903 = vrot.lane.b32.xlu0 %v2893, 126
        %v2904 = vpop.permute.xlu0 %2903
        %2905 = vrot.lane.b32.xlu0 %v2894, 126
        %v2906 = vpop.permute.xlu0 %2905
        %v2907 = vsel %vm519, %v2900, %v2902
        %v2908 = vsel %vm519, %v2902, %v2904
        %v2909 = vsel %vm519, %v2904, %v2906
        %v2913 = vadd.f32 %v2884, %v2907
        %v2914 = vadd.f32 %v2885, %v2908
        %v2915 = vadd.f32 %v2886, %v2909
        %s2916 = scalar_lea.vmem %s1, 168
        %v2917 = vld [vmem:[%s2916] sm:$0xff]
        %2919 = vset.pattern.permute.xlu0 0
        %2920 = vperm.xlu0 %2919, %v2917
        %v2921 = vpop.permute.xlu0 %2920
        %v2923 = vmul.f32 %v2921, %v2516
        %v2924 = vmul.f32 %v2921, %v2520
        %v2925 = vmul.f32 %v2921, %v2524
        %v2926 = vmul.f32 %v2921, %v2657
        %2931 = vrot.lane.b32.xlu0 %v2923, 104
        %v2932 = vpop.permute.xlu0 %2931
        %2933 = vrot.lane.b32.xlu0 %v2924, 104
        %v2934 = vpop.permute.xlu0 %2933
        %2935 = vrot.lane.b32.xlu0 %v2925, 104
        %v2936 = vpop.permute.xlu0 %2935
        %2937 = vrot.lane.b32.xlu0 %v2926, 104
        %v2938 = vpop.permute.xlu0 %2937
        %v2939 = vsel %vm639, %v2932, %v2934
        %v2940 = vsel %vm639, %v2934, %v2936
        %v2941 = vsel %vm639, %v2936, %v2938
        %v2945 = vadd.f32 %v2913, %v2939
        %v2946 = vadd.f32 %v2914, %v2940
        %v2947 = vadd.f32 %v2915, %v2941
        %2948 = vset.pattern.permute.xlu0 1
        %2949 = vperm.xlu0 %2948, %v2917
        %v2950 = vpop.permute.xlu0 %2949
        %v2952 = vmul.f32 %v2950, %v2553
        %v2953 = vmul.f32 %v2950, %v2557
        %v2954 = vmul.f32 %v2950, %v2561
        %v2955 = vmul.f32 %v2950, %v2695
        %2960 = vrot.lane.b32.xlu0 %v2952, 104
        %v2961 = vpop.permute.xlu0 %2960
        %2962 = vrot.lane.b32.xlu0 %v2953, 104
        %v2963 = vpop.permute.xlu0 %2962
        %2964 = vrot.lane.b32.xlu0 %v2954, 104
        %v2965 = vpop.permute.xlu0 %2964
        %2966 = vrot.lane.b32.xlu0 %v2955, 104
        %v2967 = vpop.permute.xlu0 %2966
        %v2968 = vsel %vm639, %v2961, %v2963
        %v2969 = vsel %vm639, %v2963, %v2965
        %v2970 = vsel %vm639, %v2965, %v2967
        %v2974 = vadd.f32 %v2945, %v2968
        %v2975 = vadd.f32 %v2946, %v2969
        %v2976 = vadd.f32 %v2947, %v2970
        %2977 = vset.pattern.permute.xlu0 2
        %2978 = vperm.xlu0 %2977, %v2917
        %v2979 = vpop.permute.xlu0 %2978
        %v2981 = vmul.f32 %v2979, %v2590
        %v2982 = vmul.f32 %v2979, %v2594
        %v2983 = vmul.f32 %v2979, %v2598
        %v2984 = vmul.f32 %v2979, %v2733
        %2989 = vrot.lane.b32.xlu0 %v2981, 104
        %v2990 = vpop.permute.xlu0 %2989
        %2991 = vrot.lane.b32.xlu0 %v2982, 104
        %v2992 = vpop.permute.xlu0 %2991
        %2993 = vrot.lane.b32.xlu0 %v2983, 104
        %v2994 = vpop.permute.xlu0 %2993
        %2995 = vrot.lane.b32.xlu0 %v2984, 104
        %v2996 = vpop.permute.xlu0 %2995
        %v2997 = vsel %vm639, %v2990, %v2992
        %v2998 = vsel %vm639, %v2992, %v2994
        %v2999 = vsel %vm639, %v2994, %v2996
        %v3003 = vadd.f32 %v2974, %v2997
        %v3004 = vadd.f32 %v2975, %v2998
        %v3005 = vadd.f32 %v2976, %v2999
        %3006 = vset.pattern.permute.xlu0 3
        %3007 = vperm.xlu0 %3006, %v2917
        %v3008 = vpop.permute.xlu0 %3007
        %v3010 = vmul.f32 %v3008, %v2627
        %v3011 = vmul.f32 %v3008, %v2631
        %v3012 = vmul.f32 %v3008, %v2635
        %v3013 = vmul.f32 %v3008, %v2771
        %3018 = vrot.lane.b32.xlu0 %v3010, 104
        %v3019 = vpop.permute.xlu0 %3018
        %3020 = vrot.lane.b32.xlu0 %v3011, 104
        %v3021 = vpop.permute.xlu0 %3020
        %3022 = vrot.lane.b32.xlu0 %v3012, 104
        %v3023 = vpop.permute.xlu0 %3022
        %3024 = vrot.lane.b32.xlu0 %v3013, 104
        %v3025 = vpop.permute.xlu0 %3024
        %v3026 = vsel %vm639, %v3019, %v3021
        %v3027 = vsel %vm639, %v3021, %v3023
        %v3028 = vsel %vm639, %v3023, %v3025
        %v3032 = vadd.f32 %v3003, %v3026
        %v3033 = vadd.f32 %v3004, %v3027
        %v3034 = vadd.f32 %v3005, %v3028
        %s3035 = scalar_lea.vmem %s1, 176
        %v3036 = vld [vmem:[%s3035] sm:$0xff]
        %3038 = vset.pattern.permute.xlu0 0
        %3039 = vperm.xlu0 %3038, %v3036
        %v3040 = vpop.permute.xlu0 %3039
        %v3042 = vmul.f32 %v3040, %v2516
        %v3043 = vmul.f32 %v3040, %v2520
        %v3044 = vmul.f32 %v3040, %v2524
        %v3045 = vmul.f32 %v3040, %v2657
        %3050 = vrot.lane.b32.xlu0 %v3042, 103
        %v3051 = vpop.permute.xlu0 %3050
        %3052 = vrot.lane.b32.xlu0 %v3043, 103
        %v3053 = vpop.permute.xlu0 %3052
        %3054 = vrot.lane.b32.xlu0 %v3044, 103
        %v3055 = vpop.permute.xlu0 %3054
        %3056 = vrot.lane.b32.xlu0 %v3045, 103
        %v3057 = vpop.permute.xlu0 %3056
        %v3058 = vsel %vm759, %v3051, %v3053
        %v3059 = vsel %vm759, %v3053, %v3055
        %v3060 = vsel %vm759, %v3055, %v3057
        %v3064 = vadd.f32 %v3032, %v3058
        %v3065 = vadd.f32 %v3033, %v3059
        %v3066 = vadd.f32 %v3034, %v3060
        %3067 = vset.pattern.permute.xlu0 1
        %3068 = vperm.xlu0 %3067, %v3036
        %v3069 = vpop.permute.xlu0 %3068
        %v3071 = vmul.f32 %v3069, %v2553
        %v3072 = vmul.f32 %v3069, %v2557
        %v3073 = vmul.f32 %v3069, %v2561
        %v3074 = vmul.f32 %v3069, %v2695
        %3079 = vrot.lane.b32.xlu0 %v3071, 103
        %v3080 = vpop.permute.xlu0 %3079
        %3081 = vrot.lane.b32.xlu0 %v3072, 103
        %v3082 = vpop.permute.xlu0 %3081
        %3083 = vrot.lane.b32.xlu0 %v3073, 103
        %v3084 = vpop.permute.xlu0 %3083
        %3085 = vrot.lane.b32.xlu0 %v3074, 103
        %v3086 = vpop.permute.xlu0 %3085
        %v3087 = vsel %vm759, %v3080, %v3082
        %v3088 = vsel %vm759, %v3082, %v3084
        %v3089 = vsel %vm759, %v3084, %v3086
        %v3093 = vadd.f32 %v3064, %v3087
        %v3094 = vadd.f32 %v3065, %v3088
        %v3095 = vadd.f32 %v3066, %v3089
        %3096 = vset.pattern.permute.xlu0 2
        %3097 = vperm.xlu0 %3096, %v3036
        %v3098 = vpop.permute.xlu0 %3097
        %v3100 = vmul.f32 %v3098, %v2590
        %v3101 = vmul.f32 %v3098, %v2594
        %v3102 = vmul.f32 %v3098, %v2598
        %v3103 = vmul.f32 %v3098, %v2733
        %3108 = vrot.lane.b32.xlu0 %v3100, 103
        %v3109 = vpop.permute.xlu0 %3108
        %3110 = vrot.lane.b32.xlu0 %v3101, 103
        %v3111 = vpop.permute.xlu0 %3110
        %3112 = vrot.lane.b32.xlu0 %v3102, 103
        %v3113 = vpop.permute.xlu0 %3112
        %3114 = vrot.lane.b32.xlu0 %v3103, 103
        %v3115 = vpop.permute.xlu0 %3114
        %v3116 = vsel %vm759, %v3109, %v3111
        %v3117 = vsel %vm759, %v3111, %v3113
        %v3118 = vsel %vm759, %v3113, %v3115
        %v3122 = vadd.f32 %v3093, %v3116
        %v3123 = vadd.f32 %v3094, %v3117
        %v3124 = vadd.f32 %v3095, %v3118
        %3125 = vset.pattern.permute.xlu0 3
        %3126 = vperm.xlu0 %3125, %v3036
        %v3127 = vpop.permute.xlu0 %3126
        %v3129 = vmul.f32 %v3127, %v2627
        %v3130 = vmul.f32 %v3127, %v2631
        %v3131 = vmul.f32 %v3127, %v2635
        %v3132 = vmul.f32 %v3127, %v2771
        %3137 = vrot.lane.b32.xlu0 %v3129, 103
        %v3138 = vpop.permute.xlu0 %3137
        %3139 = vrot.lane.b32.xlu0 %v3130, 103
        %v3140 = vpop.permute.xlu0 %3139
        %3141 = vrot.lane.b32.xlu0 %v3131, 103
        %v3142 = vpop.permute.xlu0 %3141
        %3143 = vrot.lane.b32.xlu0 %v3132, 103
        %v3144 = vpop.permute.xlu0 %3143
        %v3145 = vsel %vm759, %v3138, %v3140
        %v3146 = vsel %vm759, %v3140, %v3142
        %v3147 = vsel %vm759, %v3142, %v3144
        %v3151 = vadd.f32 %v3122, %v3145
        %v3152 = vadd.f32 %v3123, %v3146
        %v3153 = vadd.f32 %v3124, %v3147
        %s3154 = scalar_lea.vmem %s1, 184
        %v3155 = vld [vmem:[%s3154] sm:$0xff]
        %3157 = vset.pattern.permute.xlu0 0
        %3158 = vperm.xlu0 %3157, %v3155
        %v3159 = vpop.permute.xlu0 %3158
        %v3161 = vmul.f32 %v3159, %v2516
        %v3162 = vmul.f32 %v3159, %v2520
        %v3163 = vmul.f32 %v3159, %v2524
        %v3164 = vmul.f32 %v3159, %v2657
        %3169 = vrot.lane.b32.xlu0 %v3161, 102
        %v3170 = vpop.permute.xlu0 %3169
        %3171 = vrot.lane.b32.xlu0 %v3162, 102
        %v3172 = vpop.permute.xlu0 %3171
        %3173 = vrot.lane.b32.xlu0 %v3163, 102
        %v3174 = vpop.permute.xlu0 %3173
        %3175 = vrot.lane.b32.xlu0 %v3164, 102
        %v3176 = vpop.permute.xlu0 %3175
        %v3177 = vsel %vm879, %v3170, %v3172
        %v3178 = vsel %vm879, %v3172, %v3174
        %v3179 = vsel %vm879, %v3174, %v3176
        %v3183 = vadd.f32 %v3151, %v3177
        %v3184 = vadd.f32 %v3152, %v3178
        %v3185 = vadd.f32 %v3153, %v3179
        %3186 = vset.pattern.permute.xlu0 1
        %3187 = vperm.xlu0 %3186, %v3155
        %v3188 = vpop.permute.xlu0 %3187
        %v3190 = vmul.f32 %v3188, %v2553
        %v3191 = vmul.f32 %v3188, %v2557
        %v3192 = vmul.f32 %v3188, %v2561
        %v3193 = vmul.f32 %v3188, %v2695
        %3198 = vrot.lane.b32.xlu0 %v3190, 102
        %v3199 = vpop.permute.xlu0 %3198
        %3200 = vrot.lane.b32.xlu0 %v3191, 102
        %v3201 = vpop.permute.xlu0 %3200
        %3202 = vrot.lane.b32.xlu0 %v3192, 102
        %v3203 = vpop.permute.xlu0 %3202
        %3204 = vrot.lane.b32.xlu0 %v3193, 102
        %v3205 = vpop.permute.xlu0 %3204
        %v3206 = vsel %vm879, %v3199, %v3201
        %v3207 = vsel %vm879, %v3201, %v3203
        %v3208 = vsel %vm879, %v3203, %v3205
        %v3212 = vadd.f32 %v3183, %v3206
        %v3213 = vadd.f32 %v3184, %v3207
        %v3214 = vadd.f32 %v3185, %v3208
        %3215 = vset.pattern.permute.xlu0 2
        %3216 = vperm.xlu0 %3215, %v3155
        %v3217 = vpop.permute.xlu0 %3216
        %v3219 = vmul.f32 %v3217, %v2590
        %v3220 = vmul.f32 %v3217, %v2594
        %v3221 = vmul.f32 %v3217, %v2598
        %v3222 = vmul.f32 %v3217, %v2733
        %3227 = vrot.lane.b32.xlu0 %v3219, 102
        %v3228 = vpop.permute.xlu0 %3227
        %3229 = vrot.lane.b32.xlu0 %v3220, 102
        %v3230 = vpop.permute.xlu0 %3229
        %3231 = vrot.lane.b32.xlu0 %v3221, 102
        %v3232 = vpop.permute.xlu0 %3231
        %3233 = vrot.lane.b32.xlu0 %v3222, 102
        %v3234 = vpop.permute.xlu0 %3233
        %v3235 = vsel %vm879, %v3228, %v3230
        %v3236 = vsel %vm879, %v3230, %v3232
        %v3237 = vsel %vm879, %v3232, %v3234
        %v3241 = vadd.f32 %v3212, %v3235
        %v3242 = vadd.f32 %v3213, %v3236
        %v3243 = vadd.f32 %v3214, %v3237
        %3244 = vset.pattern.permute.xlu0 3
        %3245 = vperm.xlu0 %3244, %v3155
        %v3246 = vpop.permute.xlu0 %3245
        %v3248 = vmul.f32 %v3246, %v2627
        %v3249 = vmul.f32 %v3246, %v2631
        %v3250 = vmul.f32 %v3246, %v2635
        %v3251 = vmul.f32 %v3246, %v2771
        %3256 = vrot.lane.b32.xlu0 %v3248, 102
        %v3257 = vpop.permute.xlu0 %3256
        %3258 = vrot.lane.b32.xlu0 %v3249, 102
        %v3259 = vpop.permute.xlu0 %3258
        %3260 = vrot.lane.b32.xlu0 %v3250, 102
        %v3261 = vpop.permute.xlu0 %3260
        %3262 = vrot.lane.b32.xlu0 %v3251, 102
        %v3263 = vpop.permute.xlu0 %3262
        %v3264 = vsel %vm879, %v3257, %v3259
        %v3265 = vsel %vm879, %v3259, %v3261
        %v3266 = vsel %vm879, %v3261, %v3263
        %v3270 = vadd.f32 %v3241, %v3264
        %v3271 = vadd.f32 %v3242, %v3265
        %v3272 = vadd.f32 %v3243, %v3266
        %s3273 = scalar_lea.vmem %s1, 192
        %v3274 = vld [vmem:[%s3273] sm:$0xff]
        %3276 = vset.pattern.permute.xlu0 0
        %3277 = vperm.xlu0 %3276, %v3274
        %v3278 = vpop.permute.xlu0 %3277
        %v3280 = vmul.f32 %v3278, %v2516
        %v3281 = vmul.f32 %v3278, %v2520
        %v3282 = vmul.f32 %v3278, %v2524
        %v3283 = vmul.f32 %v3278, %v2657
        %3288 = vrot.lane.b32.xlu0 %v3280, 80
        %v3289 = vpop.permute.xlu0 %3288
        %3290 = vrot.lane.b32.xlu0 %v3281, 80
        %v3291 = vpop.permute.xlu0 %3290
        %3292 = vrot.lane.b32.xlu0 %v3282, 80
        %v3293 = vpop.permute.xlu0 %3292
        %3294 = vrot.lane.b32.xlu0 %v3283, 80
        %v3295 = vpop.permute.xlu0 %3294
        %v3296 = vsel %vm999, %v3289, %v3291
        %v3297 = vsel %vm999, %v3291, %v3293
        %v3298 = vsel %vm999, %v3293, %v3295
        %v3302 = vadd.f32 %v3270, %v3296
        %v3303 = vadd.f32 %v3271, %v3297
        %v3304 = vadd.f32 %v3272, %v3298
        %3305 = vset.pattern.permute.xlu0 1
        %3306 = vperm.xlu0 %3305, %v3274
        %v3307 = vpop.permute.xlu0 %3306
        %v3309 = vmul.f32 %v3307, %v2553
        %v3310 = vmul.f32 %v3307, %v2557
        %v3311 = vmul.f32 %v3307, %v2561
        %v3312 = vmul.f32 %v3307, %v2695
        %3317 = vrot.lane.b32.xlu0 %v3309, 80
        %v3318 = vpop.permute.xlu0 %3317
        %3319 = vrot.lane.b32.xlu0 %v3310, 80
        %v3320 = vpop.permute.xlu0 %3319
        %3321 = vrot.lane.b32.xlu0 %v3311, 80
        %v3322 = vpop.permute.xlu0 %3321
        %3323 = vrot.lane.b32.xlu0 %v3312, 80
        %v3324 = vpop.permute.xlu0 %3323
        %v3325 = vsel %vm999, %v3318, %v3320
        %v3326 = vsel %vm999, %v3320, %v3322
        %v3327 = vsel %vm999, %v3322, %v3324
        %v3331 = vadd.f32 %v3302, %v3325
        %v3332 = vadd.f32 %v3303, %v3326
        %v3333 = vadd.f32 %v3304, %v3327
        %3334 = vset.pattern.permute.xlu0 2
        %3335 = vperm.xlu0 %3334, %v3274
        %v3336 = vpop.permute.xlu0 %3335
        %v3338 = vmul.f32 %v3336, %v2590
        %v3339 = vmul.f32 %v3336, %v2594
        %v3340 = vmul.f32 %v3336, %v2598
        %v3341 = vmul.f32 %v3336, %v2733
        %3346 = vrot.lane.b32.xlu0 %v3338, 80
        %v3347 = vpop.permute.xlu0 %3346
        %3348 = vrot.lane.b32.xlu0 %v3339, 80
        %v3349 = vpop.permute.xlu0 %3348
        %3350 = vrot.lane.b32.xlu0 %v3340, 80
        %v3351 = vpop.permute.xlu0 %3350
        %3352 = vrot.lane.b32.xlu0 %v3341, 80
        %v3353 = vpop.permute.xlu0 %3352
        %v3354 = vsel %vm999, %v3347, %v3349
        %v3355 = vsel %vm999, %v3349, %v3351
        %v3356 = vsel %vm999, %v3351, %v3353
        %v3360 = vadd.f32 %v3331, %v3354
        %v3361 = vadd.f32 %v3332, %v3355
        %v3362 = vadd.f32 %v3333, %v3356
        %3363 = vset.pattern.permute.xlu0 3
        %3364 = vperm.xlu0 %3363, %v3274
        %v3365 = vpop.permute.xlu0 %3364
        %v3367 = vmul.f32 %v3365, %v2627
        %v3368 = vmul.f32 %v3365, %v2631
        %v3369 = vmul.f32 %v3365, %v2635
        %v3370 = vmul.f32 %v3365, %v2771
        %3375 = vrot.lane.b32.xlu0 %v3367, 80
        %v3376 = vpop.permute.xlu0 %3375
        %3377 = vrot.lane.b32.xlu0 %v3368, 80
        %v3378 = vpop.permute.xlu0 %3377
        %3379 = vrot.lane.b32.xlu0 %v3369, 80
        %v3380 = vpop.permute.xlu0 %3379
        %3381 = vrot.lane.b32.xlu0 %v3370, 80
        %v3382 = vpop.permute.xlu0 %3381
        %v3383 = vsel %vm999, %v3376, %v3378
        %v3384 = vsel %vm999, %v3378, %v3380
        %v3385 = vsel %vm999, %v3380, %v3382
        %v3389 = vadd.f32 %v3360, %v3383
        %v3390 = vadd.f32 %v3361, %v3384
        %v3391 = vadd.f32 %v3362, %v3385
        %s3392 = scalar_lea.vmem %s1, 200
        %v3393 = vld [vmem:[%s3392] sm:$0xff]
        %3395 = vset.pattern.permute.xlu0 0
        %3396 = vperm.xlu0 %3395, %v3393
        %v3397 = vpop.permute.xlu0 %3396
        %v3399 = vmul.f32 %v3397, %v2516
        %v3400 = vmul.f32 %v3397, %v2520
        %v3401 = vmul.f32 %v3397, %v2524
        %v3402 = vmul.f32 %v3397, %v2657
        %3407 = vrot.lane.b32.xlu0 %v3399, 79
        %v3408 = vpop.permute.xlu0 %3407
        %3409 = vrot.lane.b32.xlu0 %v3400, 79
        %v3410 = vpop.permute.xlu0 %3409
        %3411 = vrot.lane.b32.xlu0 %v3401, 79
        %v3412 = vpop.permute.xlu0 %3411
        %3413 = vrot.lane.b32.xlu0 %v3402, 79
        %v3414 = vpop.permute.xlu0 %3413
        %v3415 = vsel %vm1119, %v3408, %v3410
        %v3416 = vsel %vm1119, %v3410, %v3412
        %v3417 = vsel %vm1119, %v3412, %v3414
        %v3421 = vadd.f32 %v3389, %v3415
        %v3422 = vadd.f32 %v3390, %v3416
        %v3423 = vadd.f32 %v3391, %v3417
        %3424 = vset.pattern.permute.xlu0 1
        %3425 = vperm.xlu0 %3424, %v3393
        %v3426 = vpop.permute.xlu0 %3425
        %v3428 = vmul.f32 %v3426, %v2553
        %v3429 = vmul.f32 %v3426, %v2557
        %v3430 = vmul.f32 %v3426, %v2561
        %v3431 = vmul.f32 %v3426, %v2695
        %3436 = vrot.lane.b32.xlu0 %v3428, 79
        %v3437 = vpop.permute.xlu0 %3436
        %3438 = vrot.lane.b32.xlu0 %v3429, 79
        %v3439 = vpop.permute.xlu0 %3438
        %3440 = vrot.lane.b32.xlu0 %v3430, 79
        %v3441 = vpop.permute.xlu0 %3440
        %3442 = vrot.lane.b32.xlu0 %v3431, 79
        %v3443 = vpop.permute.xlu0 %3442
        %v3444 = vsel %vm1119, %v3437, %v3439
        %v3445 = vsel %vm1119, %v3439, %v3441
        %v3446 = vsel %vm1119, %v3441, %v3443
        %v3450 = vadd.f32 %v3421, %v3444
        %v3451 = vadd.f32 %v3422, %v3445
        %v3452 = vadd.f32 %v3423, %v3446
        %3453 = vset.pattern.permute.xlu0 2
        %3454 = vperm.xlu0 %3453, %v3393
        %v3455 = vpop.permute.xlu0 %3454
        %v3457 = vmul.f32 %v3455, %v2590
        %v3458 = vmul.f32 %v3455, %v2594
        %v3459 = vmul.f32 %v3455, %v2598
        %v3460 = vmul.f32 %v3455, %v2733
        %3465 = vrot.lane.b32.xlu0 %v3457, 79
        %v3466 = vpop.permute.xlu0 %3465
        %3467 = vrot.lane.b32.xlu0 %v3458, 79
        %v3468 = vpop.permute.xlu0 %3467
        %3469 = vrot.lane.b32.xlu0 %v3459, 79
        %v3470 = vpop.permute.xlu0 %3469
        %3471 = vrot.lane.b32.xlu0 %v3460, 79
        %v3472 = vpop.permute.xlu0 %3471
        %v3473 = vsel %vm1119, %v3466, %v3468
        %v3474 = vsel %vm1119, %v3468, %v3470
        %v3475 = vsel %vm1119, %v3470, %v3472
        %v3479 = vadd.f32 %v3450, %v3473
        %v3480 = vadd.f32 %v3451, %v3474
        %v3481 = vadd.f32 %v3452, %v3475
        %3482 = vset.pattern.permute.xlu0 3
        %3483 = vperm.xlu0 %3482, %v3393
        %v3484 = vpop.permute.xlu0 %3483
        %v3486 = vmul.f32 %v3484, %v2627
        %v3487 = vmul.f32 %v3484, %v2631
        %v3488 = vmul.f32 %v3484, %v2635
        %v3489 = vmul.f32 %v3484, %v2771
        %3494 = vrot.lane.b32.xlu0 %v3486, 79
        %v3495 = vpop.permute.xlu0 %3494
        %3496 = vrot.lane.b32.xlu0 %v3487, 79
        %v3497 = vpop.permute.xlu0 %3496
        %3498 = vrot.lane.b32.xlu0 %v3488, 79
        %v3499 = vpop.permute.xlu0 %3498
        %3500 = vrot.lane.b32.xlu0 %v3489, 79
        %v3501 = vpop.permute.xlu0 %3500
        %v3502 = vsel %vm1119, %v3495, %v3497
        %v3503 = vsel %vm1119, %v3497, %v3499
        %v3504 = vsel %vm1119, %v3499, %v3501
        %v3508 = vadd.f32 %v3479, %v3502
        %v3509 = vadd.f32 %v3480, %v3503
        %v3510 = vadd.f32 %v3481, %v3504
        %s3511 = scalar_lea.vmem %s1, 208
        %v3512 = vld [vmem:[%s3511] sm:$0xff]
        %3514 = vset.pattern.permute.xlu0 0
        %3515 = vperm.xlu0 %3514, %v3512
        %v3516 = vpop.permute.xlu0 %3515
        %v3518 = vmul.f32 %v3516, %v2516
        %v3519 = vmul.f32 %v3516, %v2520
        %v3520 = vmul.f32 %v3516, %v2524
        %v3521 = vmul.f32 %v3516, %v2657
        %3526 = vrot.lane.b32.xlu0 %v3518, 78
        %v3527 = vpop.permute.xlu0 %3526
        %3528 = vrot.lane.b32.xlu0 %v3519, 78
        %v3529 = vpop.permute.xlu0 %3528
        %3530 = vrot.lane.b32.xlu0 %v3520, 78
        %v3531 = vpop.permute.xlu0 %3530
        %3532 = vrot.lane.b32.xlu0 %v3521, 78
        %v3533 = vpop.permute.xlu0 %3532
        %v3534 = vsel %vm1239, %v3527, %v3529
        %v3535 = vsel %vm1239, %v3529, %v3531
        %v3536 = vsel %vm1239, %v3531, %v3533
        %v3540 = vadd.f32 %v3508, %v3534
        %v3541 = vadd.f32 %v3509, %v3535
        %v3542 = vadd.f32 %v3510, %v3536
        %3543 = vset.pattern.permute.xlu0 1
        %3544 = vperm.xlu0 %3543, %v3512
        %v3545 = vpop.permute.xlu0 %3544
        %v3547 = vmul.f32 %v3545, %v2553
        %v3548 = vmul.f32 %v3545, %v2557
        %v3549 = vmul.f32 %v3545, %v2561
        %v3550 = vmul.f32 %v3545, %v2695
        %3555 = vrot.lane.b32.xlu0 %v3547, 78
        %v3556 = vpop.permute.xlu0 %3555
        %3557 = vrot.lane.b32.xlu0 %v3548, 78
        %v3558 = vpop.permute.xlu0 %3557
        %3559 = vrot.lane.b32.xlu0 %v3549, 78
        %v3560 = vpop.permute.xlu0 %3559
        %3561 = vrot.lane.b32.xlu0 %v3550, 78
        %v3562 = vpop.permute.xlu0 %3561
        %v3563 = vsel %vm1239, %v3556, %v3558
        %v3564 = vsel %vm1239, %v3558, %v3560
        %v3565 = vsel %vm1239, %v3560, %v3562
        %v3569 = vadd.f32 %v3540, %v3563
        %v3570 = vadd.f32 %v3541, %v3564
        %v3571 = vadd.f32 %v3542, %v3565
        %3572 = vset.pattern.permute.xlu0 2
        %3573 = vperm.xlu0 %3572, %v3512
        %v3574 = vpop.permute.xlu0 %3573
        %v3576 = vmul.f32 %v3574, %v2590
        %v3577 = vmul.f32 %v3574, %v2594
        %v3578 = vmul.f32 %v3574, %v2598
        %v3579 = vmul.f32 %v3574, %v2733
        %3584 = vrot.lane.b32.xlu0 %v3576, 78
        %v3585 = vpop.permute.xlu0 %3584
        %3586 = vrot.lane.b32.xlu0 %v3577, 78
        %v3587 = vpop.permute.xlu0 %3586
        %3588 = vrot.lane.b32.xlu0 %v3578, 78
        %v3589 = vpop.permute.xlu0 %3588
        %3590 = vrot.lane.b32.xlu0 %v3579, 78
        %v3591 = vpop.permute.xlu0 %3590
        %v3592 = vsel %vm1239, %v3585, %v3587
        %v3593 = vsel %vm1239, %v3587, %v3589
        %v3594 = vsel %vm1239, %v3589, %v3591
        %v3598 = vadd.f32 %v3569, %v3592
        %v3599 = vadd.f32 %v3570, %v3593
        %v3600 = vadd.f32 %v3571, %v3594
        %3601 = vset.pattern.permute.xlu0 3
        %3602 = vperm.xlu0 %3601, %v3512
        %v3603 = vpop.permute.xlu0 %3602
        %v3605 = vmul.f32 %v3603, %v2627
        %v3606 = vmul.f32 %v3603, %v2631
        %v3607 = vmul.f32 %v3603, %v2635
        %v3608 = vmul.f32 %v3603, %v2771
        %3613 = vrot.lane.b32.xlu0 %v3605, 78
        %v3614 = vpop.permute.xlu0 %3613
        %3615 = vrot.lane.b32.xlu0 %v3606, 78
        %v3616 = vpop.permute.xlu0 %3615
        %3617 = vrot.lane.b32.xlu0 %v3607, 78
        %v3618 = vpop.permute.xlu0 %3617
        %3619 = vrot.lane.b32.xlu0 %v3608, 78
        %v3620 = vpop.permute.xlu0 %3619
        %v3621 = vsel %vm1239, %v3614, %v3616
        %v3622 = vsel %vm1239, %v3616, %v3618
        %v3623 = vsel %vm1239, %v3618, %v3620
        %v3627 = vadd.f32 %v3598, %v3621
        %v3628 = vadd.f32 %v3599, %v3622
        %v3629 = vadd.f32 %v3600, %v3623
        %v3630 = vld [vmem:[%s2] sm:$0xff]
        %3632 = vset.pattern.permute.xlu0 0
        %3633 = vperm.xlu0 %3632, %v3630
        %v3634 = vpop.permute.xlu0 %3633
        %v3636 = vadd.f32 %v3627, %v3634
        %v3637 = vadd.f32 %v3628, %v3634
        %v3638 = vadd.f32 %v3629, %v3634
        %vm3639 = vcmp.ge.f32.partialorder %v3636, 0.0
        %vm3640 = vcmp.ge.f32.partialorder %v3637, 0.0
        %vm3641 = vcmp.ge.f32.partialorder %v3638, 0.0
        %v3642 = vmul.f32 %v3636, 0.2
        %v3643 = vmul.f32 %v3637, 0.2
        %v3644 = vmul.f32 %v3638, 0.2
        %v3645 = vsel %vm3639, %v3636, %v3642
        %v3646 = vsel %vm3640, %v3637, %v3643
        %v3647 = vsel %vm3641, %v3638, %v3644
        %3648 = vst [vmem:[%s177] sm:$0xff] %v3645
        %3649 = vst [vmem:[%s177 + $0x8] sm:$0xff] %v3646
        %3650 = vst [vmem:[%s177 + $0x10] sm:$0xff] %v3647
        %s3651 = sand.u32 %s107, 1
        %s3652 = scalar_lea.sflag [#allocation3], %s3651
        %s3653 = sand.u32 %s107, 1
        %s3654 = smul.addr %s3653, 24
        %s3655 = scalar_lea.vmem [#allocation2], %s3654
        // Predicated region
        $region33: #{tpu_custom_call.1} parent=31 // pred_check
          %p3656 = pneg %p117
        $region34: #{tpu_custom_call.1} parent=31 // pred_check_branch
          %3658 = sbr.rel (%p3656) target = $region36
        $region35: #{tpu_custom_call.1} parent=31 // pred_region
          %s3660 = ssub.s32 384, 384
          %3661 = vsyncadd %s3652, %s3660
          %s3662 = smul.addr %s22, 3
          %s3663 = smul.addr %s21, 12
          %s3664 = sadd.s32 %s3662, %s3663
          %s3665 = smul.addr %s3664, 128
          %s3666 = scalar_lea.hbm %s3, %s3665
          %s3668 = sshll.u32 %s3655, 4
          %s3669 = int_to_ptr.vmem [resolvable:$true] %s3668
          %3671 = dma.vmem_to_hbm [thread:$0]  %s3669, 384, %s3666, %s3652
        $region36: #{tpu_custom_call.1} parent=31 // pred_fallthru
          _
      $region32: #{tpu_custom_call.1} parent=5 // pred_fallthru
        _
      %p3672 = scmp.le.s32.totalorder 2, %s12
      // Predicated region
      $region37: #{tpu_custom_call.1} parent=5 // pred_check
        %p3673 = pneg %p3672
      $region38: #{tpu_custom_call.1} parent=5 // pred_check_branch
        %3675 = sbr.rel (%p3673) target = $region40
      $region39: #{tpu_custom_call.1} parent=5 // pred_region
        %s3676 = ssub.s32 %s12, 2
        // Predicated region
        $region41: #{tpu_custom_call.1} parent=39 // pred_check
          %p3677 = pneg %p123
        $region42: #{tpu_custom_call.1} parent=39 // pred_check_branch
          %3679 = sbr.rel (%p3677) target = $region44
        $region43: #{tpu_custom_call.1} parent=39 // pred_region
          %s3680 = sand.u32 %s108, 1
          %s3681 = scalar_lea.sflag [#allocation3], %s3680
          %s3682 = sand.u32 %s108, 1
          %s3683 = smul.addr %s3682, 24
          %s3684 = scalar_lea.vmem [#allocation2], %s3683
          %3685 = dma.done %s3681, 384
        $region44: #{tpu_custom_call.1} parent=39 // pred_fallthru
          _
      $region40: #{tpu_custom_call.1} parent=5 // pred_fallthru
        _
    $region6: #{tpu_custom_call.1} parent=1 // loop_footer
      %s16 = sadd.s32 1, %s12
    $region7: #{tpu_custom_call.1} parent=1 // loop_footer_branch
      %11 = sbr.rel target = $region3
    $region8: #{tpu_custom_call.1} parent=1 // loop_exit
      _
    %3686 = vsyncpa [#allocation3], 1
    %s3687 = scalar_lea.sflag [#allocation3], 1
    %3688 = vsyncpa %s3687, 1

</llo_original>
